<compile_context>
chip_gen: v7x
topology: tpu7x:2x2x1
jax: 0.10.0
libtpu: 0.0.40
codegen_flags: <defaults>
</compile_context>

<pallas_src>
import jax
import jax.numpy as jnp
from jax.experimental import pallas as pl
from jax.experimental.pallas import tpu as pltpu


def _round_up(n, m):
    return -(-n // m) * m


def mlp_kernel(x_ref, *refs):
    """Fused MLP forward for one batch tile.

    refs = (w0, b0, w1, b1, ..., wL, bL, out_ref).
    Weights are bf16 (MXU operands), biases f32; accumulation and all elementwise
    work (bias add, ReLU) happen in f32.
    """
    out_ref = refs[-1]
    wb = refs[:-1]
    n_layers = len(wb) // 2

    h = x_ref[...]                  # (TILE_B, in_pad), f32
    for i in range(n_layers):
        w = wb[2 * i][...]          # (d_in_pad, d_out_pad), bf16
        b = wb[2 * i + 1][...]      # (1, d_out_pad), f32
        acc = jnp.dot(h.astype(w.dtype), w, preferred_element_type=jnp.float32)
        acc = acc + b
        if i < n_layers - 1:        # ReLU on hidden layers only
            acc = jnp.maximum(acc, 0.0)
        h = acc
    out_ref[...] = h.astype(out_ref.dtype)


def init_policy_params(key, input_dim, hidden_dims, output_dim):
    """Deterministic synthetic f32 parameters matching PolicyNN's layer shapes.

    Returns a list of (W (d_in, d_out), b (1, d_out)) in float32 (logical, unpadded).
    """
    dims = [input_dim] + list(hidden_dims) + [output_dim]
    params = []
    for d_in, d_out in zip(dims[:-1], dims[1:]):
        key, kw, kb = jax.random.split(key, 3)
        w = jax.random.normal(kw, (d_in, d_out), dtype=jnp.float32) * 0.05
        b = jax.random.normal(kb, (1, d_out), dtype=jnp.float32) * 0.05
        params.append((w, b))
    return params


def pad_policy_params(params, weight_dtype=jnp.bfloat16, lane=128):
    """Zero-pad each (W, b) so every feature dim is a multiple of `lane` (128).

    Padding rows/columns are exactly zero, so results on the true [:, :d_out]
    region match the unpadded math. Weights are stored in `weight_dtype` (bf16)
    for the MXU; biases stay f32 since bias add / ReLU run in f32.
    """
    padded = []
    for w, b in params:
        d_in, d_out = w.shape
        in_p, out_p = _round_up(d_in, lane), _round_up(d_out, lane)
        w_p = jnp.zeros((in_p, out_p), dtype=weight_dtype)
        w_p = w_p.at[:d_in, :d_out].set(w.astype(weight_dtype))
        b_p = jnp.zeros((1, out_p), dtype=jnp.float32)
        b_p = b_p.at[:, :d_out].set(b.astype(jnp.float32))
        padded.append((w_p, b_p))
    return padded


def policy_nn_forward(x, padded_params, output_dim, tile_b=256):
    """Fused Pallas forward pass.

    x: (batch, input_dim) f32.  padded_params: output of pad_policy_params.
    Returns (batch, output_dim) in x.dtype.
    """
    batch, in_dim = x.shape
    in_pad = padded_params[0][0].shape[0]
    out_pad = padded_params[-1][0].shape[1]

    # Lane-pad input features with zeros (zero rows of W0 make this a no-op).
    if in_dim < in_pad:
        x = jnp.pad(x, ((0, 0), (0, in_pad - in_dim)))

    # Batch tiling: TILE_B multiple of 8 sublanes; pad batch up to a tile multiple.
    tile_b = min(tile_b, _round_up(batch, 8))
    padded_batch = _round_up(batch, tile_b)
    if padded_batch != batch:
        x = jnp.pad(x, ((0, padded_batch - batch), (0, 0)))

    grid = (padded_batch // tile_b,)

    flat_args = [x]
    in_specs = [pl.BlockSpec((tile_b, in_pad), lambda i: (i, 0))]
    for w, b in padded_params:
        flat_args.extend([w, b])
        # Full-array blocks with a constant index_map -> resident in VMEM across
        # all grid steps (no re-DMA after the first step).
        in_specs.append(pl.BlockSpec(w.shape, lambda i: (0, 0)))
        in_specs.append(pl.BlockSpec(b.shape, lambda i: (0, 0)))

    itemsize = jnp.dtype(x.dtype).itemsize
    flops = 2 * padded_batch * sum(int(w.shape[0]) * int(w.shape[1])
                                   for w, _ in padded_params)
    bytes_accessed = (x.size * itemsize
                      + padded_batch * out_pad * itemsize
                      + sum(w.size * jnp.dtype(w.dtype).itemsize
                            + b.size * jnp.dtype(b.dtype).itemsize
                            for w, b in padded_params))

    out_padded = pl.pallas_call(
        mlp_kernel,
        out_shape=jax.ShapeDtypeStruct((padded_batch, out_pad), x.dtype),
        grid=grid,
        in_specs=in_specs,
        out_specs=pl.BlockSpec((tile_b, out_pad), lambda i: (i, 0)),
        compiler_params=pltpu.CompilerParams(
            dimension_semantics=("parallel",)),
        cost_estimate=pl.CostEstimate(flops=flops, transcendentals=0,
                                      bytes_accessed=bytes_accessed),
    )(*flat_args)

    return out_padded[:batch, :output_dim]


def policy_nn_reference(x, params, weight_dtype=jnp.bfloat16):
    """Pure-JAX reference of the same forward pass (same bf16 MXU operands)."""
    h = x.astype(jnp.float32)
    for i, (w, b) in enumerate(params):
        h = jnp.dot(h.astype(weight_dtype), w.astype(weight_dtype),
                    preferred_element_type=jnp.float32) + b.astype(jnp.float32)
        if i < len(params) - 1:
            h = jnp.maximum(h, 0.0)
    return h.astype(x.dtype)


if __name__ == "__main__":
    # Shapes consistent with the spec: input_dim = 4096 + 12, output_dim = 3.
    # batch=300 with tile_b=128 exercises both the multi-step batch grid (3 tiles)
    # and batch padding (300 -> 384).
    batch = 300
    input_dim = 4096 + 12       # 4108, padded to 4224 lanes inside the wrapper
    hidden_dims = [256, 64]     # 64 padded to 128 lanes inside the wrapper
    output_dim = 3              # padded to 128 lanes; wrapper slices [:, :3]

    key = jax.random.PRNGKey(0)
    key, kx = jax.random.split(key)
    x = jax.random.normal(kx, (batch, input_dim), dtype=jnp.float32)

    params = init_policy_params(key, input_dim, hidden_dims, output_dim)
    padded_params = pad_policy_params(params, weight_dtype=jnp.bfloat16)

    out = policy_nn_forward(x, padded_params, output_dim=output_dim, tile_b=128)
    out = jax.block_until_ready(out)

    ref = policy_nn_reference(x, params, weight_dtype=jnp.bfloat16)
    assert out.shape == (batch, output_dim)
    assert out.dtype == x.dtype
    assert jnp.allclose(out, ref, atol=2e-3, rtol=2e-3), \
        float(jnp.max(jnp.abs(out - ref)))

    print("KERNEL_OK")
</pallas_src>

<mosaic_0001>
module attributes {stable_mosaic.version = 11 : i64} {
  func.func @mlp_kernel(%arg0: i32, %arg1: memref<128x4224xf32, #tpu.memory_space<vmem>>, %arg2: memref<4224x256xbf16, #tpu.memory_space<vmem>>, %arg3: memref<1x256xf32, #tpu.memory_space<vmem>>, %arg4: memref<256x128xbf16, #tpu.memory_space<vmem>>, %arg5: memref<1x128xf32, #tpu.memory_space<vmem>>, %arg6: memref<128x128xbf16, #tpu.memory_space<vmem>>, %arg7: memref<1x128xf32, #tpu.memory_space<vmem>>, %arg8: memref<128x128xf32, #tpu.memory_space<vmem>>) attributes {dimension_semantics = [#tpu.dimension_semantics<parallel>], iteration_bounds = array<i64: 3>, scalar_prefetch = 0 : i64, scratch_operands = 0 : i64, tpu.core_type = #tpu.core_type<tc>, window_params = [{transform_indices = @transform_0, window_bounds = array<i64: 128, 4224>}, {pipeline_mode = #tpu.pipeline_mode<synchronous>, transform_indices = @transform_1, window_bounds = array<i64: 4224, 256>}, {pipeline_mode = #tpu.pipeline_mode<synchronous>, transform_indices = @transform_2, window_bounds = array<i64: 1, 256>}, {pipeline_mode = #tpu.pipeline_mode<synchronous>, transform_indices = @transform_3, window_bounds = array<i64: 256, 128>}, {pipeline_mode = #tpu.pipeline_mode<synchronous>, transform_indices = @transform_4, window_bounds = array<i64: 1, 128>}, {pipeline_mode = #tpu.pipeline_mode<synchronous>, transform_indices = @transform_5, window_bounds = array<i64: 128, 128>}, {pipeline_mode = #tpu.pipeline_mode<synchronous>, transform_indices = @transform_6, window_bounds = array<i64: 1, 128>}, {transform_indices = @transform_7, window_bounds = array<i64: 128, 128>}]} {
    %c0 = arith.constant 0 : index
    %c0_0 = arith.constant 0 : index
    %0 = vector.load %arg1[%c0, %c0_0] : memref<128x4224xf32, #tpu.memory_space<vmem>>, vector<128x4224xf32>
    %c0_1 = arith.constant 0 : index
    %c0_2 = arith.constant 0 : index
    %1 = vector.load %arg2[%c0_1, %c0_2] : memref<4224x256xbf16, #tpu.memory_space<vmem>>, vector<4224x256xbf16>
    %c0_3 = arith.constant 0 : index
    %c0_4 = arith.constant 0 : index
    %2 = vector.load %arg3[%c0_3, %c0_4] : memref<1x256xf32, #tpu.memory_space<vmem>>, vector<1x256xf32>
    %3 = arith.truncf %0 : vector<128x4224xf32> to vector<128x4224xbf16>
    %cst = arith.constant dense<0.000000e+00> : vector<128x256xf32>
    %4 = tpu.matmul %3, %1, %cst {dimension_numbers = #tpu.dot_dimension_numbers<[1], [0], [0], [1], [0, 0, 1, 1], [], []>} : vector<128x4224xbf16>, vector<4224x256xbf16>, vector<128x256xf32> -> vector<128x256xf32>
    %5 = vector.broadcast %2 : vector<1x256xf32> to vector<128x256xf32>
    %6 = arith.addf %4, %5 : vector<128x256xf32>
    %cst_5 = arith.constant 0.000000e+00 : f32
    %7 = vector.broadcast %cst_5 : f32 to vector<128x256xf32>
    %8 = arith.maximumf %6, %7 : vector<128x256xf32>
    %c0_6 = arith.constant 0 : index
    %c0_7 = arith.constant 0 : index
    %9 = vector.load %arg4[%c0_6, %c0_7] : memref<256x128xbf16, #tpu.memory_space<vmem>>, vector<256x128xbf16>
    %c0_8 = arith.constant 0 : index
    %c0_9 = arith.constant 0 : index
    %10 = vector.load %arg5[%c0_8, %c0_9] : memref<1x128xf32, #tpu.memory_space<vmem>>, vector<1x128xf32>
    %11 = arith.truncf %8 : vector<128x256xf32> to vector<128x256xbf16>
    %cst_10 = arith.constant dense<0.000000e+00> : vector<128x128xf32>
    %12 = tpu.matmul %11, %9, %cst_10 {dimension_numbers = #tpu.dot_dimension_numbers<[1], [0], [0], [1], [0, 0, 1, 1], [], []>} : vector<128x256xbf16>, vector<256x128xbf16>, vector<128x128xf32> -> vector<128x128xf32>
    %13 = vector.broadcast %10 : vector<1x128xf32> to vector<128x128xf32>
    %14 = arith.addf %12, %13 : vector<128x128xf32>
    %cst_11 = arith.constant 0.000000e+00 : f32
    %15 = vector.broadcast %cst_11 : f32 to vector<128x128xf32>
    %16 = arith.maximumf %14, %15 : vector<128x128xf32>
    %c0_12 = arith.constant 0 : index
    %c0_13 = arith.constant 0 : index
    %17 = vector.load %arg6[%c0_12, %c0_13] : memref<128x128xbf16, #tpu.memory_space<vmem>>, vector<128x128xbf16>
    %c0_14 = arith.constant 0 : index
    %c0_15 = arith.constant 0 : index
    %18 = vector.load %arg7[%c0_14, %c0_15] : memref<1x128xf32, #tpu.memory_space<vmem>>, vector<1x128xf32>
    %19 = arith.truncf %16 : vector<128x128xf32> to vector<128x128xbf16>
    %cst_16 = arith.constant dense<0.000000e+00> : vector<128x128xf32>
    %20 = tpu.matmul %19, %17, %cst_16 {dimension_numbers = #tpu.dot_dimension_numbers<[1], [0], [0], [1], [0, 0, 1, 1], [], []>} : vector<128x128xbf16>, vector<128x128xbf16>, vector<128x128xf32> -> vector<128x128xf32>
    %21 = vector.broadcast %18 : vector<1x128xf32> to vector<128x128xf32>
    %22 = arith.addf %20, %21 : vector<128x128xf32>
    %c0_17 = arith.constant 0 : index
    %c0_18 = arith.constant 0 : index
    %23 = vector.load %arg8[%c0_17, %c0_18] : memref<128x128xf32, #tpu.memory_space<vmem>>, vector<128x128xf32>
    tpu.vector_store %arg8[%c0_17, %c0_18], %22 {strides = array<i32>} : memref<128x128xf32, #tpu.memory_space<vmem>>, vector<128x128xf32>,
    return
  }
  func.func @transform_0(%arg0: i32) -> (i32, i32) {
    %c0_i32 = arith.constant 0 : i32
    %c0_i32_0 = arith.constant 0 : i32
    return %arg0, %c0_i32 : i32, i32
  }
  func.func @transform_1(%arg0: i32) -> (i32, i32) {
    %c0_i32 = arith.constant 0 : i32
    %c0_i32_0 = arith.constant 0 : i32
    %c0_i32_1 = arith.constant 0 : i32
    return %c0_i32, %c0_i32_0 : i32, i32
  }
  func.func @transform_2(%arg0: i32) -> (i32, i32) {
    %c0_i32 = arith.constant 0 : i32
    %c0_i32_0 = arith.constant 0 : i32
    %c0_i32_1 = arith.constant 0 : i32
    return %c0_i32, %c0_i32_0 : i32, i32
  }
  func.func @transform_3(%arg0: i32) -> (i32, i32) {
    %c0_i32 = arith.constant 0 : i32
    %c0_i32_0 = arith.constant 0 : i32
    %c0_i32_1 = arith.constant 0 : i32
    return %c0_i32, %c0_i32_0 : i32, i32
  }
  func.func @transform_4(%arg0: i32) -> (i32, i32) {
    %c0_i32 = arith.constant 0 : i32
    %c0_i32_0 = arith.constant 0 : i32
    %c0_i32_1 = arith.constant 0 : i32
    return %c0_i32, %c0_i32_0 : i32, i32
  }
  func.func @transform_5(%arg0: i32) -> (i32, i32) {
    %c0_i32 = arith.constant 0 : i32
    %c0_i32_0 = arith.constant 0 : i32
    %c0_i32_1 = arith.constant 0 : i32
    return %c0_i32, %c0_i32_0 : i32, i32
  }
  func.func @transform_6(%arg0: i32) -> (i32, i32) {
    %c0_i32 = arith.constant 0 : i32
    %c0_i32_0 = arith.constant 0 : i32
    %c0_i32_1 = arith.constant 0 : i32
    return %c0_i32, %c0_i32_0 : i32, i32
  }
  func.func @transform_7(%arg0: i32) -> (i32, i32) {
    %c0_i32 = arith.constant 0 : i32
    %c0_i32_0 = arith.constant 0 : i32
    return %arg0, %c0_i32 : i32, i32
  }
}

</mosaic_0001>

<llo_original>
// kernel: tpu_custom_call.1
$region0: #{tpu_custom_call.1}
  #allocation0 [shape = 'u32[]', space=smem, size = 0x4, offset = 0x4, fixed_abs, tag = 'smem constant byte address 0x4 - core index']
  #allocation1 [shape = 'u32[144,128]{1,0:T(1,128)}', space=vmem, size = 0x12000, scoped, tag = 'internal scratch']
  %s0 = inlined_call_operand.hbm [shape: f32[384,4224], index: 0, kind: input, shape index: {}]
  %s1 = inlined_call_operand.hbm [shape: bf16[4224,256], index: 1, kind: input, shape index: {}]
  %s2 = inlined_call_operand.hbm [shape: f32[1,256], index: 2, kind: input, shape index: {}]
  %s3 = inlined_call_operand.hbm [shape: bf16[256,128], index: 3, kind: input, shape index: {}]
  %s4 = inlined_call_operand.hbm [shape: f32[1,128], index: 4, kind: input, shape index: {}]
  %s5 = inlined_call_operand.hbm [shape: bf16[128,128], index: 5, kind: input, shape index: {}]
  %s6 = inlined_call_operand.hbm [shape: f32[1,128], index: 6, kind: input, shape index: {}]
  %s7 = inlined_call_operand.hbm [shape: f32[384,128], index: 7, kind: output, shape index: {}]
  %s8 = sld [smem:[#allocation0]]
  $region89: #{tpu_custom_call.1} parent=0
    _
  %s10 = ssub.s32 1, %s8
  %s11 = scalar_select 0, %s10, %s8
  $region1: #{tpu_custom_call.1} parent=0
    #allocation2 [shape = 'u8[4325376]{0}', space=vmem, size = 0x420000, scoped, tag = 'input window, operand 0']
    #allocation3 [shape = 's32[2]{0}', space=sflag, size = 0x8, scoped, tag = 'scoped memory for tpu_custom_call.1']
    #allocation4 [shape = 's32[2]{0}', space=sflag, size = 0x8, scoped, tag = 'scoped memory for tpu_custom_call.1']
    #allocation5 [shape = 'u8[2162688]{0}', space=vmem, size = 0x210000, scoped, tag = 'input window, operand 1, single buffered']
    #allocation6 [shape = 's32[1]{0}', space=sflag, size = 0x4, scoped, tag = 'scoped memory for tpu_custom_call.1']
    #allocation7 [shape = 'u8[1024]{0}', space=vmem, size = 0x400, scoped, tag = 'input window, operand 2, single buffered']
    #allocation8 [shape = 'u8[65536]{0}', space=vmem, size = 0x10000, scoped, tag = 'input window, operand 3, single buffered']
    #allocation9 [shape = 's32[1]{0}', space=sflag, size = 0x4, scoped, tag = 'scoped memory for tpu_custom_call.1']
    #allocation10 [shape = 'u8[512]{0}', space=vmem, size = 0x400, scoped, tag = 'input window, operand 4, single buffered']
    #allocation11 [shape = 'u8[32768]{0}', space=vmem, size = 0x8000, scoped, tag = 'input window, operand 5, single buffered']
    #allocation12 [shape = 's32[1]{0}', space=sflag, size = 0x4, scoped, tag = 'scoped memory for tpu_custom_call.1']
    #allocation13 [shape = 'u8[512]{0}', space=vmem, size = 0x400, scoped, tag = 'input window, operand 6, single buffered']
    #allocation14 [shape = 'u8[131072]{0}', space=vmem, size = 0x20000, scoped, tag = 'output window, operand 0']
    %12 = vsyncpa [#allocation3], 0
    %s13 = scalar_lea.sflag [#allocation3], 1
    %14 = vsyncpa %s13, 0
    %15 = vsyncpa [#allocation6], 0
    %16 = vsyncpa [#allocation9], 0
    %17 = vsyncpa [#allocation12], 0
    %18 = vsyncpa [#allocation4], 0
    %s19 = scalar_lea.sflag [#allocation4], 1
    %20 = vsyncpa %s19, 0
    loop: start=0, step=1, limit=5
    $region2: #{tpu_custom_call.1} parent=1 // loop_pre_header
      _
    $region3: #{tpu_custom_call.1} parent=1 // loop_header
      %s22 = sphi 0, %s26
      %p23 = scmp.ge.s32.totalorder %s22, 5
      %s32 = sphi 0, %s34
      %s35 = sphi 0, %s32
      %s36 = sphi 0, %s35
      %s52 = sphi 0, %s36
      %s56 = sphi 0, %s56
      %s58 = sphi 0, %s56
      %s59 = sphi 0, %s58
      %s73 = sphi 0, %s59
      %s77 = sphi 0, %s77
      %s79 = sphi 0, %s77
      %s80 = sphi 0, %s79
      %s94 = sphi 0, %s80
      %s98 = sphi 0, %s98
      %s100 = sphi 0, %s98
      %s101 = sphi 0, %s100
      %s115 = sphi 0, %s101
      %s119 = sphi 0, %s119
      %s121 = sphi 0, %s119
      %s122 = sphi 0, %s121
      %s136 = sphi 0, %s122
      %s140 = sphi 0, %s140
      %s142 = sphi 0, %s140
      %s143 = sphi 0, %s142
      %s157 = sphi 0, %s143
      %s161 = sphi 0, %s161
      %s163 = sphi 0, %s161
      %s164 = sphi 0, %s163
      %s178 = sphi 0, %s164
      %s184 = sphi 0, %s186
      %s187 = sphi 0, %s184
      %s188 = sphi 0, %s187
      %s204 = sphi 0, %s188
    $region4: #{tpu_custom_call.1} parent=1 // loop_header_branch
      %25 = sbr.rel (%p23) target = $region8
    $region5: #{tpu_custom_call.1} parent=1 // loop_body
      %s27 = ssub.s32 %s22, 1
      %s28 = ssub.s32 %s22, 2
      %s29 = sadd.s32 %s22, 1
      %s30 = ssub.s32 %s22, %s29
      %p31 = scmp.eq.s32.totalorder %s30, 0
      %s33 = sadd.s32 %s32, 1
      %s34 = scalar_select %p31, %s32, %s33
      %p37 = pneg %p31
      %p38 = scmp.eq.s32.totalorder %s22, 2
      %p39 = por %p37, %p38
      %p40 = scmp.ne.s32.totalorder %s32, %s35
      %p41 = scmp.eq.s32.totalorder %s22, 0
      %p42 = por %p40, %p41
      %p43 = scmp.ne.s32.totalorder %s32, %s35
      %p44 = scmp.eq.s32.totalorder %s27, 2
      %p45 = por %p43, %p44
      %p46 = scmp.ne.s32.totalorder %s35, %s36
      %p47 = scmp.eq.s32.totalorder %s27, 0
      %p48 = por %p46, %p47
      %p49 = scmp.ne.s32.totalorder %s35, %s36
      %p50 = scmp.eq.s32.totalorder %s28, 2
      %p51 = por %p49, %p50
      %p53 = scmp.ne.s32.totalorder %s36, %s52
      %p54 = scmp.eq.s32.totalorder %s28, 0
      %p55 = por %p53, %p54
      %s57 = sadd.s32 %s56, 1
      %p60 = scmp.eq.s32.totalorder %s22, 2
      %p61 = scmp.ne.s32.totalorder %s56, %s58
      %p62 = scmp.eq.s32.totalorder %s22, 0
      %p63 = por %p61, %p62
      %p64 = scmp.ne.s32.totalorder %s56, %s58
      %p65 = scmp.eq.s32.totalorder %s27, 2
      %p66 = por %p64, %p65
      %p67 = scmp.ne.s32.totalorder %s58, %s59
      %p68 = scmp.eq.s32.totalorder %s27, 0
      %p69 = por %p67, %p68
      %p70 = scmp.ne.s32.totalorder %s58, %s59
      %p71 = scmp.eq.s32.totalorder %s28, 2
      %p72 = por %p70, %p71
      %p74 = scmp.ne.s32.totalorder %s59, %s73
      %p75 = scmp.eq.s32.totalorder %s28, 0
      %p76 = por %p74, %p75
      %s78 = sadd.s32 %s77, 1
      %p81 = scmp.eq.s32.totalorder %s22, 2
      %p82 = scmp.ne.s32.totalorder %s77, %s79
      %p83 = scmp.eq.s32.totalorder %s22, 0
      %p84 = por %p82, %p83
      %p85 = scmp.ne.s32.totalorder %s77, %s79
      %p86 = scmp.eq.s32.totalorder %s27, 2
      %p87 = por %p85, %p86
      %p88 = scmp.ne.s32.totalorder %s79, %s80
      %p89 = scmp.eq.s32.totalorder %s27, 0
      %p90 = por %p88, %p89
      %p91 = scmp.ne.s32.totalorder %s79, %s80
      %p92 = scmp.eq.s32.totalorder %s28, 2
      %p93 = por %p91, %p92
      %p95 = scmp.ne.s32.totalorder %s80, %s94
      %p96 = scmp.eq.s32.totalorder %s28, 0
      %p97 = por %p95, %p96
      %s99 = sadd.s32 %s98, 1
      %p102 = scmp.eq.s32.totalorder %s22, 2
      %p103 = scmp.ne.s32.totalorder %s98, %s100
      %p104 = scmp.eq.s32.totalorder %s22, 0
      %p105 = por %p103, %p104
      %p106 = scmp.ne.s32.totalorder %s98, %s100
      %p107 = scmp.eq.s32.totalorder %s27, 2
      %p108 = por %p106, %p107
      %p109 = scmp.ne.s32.totalorder %s100, %s101
      %p110 = scmp.eq.s32.totalorder %s27, 0
      %p111 = por %p109, %p110
      %p112 = scmp.ne.s32.totalorder %s100, %s101
      %p113 = scmp.eq.s32.totalorder %s28, 2
      %p114 = por %p112, %p113
      %p116 = scmp.ne.s32.totalorder %s101, %s115
      %p117 = scmp.eq.s32.totalorder %s28, 0
      %p118 = por %p116, %p117
      %s120 = sadd.s32 %s119, 1
      %p123 = scmp.eq.s32.totalorder %s22, 2
      %p124 = scmp.ne.s32.totalorder %s119, %s121
      %p125 = scmp.eq.s32.totalorder %s22, 0
      %p126 = por %p124, %p125
      %p127 = scmp.ne.s32.totalorder %s119, %s121
      %p128 = scmp.eq.s32.totalorder %s27, 2
      %p129 = por %p127, %p128
      %p130 = scmp.ne.s32.totalorder %s121, %s122
      %p131 = scmp.eq.s32.totalorder %s27, 0
      %p132 = por %p130, %p131
      %p133 = scmp.ne.s32.totalorder %s121, %s122
      %p134 = scmp.eq.s32.totalorder %s28, 2
      %p135 = por %p133, %p134
      %p137 = scmp.ne.s32.totalorder %s122, %s136
      %p138 = scmp.eq.s32.totalorder %s28, 0
      %p139 = por %p137, %p138
      %s141 = sadd.s32 %s140, 1
      %p144 = scmp.eq.s32.totalorder %s22, 2
      %p145 = scmp.ne.s32.totalorder %s140, %s142
      %p146 = scmp.eq.s32.totalorder %s22, 0
      %p147 = por %p145, %p146
      %p148 = scmp.ne.s32.totalorder %s140, %s142
      %p149 = scmp.eq.s32.totalorder %s27, 2
      %p150 = por %p148, %p149
      %p151 = scmp.ne.s32.totalorder %s142, %s143
      %p152 = scmp.eq.s32.totalorder %s27, 0
      %p153 = por %p151, %p152
      %p154 = scmp.ne.s32.totalorder %s142, %s143
      %p155 = scmp.eq.s32.totalorder %s28, 2
      %p156 = por %p154, %p155
      %p158 = scmp.ne.s32.totalorder %s143, %s157
      %p159 = scmp.eq.s32.totalorder %s28, 0
      %p160 = por %p158, %p159
      %s162 = sadd.s32 %s161, 1
      %p165 = scmp.eq.s32.totalorder %s22, 2
      %p166 = scmp.ne.s32.totalorder %s161, %s163
      %p167 = scmp.eq.s32.totalorder %s22, 0
      %p168 = por %p166, %p167
      %p169 = scmp.ne.s32.totalorder %s161, %s163
      %p170 = scmp.eq.s32.totalorder %s27, 2
      %p171 = por %p169, %p170
      %p172 = scmp.ne.s32.totalorder %s163, %s164
      %p173 = scmp.eq.s32.totalorder %s27, 0
      %p174 = por %p172, %p173
      %p175 = scmp.ne.s32.totalorder %s163, %s164
      %p176 = scmp.eq.s32.totalorder %s28, 2
      %p177 = por %p175, %p176
      %p179 = scmp.ne.s32.totalorder %s164, %s178
      %p180 = scmp.eq.s32.totalorder %s28, 0
      %p181 = por %p179, %p180
      %s182 = ssub.s32 %s22, %s29
      %p183 = scmp.eq.s32.totalorder %s182, 0
      %s185 = sadd.s32 %s184, 1
      %s186 = scalar_select %p183, %s184, %s185
      %p189 = pneg %p183
      %p190 = scmp.eq.s32.totalorder %s22, 2
      %p191 = por %p189, %p190
      %p192 = scmp.ne.s32.totalorder %s184, %s187
      %p193 = scmp.eq.s32.totalorder %s22, 0
      %p194 = por %p192, %p193
      %p195 = scmp.ne.s32.totalorder %s184, %s187
      %p196 = scmp.eq.s32.totalorder %s27, 2
      %p197 = por %p195, %p196
      %p198 = scmp.ne.s32.totalorder %s187, %s188
      %p199 = scmp.eq.s32.totalorder %s27, 0
      %p200 = por %p198, %p199
      %p201 = scmp.ne.s32.totalorder %s187, %s188
      %p202 = scmp.eq.s32.totalorder %s28, 2
      %p203 = por %p201, %p202
      %p205 = scmp.ne.s32.totalorder %s188, %s204
      %p206 = scmp.eq.s32.totalorder %s28, 0
      %p207 = por %p205, %p206
      %p208 = scmp.le.s32.totalorder 1, %s22
      %p209 = scmp.lt.s32.totalorder %s22, 4
      %p210 = pnand %p208, %p209
      %p211 = pneg %p210
      // Predicated region
      $region9: #{tpu_custom_call.1} parent=5 // pred_check
        _
      $region10: #{tpu_custom_call.1} parent=5 // pred_check_branch
        %213 = sbr.rel (%p210) target = $region12
      $region11: #{tpu_custom_call.1} parent=5 // pred_region
        %s214 = ssub.s32 %s22, 1
        // Predicated region
        $region13: #{tpu_custom_call.1} parent=11 // pred_check
          %p215 = pneg %p69
        $region14: #{tpu_custom_call.1} parent=11 // pred_check_branch
          %217 = sbr.rel (%p215) target = $region16
        $region15: #{tpu_custom_call.1} parent=11 // pred_region
          %s219 = ssub.s32 67584, 67584
          %220 = vsyncadd [#allocation6], %s219
          %s221 = sshll.u32 [#allocation5], 4
          %s222 = int_to_ptr.vmem [resolvable:$true] %s221
          %227 = dma.hbm_to_vmem [thread:$0]  %s1, 67584, %s222, [#allocation6], 128, 128, 8
        $region16: #{tpu_custom_call.1} parent=11 // pred_fallthru
          _
        // Predicated region
        $region17: #{tpu_custom_call.1} parent=11 // pred_check
          %p228 = pneg %p90
        $region18: #{tpu_custom_call.1} parent=11 // pred_check_branch
          %230 = sbr.rel (%p228) target = $region20
        $region19: #{tpu_custom_call.1} parent=11 // pred_region
          %s232 = ssub.s32 32, 32
          %233 = vsyncadd [#allocation6], %s232
          %s235 = sshll.u32 [#allocation7], 4
          %s236 = int_to_ptr.vmem [resolvable:$true] %s235
          %238 = dma.hbm_to_vmem [thread:$0]  %s2, 32, %s236, [#allocation6]
        $region20: #{tpu_custom_call.1} parent=11 // pred_fallthru
          _
        // Predicated region
        $region21: #{tpu_custom_call.1} parent=11 // pred_check
          %p239 = pneg %p111
        $region22: #{tpu_custom_call.1} parent=11 // pred_check_branch
          %241 = sbr.rel (%p239) target = $region24
        $region23: #{tpu_custom_call.1} parent=11 // pred_region
          %s243 = ssub.s32 2048, 2048
          %244 = vsyncadd [#allocation9], %s243
          %s245 = sshll.u32 [#allocation8], 4
          %s246 = int_to_ptr.vmem [resolvable:$true] %s245
          %251 = dma.hbm_to_vmem [thread:$0]  %s3, 2048, %s246, [#allocation9], 64, 64, 4
        $region24: #{tpu_custom_call.1} parent=11 // pred_fallthru
          _
        // Predicated region
        $region25: #{tpu_custom_call.1} parent=11 // pred_check
          %p252 = pneg %p132
        $region26: #{tpu_custom_call.1} parent=11 // pred_check_branch
          %254 = sbr.rel (%p252) target = $region28
        $region27: #{tpu_custom_call.1} parent=11 // pred_region
          %s256 = ssub.s32 16, 16
          %257 = vsyncadd [#allocation9], %s256
          %s259 = sshll.u32 [#allocation10], 4
          %s260 = int_to_ptr.vmem [resolvable:$true] %s259
          %262 = dma.hbm_to_vmem [thread:$0]  %s4, 16, %s260, [#allocation9]
        $region28: #{tpu_custom_call.1} parent=11 // pred_fallthru
          _
        // Predicated region
        $region29: #{tpu_custom_call.1} parent=11 // pred_check
          %p263 = pneg %p153
        $region30: #{tpu_custom_call.1} parent=11 // pred_check_branch
          %265 = sbr.rel (%p263) target = $region32
        $region31: #{tpu_custom_call.1} parent=11 // pred_region
          %s267 = ssub.s32 1024, 1024
          %268 = vsyncadd [#allocation12], %s267
          %s269 = sshll.u32 [#allocation11], 4
          %s270 = int_to_ptr.vmem [resolvable:$true] %s269
          %275 = dma.hbm_to_vmem [thread:$0]  %s5, 1024, %s270, [#allocation12], 64, 64, 4
        $region32: #{tpu_custom_call.1} parent=11 // pred_fallthru
          _
        // Predicated region
        $region33: #{tpu_custom_call.1} parent=11 // pred_check
          %p276 = pneg %p174
        $region34: #{tpu_custom_call.1} parent=11 // pred_check_branch
          %278 = sbr.rel (%p276) target = $region36
        $region35: #{tpu_custom_call.1} parent=11 // pred_region
          %s280 = ssub.s32 16, 16
          %281 = vsyncadd [#allocation12], %s280
          %s283 = sshll.u32 [#allocation13], 4
          %s284 = int_to_ptr.vmem [resolvable:$true] %s283
          %286 = dma.hbm_to_vmem [thread:$0]  %s6, 16, %s284, [#allocation12]
        $region36: #{tpu_custom_call.1} parent=11 // pred_fallthru
          _
      $region12: #{tpu_custom_call.1} parent=5 // pred_fallthru
        _
      %p287 = scmp.lt.s32.totalorder %s22, 3
      // Predicated region
      $region37: #{tpu_custom_call.1} parent=5 // pred_check
        %p288 = pneg %p287
      $region38: #{tpu_custom_call.1} parent=5 // pred_check_branch
        %290 = sbr.rel (%p288) target = $region40
      $region39: #{tpu_custom_call.1} parent=5 // pred_region
        // Predicated region
        $region41: #{tpu_custom_call.1} parent=39 // pred_check
          %p291 = pneg %p42
        $region42: #{tpu_custom_call.1} parent=39 // pred_check_branch
          %293 = sbr.rel (%p291) target = $region44
        $region43: #{tpu_custom_call.1} parent=39 // pred_region
          %s294 = sand.u32 %s32, 1
          %s295 = scalar_lea.sflag [#allocation3], %s294
          %s296 = sand.u32 %s32, 1
          %s297 = smul.addr %s296, 4224
          %s298 = scalar_lea.vmem [#allocation2], %s297
          %s299 = smul.u32 16, %s22
          %s301 = ssub.s32 67584, 67584
          %302 = vsyncadd %s295, %s301
          %s303 = smul.addr %s299, 33
          %s304 = smul.addr %s303, 128
          %s305 = scalar_lea.hbm %s0, %s304
          %s306 = sshll.u32 %s298, 4
          %s307 = int_to_ptr.vmem [resolvable:$true] %s306
          %312 = dma.hbm_to_vmem [thread:$0]  %s305, 67584, %s307, %s295, 4224, 4224, 264
        $region44: #{tpu_custom_call.1} parent=39 // pred_fallthru
          _
      $region40: #{tpu_custom_call.1} parent=5 // pred_fallthru
        _
      %p313 = scmp.le.s32.totalorder 1, %s22
      %p314 = scmp.lt.s32.totalorder %s22, 4
      %p315 = pnand %p313, %p314
      %p316 = pneg %p315
      // Predicated region
      $region45: #{tpu_custom_call.1} parent=5 // pred_check
        _
      $region46: #{tpu_custom_call.1} parent=5 // pred_check_branch
        %318 = sbr.rel (%p315) target = $region48
      $region47: #{tpu_custom_call.1} parent=5 // pred_region
        %s319 = ssub.s32 %s22, 1
        %s320 = sand.u32 %s35, 1
        %s321 = scalar_lea.sflag [#allocation3], %s320
        %s322 = sand.u32 %s35, 1
        %s323 = smul.addr %s322, 4224
        %s324 = scalar_lea.vmem [#allocation2], %s323
        // Predicated region
        $region49: #{tpu_custom_call.1} parent=47 // pred_check
          %p325 = pneg %p48
        $region50: #{tpu_custom_call.1} parent=47 // pred_check_branch
          %327 = sbr.rel (%p325) target = $region52
        $region51: #{tpu_custom_call.1} parent=47 // pred_region
          %328 = dma.done %s321, 67584
        $region52: #{tpu_custom_call.1} parent=47 // pred_fallthru
          _
        // Predicated region
        $region53: #{tpu_custom_call.1} parent=47 // pred_check
          %p329 = pneg %p69
        $region54: #{tpu_custom_call.1} parent=47 // pred_check_branch
          %331 = sbr.rel (%p329) target = $region56
        $region55: #{tpu_custom_call.1} parent=47 // pred_region
          %332 = dma.done [#allocation6], 67584
        $region56: #{tpu_custom_call.1} parent=47 // pred_fallthru
          _
        // Predicated region
        $region57: #{tpu_custom_call.1} parent=47 // pred_check
          %p333 = pneg %p90
        $region58: #{tpu_custom_call.1} parent=47 // pred_check_branch
          %335 = sbr.rel (%p333) target = $region60
        $region59: #{tpu_custom_call.1} parent=47 // pred_region
          %336 = dma.done [#allocation6], 32
        $region60: #{tpu_custom_call.1} parent=47 // pred_fallthru
          _
        // Predicated region
        $region61: #{tpu_custom_call.1} parent=47 // pred_check
          %p337 = pneg %p111
        $region62: #{tpu_custom_call.1} parent=47 // pred_check_branch
          %339 = sbr.rel (%p337) target = $region64
        $region63: #{tpu_custom_call.1} parent=47 // pred_region
          %340 = dma.done [#allocation9], 2048
        $region64: #{tpu_custom_call.1} parent=47 // pred_fallthru
          _
        // Predicated region
        $region65: #{tpu_custom_call.1} parent=47 // pred_check
          %p341 = pneg %p132
        $region66: #{tpu_custom_call.1} parent=47 // pred_check_branch
          %343 = sbr.rel (%p341) target = $region68
        $region67: #{tpu_custom_call.1} parent=47 // pred_region
          %344 = dma.done [#allocation9], 16
        $region68: #{tpu_custom_call.1} parent=47 // pred_fallthru
          _
        // Predicated region
        $region69: #{tpu_custom_call.1} parent=47 // pred_check
          %p345 = pneg %p153
        $region70: #{tpu_custom_call.1} parent=47 // pred_check_branch
          %347 = sbr.rel (%p345) target = $region72
        $region71: #{tpu_custom_call.1} parent=47 // pred_region
          %348 = dma.done [#allocation12], 1024
        $region72: #{tpu_custom_call.1} parent=47 // pred_fallthru
          _
        // Predicated region
        $region73: #{tpu_custom_call.1} parent=47 // pred_check
          %p349 = pneg %p174
        $region74: #{tpu_custom_call.1} parent=47 // pred_check_branch
          %351 = sbr.rel (%p349) target = $region76
        $region75: #{tpu_custom_call.1} parent=47 // pred_region
          %352 = dma.done [#allocation12], 16
        $region76: #{tpu_custom_call.1} parent=47 // pred_fallthru
          _
        %s353 = sand.u32 %s35, 1
        %s354 = scalar_lea.sflag [#allocation3], %s353
        %s355 = sand.u32 %s35, 1
        %s356 = smul.addr %s355, 4224
        %s357 = scalar_lea.vmem [#allocation2], %s356
        %p358 = pneg %p48
        %p359 = pneg %p45
        %p360 = pneg %p69
        %p361 = pneg %p66
        %p362 = pneg %p90
        %p363 = pneg %p87
        %p364 = pneg %p111
        %p365 = pneg %p108
        %p366 = pneg %p132
        %p367 = pneg %p129
        %p368 = pneg %p153
        %p369 = pneg %p150
        %p370 = pneg %p174
        %p371 = pneg %p171
        %p372 = pneg %p200
        %p373 = pneg %p197
        %s374 = sand.u32 %s187, 1
        %s375 = scalar_lea.sflag [#allocation4], %s374
        %s376 = sand.u32 %s187, 1
        %s377 = smul.addr %s376, 128
        %s378 = scalar_lea.vmem [#allocation14], %s377
        %s379 = smul.u32 16, %s27
        %s380 = smul.u32 16, %s27
        %v382 = vld [vmem:[%s324] sm:$0xff]
        %v383 = vld [vmem:[%s324 + $0x8] sm:$0xff]
        %v384 = vld [vmem:[%s324 + $0x10] sm:$0xff]
        %v385 = vld [vmem:[%s324 + $0x18] sm:$0xff]
        %v386 = vld [vmem:[%s324 + $0x20] sm:$0xff]
        %v387 = vld [vmem:[%s324 + $0x28] sm:$0xff]
        %v388 = vld [vmem:[%s324 + $0x30] sm:$0xff]
        %v389 = vld [vmem:[%s324 + $0x38] sm:$0xff]
        %v390 = vld [vmem:[%s324 + $0x40] sm:$0xff]
        %v391 = vld [vmem:[%s324 + $0x48] sm:$0xff]
        %v392 = vld [vmem:[%s324 + $0x50] sm:$0xff]
        %v393 = vld [vmem:[%s324 + $0x58] sm:$0xff]
        %v394 = vld [vmem:[%s324 + $0x60] sm:$0xff]
        %v395 = vld [vmem:[%s324 + $0x68] sm:$0xff]
        %v396 = vld [vmem:[%s324 + $0x70] sm:$0xff]
        %v397 = vld [vmem:[%s324 + $0x78] sm:$0xff]
        %v398 = vld [vmem:[%s324 + $0x80] sm:$0xff]
        %v399 = vld [vmem:[%s324 + $0x88] sm:$0xff]
        %v400 = vld [vmem:[%s324 + $0x90] sm:$0xff]
        %v401 = vld [vmem:[%s324 + $0x98] sm:$0xff]
        %v402 = vld [vmem:[%s324 + $0xa0] sm:$0xff]
        %v403 = vld [vmem:[%s324 + $0xa8] sm:$0xff]
        %v404 = vld [vmem:[%s324 + $0xb0] sm:$0xff]
        %v405 = vld [vmem:[%s324 + $0xb8] sm:$0xff]
        %v406 = vld [vmem:[%s324 + $0xc0] sm:$0xff]
        %v407 = vld [vmem:[%s324 + $0xc8] sm:$0xff]
        %v408 = vld [vmem:[%s324 + $0xd0] sm:$0xff]
        %v409 = vld [vmem:[%s324 + $0xd8] sm:$0xff]
        %v410 = vld [vmem:[%s324 + $0xe0] sm:$0xff]
        %v411 = vld [vmem:[%s324 + $0xe8] sm:$0xff]
        %v412 = vld [vmem:[%s324 + $0xf0] sm:$0xff]
        %v413 = vld [vmem:[%s324 + $0xf8] sm:$0xff]
        %v414 = vld [vmem:[%s324 + $0x100] sm:$0xff]
        %v415 = vld [vmem:[%s324 + $0x108] sm:$0xff]
        %v416 = vld [vmem:[%s324 + $0x110] sm:$0xff]
        %v417 = vld [vmem:[%s324 + $0x118] sm:$0xff]
        %v418 = vld [vmem:[%s324 + $0x120] sm:$0xff]
        %v419 = vld [vmem:[%s324 + $0x128] sm:$0xff]
        %v420 = vld [vmem:[%s324 + $0x130] sm:$0xff]
        %v421 = vld [vmem:[%s324 + $0x138] sm:$0xff]
        %v422 = vld [vmem:[%s324 + $0x140] sm:$0xff]
        %v423 = vld [vmem:[%s324 + $0x148] sm:$0xff]
        %v424 = vld [vmem:[%s324 + $0x150] sm:$0xff]
        %v425 = vld [vmem:[%s324 + $0x158] sm:$0xff]
        %v426 = vld [vmem:[%s324 + $0x160] sm:$0xff]
        %v427 = vld [vmem:[%s324 + $0x168] sm:$0xff]
        %v428 = vld [vmem:[%s324 + $0x170] sm:$0xff]
        %v429 = vld [vmem:[%s324 + $0x178] sm:$0xff]
        %v430 = vld [vmem:[%s324 + $0x180] sm:$0xff]
        %v431 = vld [vmem:[%s324 + $0x188] sm:$0xff]
        %v432 = vld [vmem:[%s324 + $0x190] sm:$0xff]
        %v433 = vld [vmem:[%s324 + $0x198] sm:$0xff]
        %v434 = vld [vmem:[%s324 + $0x1a0] sm:$0xff]
        %v435 = vld [vmem:[%s324 + $0x1a8] sm:$0xff]
        %v436 = vld [vmem:[%s324 + $0x1b0] sm:$0xff]
        %v437 = vld [vmem:[%s324 + $0x1b8] sm:$0xff]
        %v438 = vld [vmem:[%s324 + $0x1c0] sm:$0xff]
        %v439 = vld [vmem:[%s324 + $0x1c8] sm:$0xff]
        %v440 = vld [vmem:[%s324 + $0x1d0] sm:$0xff]
        %v441 = vld [vmem:[%s324 + $0x1d8] sm:$0xff]
        %v442 = vld [vmem:[%s324 + $0x1e0] sm:$0xff]
        %v443 = vld [vmem:[%s324 + $0x1e8] sm:$0xff]
        %v444 = vld [vmem:[%s324 + $0x1f0] sm:$0xff]
        %v445 = vld [vmem:[%s324 + $0x1f8] sm:$0xff]
        %v446 = vld [vmem:[%s324 + $0x200] sm:$0xff]
        %v447 = vld [vmem:[%s324 + $0x208] sm:$0xff]
        %v448 = vld [vmem:[%s324 + $0x210] sm:$0xff]
        %v449 = vld [vmem:[%s324 + $0x218] sm:$0xff]
        %v450 = vld [vmem:[%s324 + $0x220] sm:$0xff]
        %v451 = vld [vmem:[%s324 + $0x228] sm:$0xff]
        %v452 = vld [vmem:[%s324 + $0x230] sm:$0xff]
        %v453 = vld [vmem:[%s324 + $0x238] sm:$0xff]
        %v454 = vld [vmem:[%s324 + $0x240] sm:$0xff]
        %v455 = vld [vmem:[%s324 + $0x248] sm:$0xff]
        %v456 = vld [vmem:[%s324 + $0x250] sm:$0xff]
        %v457 = vld [vmem:[%s324 + $0x258] sm:$0xff]
        %v458 = vld [vmem:[%s324 + $0x260] sm:$0xff]
        %v459 = vld [vmem:[%s324 + $0x268] sm:$0xff]
        %v460 = vld [vmem:[%s324 + $0x270] sm:$0xff]
        %v461 = vld [vmem:[%s324 + $0x278] sm:$0xff]
        %v462 = vld [vmem:[%s324 + $0x280] sm:$0xff]
        %v463 = vld [vmem:[%s324 + $0x288] sm:$0xff]
        %v464 = vld [vmem:[%s324 + $0x290] sm:$0xff]
        %v465 = vld [vmem:[%s324 + $0x298] sm:$0xff]
        %v466 = vld [vmem:[%s324 + $0x2a0] sm:$0xff]
        %v467 = vld [vmem:[%s324 + $0x2a8] sm:$0xff]
        %v468 = vld [vmem:[%s324 + $0x2b0] sm:$0xff]
        %v469 = vld [vmem:[%s324 + $0x2b8] sm:$0xff]
        %v470 = vld [vmem:[%s324 + $0x2c0] sm:$0xff]
        %v471 = vld [vmem:[%s324 + $0x2c8] sm:$0xff]
        %v472 = vld [vmem:[%s324 + $0x2d0] sm:$0xff]
        %v473 = vld [vmem:[%s324 + $0x2d8] sm:$0xff]
        %v474 = vld [vmem:[%s324 + $0x2e0] sm:$0xff]
        %v475 = vld [vmem:[%s324 + $0x2e8] sm:$0xff]
        %v476 = vld [vmem:[%s324 + $0x2f0] sm:$0xff]
        %v477 = vld [vmem:[%s324 + $0x2f8] sm:$0xff]
        %v478 = vld [vmem:[%s324 + $0x300] sm:$0xff]
        %v479 = vld [vmem:[%s324 + $0x308] sm:$0xff]
        %v480 = vld [vmem:[%s324 + $0x310] sm:$0xff]
        %v481 = vld [vmem:[%s324 + $0x318] sm:$0xff]
        %v482 = vld [vmem:[%s324 + $0x320] sm:$0xff]
        %v483 = vld [vmem:[%s324 + $0x328] sm:$0xff]
        %v484 = vld [vmem:[%s324 + $0x330] sm:$0xff]
        %v485 = vld [vmem:[%s324 + $0x338] sm:$0xff]
        %v486 = vld [vmem:[%s324 + $0x340] sm:$0xff]
        %v487 = vld [vmem:[%s324 + $0x348] sm:$0xff]
        %v488 = vld [vmem:[%s324 + $0x350] sm:$0xff]
        %v489 = vld [vmem:[%s324 + $0x358] sm:$0xff]
        %v490 = vld [vmem:[%s324 + $0x360] sm:$0xff]
        %v491 = vld [vmem:[%s324 + $0x368] sm:$0xff]
        %v492 = vld [vmem:[%s324 + $0x370] sm:$0xff]
        %v493 = vld [vmem:[%s324 + $0x378] sm:$0xff]
        %v494 = vld [vmem:[%s324 + $0x380] sm:$0xff]
        %v495 = vld [vmem:[%s324 + $0x388] sm:$0xff]
        %v496 = vld [vmem:[%s324 + $0x390] sm:$0xff]
        %v497 = vld [vmem:[%s324 + $0x398] sm:$0xff]
        %v498 = vld [vmem:[%s324 + $0x3a0] sm:$0xff]
        %v499 = vld [vmem:[%s324 + $0x3a8] sm:$0xff]
        %v500 = vld [vmem:[%s324 + $0x3b0] sm:$0xff]
        %v501 = vld [vmem:[%s324 + $0x3b8] sm:$0xff]
        %v502 = vld [vmem:[%s324 + $0x3c0] sm:$0xff]
        %v503 = vld [vmem:[%s324 + $0x3c8] sm:$0xff]
        %v504 = vld [vmem:[%s324 + $0x3d0] sm:$0xff]
        %v505 = vld [vmem:[%s324 + $0x3d8] sm:$0xff]
        %v506 = vld [vmem:[%s324 + $0x3e0] sm:$0xff]
        %v507 = vld [vmem:[%s324 + $0x3e8] sm:$0xff]
        %v508 = vld [vmem:[%s324 + $0x3f0] sm:$0xff]
        %v509 = vld [vmem:[%s324 + $0x3f8] sm:$0xff]
        %v510 = vld [vmem:[%s324 + $0x400] sm:$0xff]
        %v511 = vld [vmem:[%s324 + $0x408] sm:$0xff]
        %v512 = vld [vmem:[%s324 + $0x410] sm:$0xff]
        %v513 = vld [vmem:[%s324 + $0x418] sm:$0xff]
        %v514 = vld [vmem:[%s324 + $0x420] sm:$0xff]
        %v515 = vld [vmem:[%s324 + $0x428] sm:$0xff]
        %v516 = vld [vmem:[%s324 + $0x430] sm:$0xff]
        %v517 = vld [vmem:[%s324 + $0x438] sm:$0xff]
        %v518 = vld [vmem:[%s324 + $0x440] sm:$0xff]
        %v519 = vld [vmem:[%s324 + $0x448] sm:$0xff]
        %v520 = vld [vmem:[%s324 + $0x450] sm:$0xff]
        %v521 = vld [vmem:[%s324 + $0x458] sm:$0xff]
        %v522 = vld [vmem:[%s324 + $0x460] sm:$0xff]
        %v523 = vld [vmem:[%s324 + $0x468] sm:$0xff]
        %v524 = vld [vmem:[%s324 + $0x470] sm:$0xff]
        %v525 = vld [vmem:[%s324 + $0x478] sm:$0xff]
        %v526 = vld [vmem:[%s324 + $0x480] sm:$0xff]
        %v527 = vld [vmem:[%s324 + $0x488] sm:$0xff]
        %v528 = vld [vmem:[%s324 + $0x490] sm:$0xff]
        %v529 = vld [vmem:[%s324 + $0x498] sm:$0xff]
        %v530 = vld [vmem:[%s324 + $0x4a0] sm:$0xff]
        %v531 = vld [vmem:[%s324 + $0x4a8] sm:$0xff]
        %v532 = vld [vmem:[%s324 + $0x4b0] sm:$0xff]
        %v533 = vld [vmem:[%s324 + $0x4b8] sm:$0xff]
        %v534 = vld [vmem:[%s324 + $0x4c0] sm:$0xff]
        %v535 = vld [vmem:[%s324 + $0x4c8] sm:$0xff]
        %v536 = vld [vmem:[%s324 + $0x4d0] sm:$0xff]
        %v537 = vld [vmem:[%s324 + $0x4d8] sm:$0xff]
        %v538 = vld [vmem:[%s324 + $0x4e0] sm:$0xff]
        %v539 = vld [vmem:[%s324 + $0x4e8] sm:$0xff]
        %v540 = vld [vmem:[%s324 + $0x4f0] sm:$0xff]
        %v541 = vld [vmem:[%s324 + $0x4f8] sm:$0xff]
        %v542 = vld [vmem:[%s324 + $0x500] sm:$0xff]
        %v543 = vld [vmem:[%s324 + $0x508] sm:$0xff]
        %v544 = vld [vmem:[%s324 + $0x510] sm:$0xff]
        %v545 = vld [vmem:[%s324 + $0x518] sm:$0xff]
        %v546 = vld [vmem:[%s324 + $0x520] sm:$0xff]
        %v547 = vld [vmem:[%s324 + $0x528] sm:$0xff]
        %v548 = vld [vmem:[%s324 + $0x530] sm:$0xff]
        %v549 = vld [vmem:[%s324 + $0x538] sm:$0xff]
        %v550 = vld [vmem:[%s324 + $0x540] sm:$0xff]
        %v551 = vld [vmem:[%s324 + $0x548] sm:$0xff]
        %v552 = vld [vmem:[%s324 + $0x550] sm:$0xff]
        %v553 = vld [vmem:[%s324 + $0x558] sm:$0xff]
        %v554 = vld [vmem:[%s324 + $0x560] sm:$0xff]
        %v555 = vld [vmem:[%s324 + $0x568] sm:$0xff]
        %v556 = vld [vmem:[%s324 + $0x570] sm:$0xff]
        %v557 = vld [vmem:[%s324 + $0x578] sm:$0xff]
        %v558 = vld [vmem:[%s324 + $0x580] sm:$0xff]
        %v559 = vld [vmem:[%s324 + $0x588] sm:$0xff]
        %v560 = vld [vmem:[%s324 + $0x590] sm:$0xff]
        %v561 = vld [vmem:[%s324 + $0x598] sm:$0xff]
        %v562 = vld [vmem:[%s324 + $0x5a0] sm:$0xff]
        %v563 = vld [vmem:[%s324 + $0x5a8] sm:$0xff]
        %v564 = vld [vmem:[%s324 + $0x5b0] sm:$0xff]
        %v565 = vld [vmem:[%s324 + $0x5b8] sm:$0xff]
        %v566 = vld [vmem:[%s324 + $0x5c0] sm:$0xff]
        %v567 = vld [vmem:[%s324 + $0x5c8] sm:$0xff]
        %v568 = vld [vmem:[%s324 + $0x5d0] sm:$0xff]
        %v569 = vld [vmem:[%s324 + $0x5d8] sm:$0xff]
        %v570 = vld [vmem:[%s324 + $0x5e0] sm:$0xff]
        %v571 = vld [vmem:[%s324 + $0x5e8] sm:$0xff]
        %v572 = vld [vmem:[%s324 + $0x5f0] sm:$0xff]
        %v573 = vld [vmem:[%s324 + $0x5f8] sm:$0xff]
        %v574 = vld [vmem:[%s324 + $0x600] sm:$0xff]
        %v575 = vld [vmem:[%s324 + $0x608] sm:$0xff]
        %v576 = vld [vmem:[%s324 + $0x610] sm:$0xff]
        %v577 = vld [vmem:[%s324 + $0x618] sm:$0xff]
        %v578 = vld [vmem:[%s324 + $0x620] sm:$0xff]
        %v579 = vld [vmem:[%s324 + $0x628] sm:$0xff]
        %v580 = vld [vmem:[%s324 + $0x630] sm:$0xff]
        %v581 = vld [vmem:[%s324 + $0x638] sm:$0xff]
        %v582 = vld [vmem:[%s324 + $0x640] sm:$0xff]
        %v583 = vld [vmem:[%s324 + $0x648] sm:$0xff]
        %v584 = vld [vmem:[%s324 + $0x650] sm:$0xff]
        %v585 = vld [vmem:[%s324 + $0x658] sm:$0xff]
        %v586 = vld [vmem:[%s324 + $0x660] sm:$0xff]
        %v587 = vld [vmem:[%s324 + $0x668] sm:$0xff]
        %v588 = vld [vmem:[%s324 + $0x670] sm:$0xff]
        %v589 = vld [vmem:[%s324 + $0x678] sm:$0xff]
        %v590 = vld [vmem:[%s324 + $0x680] sm:$0xff]
        %v591 = vld [vmem:[%s324 + $0x688] sm:$0xff]
        %v592 = vld [vmem:[%s324 + $0x690] sm:$0xff]
        %v593 = vld [vmem:[%s324 + $0x698] sm:$0xff]
        %v594 = vld [vmem:[%s324 + $0x6a0] sm:$0xff]
        %v595 = vld [vmem:[%s324 + $0x6a8] sm:$0xff]
        %v596 = vld [vmem:[%s324 + $0x6b0] sm:$0xff]
        %v597 = vld [vmem:[%s324 + $0x6b8] sm:$0xff]
        %v598 = vld [vmem:[%s324 + $0x6c0] sm:$0xff]
        %v599 = vld [vmem:[%s324 + $0x6c8] sm:$0xff]
        %v600 = vld [vmem:[%s324 + $0x6d0] sm:$0xff]
        %v601 = vld [vmem:[%s324 + $0x6d8] sm:$0xff]
        %v602 = vld [vmem:[%s324 + $0x6e0] sm:$0xff]
        %v603 = vld [vmem:[%s324 + $0x6e8] sm:$0xff]
        %v604 = vld [vmem:[%s324 + $0x6f0] sm:$0xff]
        %v605 = vld [vmem:[%s324 + $0x6f8] sm:$0xff]
        %v606 = vld [vmem:[%s324 + $0x700] sm:$0xff]
        %v607 = vld [vmem:[%s324 + $0x708] sm:$0xff]
        %v608 = vld [vmem:[%s324 + $0x710] sm:$0xff]
        %v609 = vld [vmem:[%s324 + $0x718] sm:$0xff]
        %v610 = vld [vmem:[%s324 + $0x720] sm:$0xff]
        %v611 = vld [vmem:[%s324 + $0x728] sm:$0xff]
        %v612 = vld [vmem:[%s324 + $0x730] sm:$0xff]
        %v613 = vld [vmem:[%s324 + $0x738] sm:$0xff]
        %v614 = vld [vmem:[%s324 + $0x740] sm:$0xff]
        %v615 = vld [vmem:[%s324 + $0x748] sm:$0xff]
        %v616 = vld [vmem:[%s324 + $0x750] sm:$0xff]
        %v617 = vld [vmem:[%s324 + $0x758] sm:$0xff]
        %v618 = vld [vmem:[%s324 + $0x760] sm:$0xff]
        %v619 = vld [vmem:[%s324 + $0x768] sm:$0xff]
        %v620 = vld [vmem:[%s324 + $0x770] sm:$0xff]
        %v621 = vld [vmem:[%s324 + $0x778] sm:$0xff]
        %v622 = vld [vmem:[%s324 + $0x780] sm:$0xff]
        %v623 = vld [vmem:[%s324 + $0x788] sm:$0xff]
        %v624 = vld [vmem:[%s324 + $0x790] sm:$0xff]
        %v625 = vld [vmem:[%s324 + $0x798] sm:$0xff]
        %v626 = vld [vmem:[%s324 + $0x7a0] sm:$0xff]
        %v627 = vld [vmem:[%s324 + $0x7a8] sm:$0xff]
        %v628 = vld [vmem:[%s324 + $0x7b0] sm:$0xff]
        %v629 = vld [vmem:[%s324 + $0x7b8] sm:$0xff]
        %v630 = vld [vmem:[%s324 + $0x7c0] sm:$0xff]
        %v631 = vld [vmem:[%s324 + $0x7c8] sm:$0xff]
        %v632 = vld [vmem:[%s324 + $0x7d0] sm:$0xff]
        %v633 = vld [vmem:[%s324 + $0x7d8] sm:$0xff]
        %v634 = vld [vmem:[%s324 + $0x7e0] sm:$0xff]
        %v635 = vld [vmem:[%s324 + $0x7e8] sm:$0xff]
        %v636 = vld [vmem:[%s324 + $0x7f0] sm:$0xff]
        %v637 = vld [vmem:[%s324 + $0x7f8] sm:$0xff]
        %v638 = vld [vmem:[%s324 + $0x800] sm:$0xff]
        %v639 = vld [vmem:[%s324 + $0x808] sm:$0xff]
        %v640 = vld [vmem:[%s324 + $0x810] sm:$0xff]
        %v641 = vld [vmem:[%s324 + $0x818] sm:$0xff]
        %v642 = vld [vmem:[%s324 + $0x820] sm:$0xff]
        %v643 = vld [vmem:[%s324 + $0x828] sm:$0xff]
        %v644 = vld [vmem:[%s324 + $0x830] sm:$0xff]
        %v645 = vld [vmem:[%s324 + $0x838] sm:$0xff]
        %v646 = vld [vmem:[%s324 + $0x840] sm:$0xff]
        %v647 = vld [vmem:[%s324 + $0x848] sm:$0xff]
        %v648 = vld [vmem:[%s324 + $0x850] sm:$0xff]
        %v649 = vld [vmem:[%s324 + $0x858] sm:$0xff]
        %v650 = vld [vmem:[%s324 + $0x860] sm:$0xff]
        %v651 = vld [vmem:[%s324 + $0x868] sm:$0xff]
        %v652 = vld [vmem:[%s324 + $0x870] sm:$0xff]
        %v653 = vld [vmem:[%s324 + $0x878] sm:$0xff]
        %v654 = vld [vmem:[%s324 + $0x880] sm:$0xff]
        %v655 = vld [vmem:[%s324 + $0x888] sm:$0xff]
        %v656 = vld [vmem:[%s324 + $0x890] sm:$0xff]
        %v657 = vld [vmem:[%s324 + $0x898] sm:$0xff]
        %v658 = vld [vmem:[%s324 + $0x8a0] sm:$0xff]
        %v659 = vld [vmem:[%s324 + $0x8a8] sm:$0xff]
        %v660 = vld [vmem:[%s324 + $0x8b0] sm:$0xff]
        %v661 = vld [vmem:[%s324 + $0x8b8] sm:$0xff]
        %v662 = vld [vmem:[%s324 + $0x8c0] sm:$0xff]
        %v663 = vld [vmem:[%s324 + $0x8c8] sm:$0xff]
        %v664 = vld [vmem:[%s324 + $0x8d0] sm:$0xff]
        %v665 = vld [vmem:[%s324 + $0x8d8] sm:$0xff]
        %v666 = vld [vmem:[%s324 + $0x8e0] sm:$0xff]
        %v667 = vld [vmem:[%s324 + $0x8e8] sm:$0xff]
        %v668 = vld [vmem:[%s324 + $0x8f0] sm:$0xff]
        %v669 = vld [vmem:[%s324 + $0x8f8] sm:$0xff]
        %v670 = vld [vmem:[%s324 + $0x900] sm:$0xff]
        %v671 = vld [vmem:[%s324 + $0x908] sm:$0xff]
        %v672 = vld [vmem:[%s324 + $0x910] sm:$0xff]
        %v673 = vld [vmem:[%s324 + $0x918] sm:$0xff]
        %v674 = vld [vmem:[%s324 + $0x920] sm:$0xff]
        %v675 = vld [vmem:[%s324 + $0x928] sm:$0xff]
        %v676 = vld [vmem:[%s324 + $0x930] sm:$0xff]
        %v677 = vld [vmem:[%s324 + $0x938] sm:$0xff]
        %v678 = vld [vmem:[%s324 + $0x940] sm:$0xff]
        %v679 = vld [vmem:[%s324 + $0x948] sm:$0xff]
        %v680 = vld [vmem:[%s324 + $0x950] sm:$0xff]
        %v681 = vld [vmem:[%s324 + $0x958] sm:$0xff]
        %v682 = vld [vmem:[%s324 + $0x960] sm:$0xff]
        %v683 = vld [vmem:[%s324 + $0x968] sm:$0xff]
        %v684 = vld [vmem:[%s324 + $0x970] sm:$0xff]
        %v685 = vld [vmem:[%s324 + $0x978] sm:$0xff]
        %v686 = vld [vmem:[%s324 + $0x980] sm:$0xff]
        %v687 = vld [vmem:[%s324 + $0x988] sm:$0xff]
        %v688 = vld [vmem:[%s324 + $0x990] sm:$0xff]
        %v689 = vld [vmem:[%s324 + $0x998] sm:$0xff]
        %v690 = vld [vmem:[%s324 + $0x9a0] sm:$0xff]
        %v691 = vld [vmem:[%s324 + $0x9a8] sm:$0xff]
        %v692 = vld [vmem:[%s324 + $0x9b0] sm:$0xff]
        %v693 = vld [vmem:[%s324 + $0x9b8] sm:$0xff]
        %v694 = vld [vmem:[%s324 + $0x9c0] sm:$0xff]
        %v695 = vld [vmem:[%s324 + $0x9c8] sm:$0xff]
        %v696 = vld [vmem:[%s324 + $0x9d0] sm:$0xff]
        %v697 = vld [vmem:[%s324 + $0x9d8] sm:$0xff]
        %v698 = vld [vmem:[%s324 + $0x9e0] sm:$0xff]
        %v699 = vld [vmem:[%s324 + $0x9e8] sm:$0xff]
        %v700 = vld [vmem:[%s324 + $0x9f0] sm:$0xff]
        %v701 = vld [vmem:[%s324 + $0x9f8] sm:$0xff]
        %v702 = vld [vmem:[%s324 + $0xa00] sm:$0xff]
        %v703 = vld [vmem:[%s324 + $0xa08] sm:$0xff]
        %v704 = vld [vmem:[%s324 + $0xa10] sm:$0xff]
        %v705 = vld [vmem:[%s324 + $0xa18] sm:$0xff]
        %v706 = vld [vmem:[%s324 + $0xa20] sm:$0xff]
        %v707 = vld [vmem:[%s324 + $0xa28] sm:$0xff]
        %v708 = vld [vmem:[%s324 + $0xa30] sm:$0xff]
        %v709 = vld [vmem:[%s324 + $0xa38] sm:$0xff]
        %v710 = vld [vmem:[%s324 + $0xa40] sm:$0xff]
        %v711 = vld [vmem:[%s324 + $0xa48] sm:$0xff]
        %v712 = vld [vmem:[%s324 + $0xa50] sm:$0xff]
        %v713 = vld [vmem:[%s324 + $0xa58] sm:$0xff]
        %v714 = vld [vmem:[%s324 + $0xa60] sm:$0xff]
        %v715 = vld [vmem:[%s324 + $0xa68] sm:$0xff]
        %v716 = vld [vmem:[%s324 + $0xa70] sm:$0xff]
        %v717 = vld [vmem:[%s324 + $0xa78] sm:$0xff]
        %v718 = vld [vmem:[%s324 + $0xa80] sm:$0xff]
        %v719 = vld [vmem:[%s324 + $0xa88] sm:$0xff]
        %v720 = vld [vmem:[%s324 + $0xa90] sm:$0xff]
        %v721 = vld [vmem:[%s324 + $0xa98] sm:$0xff]
        %v722 = vld [vmem:[%s324 + $0xaa0] sm:$0xff]
        %v723 = vld [vmem:[%s324 + $0xaa8] sm:$0xff]
        %v724 = vld [vmem:[%s324 + $0xab0] sm:$0xff]
        %v725 = vld [vmem:[%s324 + $0xab8] sm:$0xff]
        %v726 = vld [vmem:[%s324 + $0xac0] sm:$0xff]
        %v727 = vld [vmem:[%s324 + $0xac8] sm:$0xff]
        %v728 = vld [vmem:[%s324 + $0xad0] sm:$0xff]
        %v729 = vld [vmem:[%s324 + $0xad8] sm:$0xff]
        %v730 = vld [vmem:[%s324 + $0xae0] sm:$0xff]
        %v731 = vld [vmem:[%s324 + $0xae8] sm:$0xff]
        %v732 = vld [vmem:[%s324 + $0xaf0] sm:$0xff]
        %v733 = vld [vmem:[%s324 + $0xaf8] sm:$0xff]
        %v734 = vld [vmem:[%s324 + $0xb00] sm:$0xff]
        %v735 = vld [vmem:[%s324 + $0xb08] sm:$0xff]
        %v736 = vld [vmem:[%s324 + $0xb10] sm:$0xff]
        %v737 = vld [vmem:[%s324 + $0xb18] sm:$0xff]
        %v738 = vld [vmem:[%s324 + $0xb20] sm:$0xff]
        %v739 = vld [vmem:[%s324 + $0xb28] sm:$0xff]
        %v740 = vld [vmem:[%s324 + $0xb30] sm:$0xff]
        %v741 = vld [vmem:[%s324 + $0xb38] sm:$0xff]
        %v742 = vld [vmem:[%s324 + $0xb40] sm:$0xff]
        %v743 = vld [vmem:[%s324 + $0xb48] sm:$0xff]
        %v744 = vld [vmem:[%s324 + $0xb50] sm:$0xff]
        %v745 = vld [vmem:[%s324 + $0xb58] sm:$0xff]
        %v746 = vld [vmem:[%s324 + $0xb60] sm:$0xff]
        %v747 = vld [vmem:[%s324 + $0xb68] sm:$0xff]
        %v748 = vld [vmem:[%s324 + $0xb70] sm:$0xff]
        %v749 = vld [vmem:[%s324 + $0xb78] sm:$0xff]
        %v750 = vld [vmem:[%s324 + $0xb80] sm:$0xff]
        %v751 = vld [vmem:[%s324 + $0xb88] sm:$0xff]
        %v752 = vld [vmem:[%s324 + $0xb90] sm:$0xff]
        %v753 = vld [vmem:[%s324 + $0xb98] sm:$0xff]
        %v754 = vld [vmem:[%s324 + $0xba0] sm:$0xff]
        %v755 = vld [vmem:[%s324 + $0xba8] sm:$0xff]
        %v756 = vld [vmem:[%s324 + $0xbb0] sm:$0xff]
        %v757 = vld [vmem:[%s324 + $0xbb8] sm:$0xff]
        %v758 = vld [vmem:[%s324 + $0xbc0] sm:$0xff]
        %v759 = vld [vmem:[%s324 + $0xbc8] sm:$0xff]
        %v760 = vld [vmem:[%s324 + $0xbd0] sm:$0xff]
        %v761 = vld [vmem:[%s324 + $0xbd8] sm:$0xff]
        %v762 = vld [vmem:[%s324 + $0xbe0] sm:$0xff]
        %v763 = vld [vmem:[%s324 + $0xbe8] sm:$0xff]
        %v764 = vld [vmem:[%s324 + $0xbf0] sm:$0xff]
        %v765 = vld [vmem:[%s324 + $0xbf8] sm:$0xff]
        %v766 = vld [vmem:[%s324 + $0xc00] sm:$0xff]
        %v767 = vld [vmem:[%s324 + $0xc08] sm:$0xff]
        %v768 = vld [vmem:[%s324 + $0xc10] sm:$0xff]
        %v769 = vld [vmem:[%s324 + $0xc18] sm:$0xff]
        %v770 = vld [vmem:[%s324 + $0xc20] sm:$0xff]
        %v771 = vld [vmem:[%s324 + $0xc28] sm:$0xff]
        %v772 = vld [vmem:[%s324 + $0xc30] sm:$0xff]
        %v773 = vld [vmem:[%s324 + $0xc38] sm:$0xff]
        %v774 = vld [vmem:[%s324 + $0xc40] sm:$0xff]
        %v775 = vld [vmem:[%s324 + $0xc48] sm:$0xff]
        %v776 = vld [vmem:[%s324 + $0xc50] sm:$0xff]
        %v777 = vld [vmem:[%s324 + $0xc58] sm:$0xff]
        %v778 = vld [vmem:[%s324 + $0xc60] sm:$0xff]
        %v779 = vld [vmem:[%s324 + $0xc68] sm:$0xff]
        %v780 = vld [vmem:[%s324 + $0xc70] sm:$0xff]
        %v781 = vld [vmem:[%s324 + $0xc78] sm:$0xff]
        %v782 = vld [vmem:[%s324 + $0xc80] sm:$0xff]
        %v783 = vld [vmem:[%s324 + $0xc88] sm:$0xff]
        %v784 = vld [vmem:[%s324 + $0xc90] sm:$0xff]
        %v785 = vld [vmem:[%s324 + $0xc98] sm:$0xff]
        %v786 = vld [vmem:[%s324 + $0xca0] sm:$0xff]
        %v787 = vld [vmem:[%s324 + $0xca8] sm:$0xff]
        %v788 = vld [vmem:[%s324 + $0xcb0] sm:$0xff]
        %v789 = vld [vmem:[%s324 + $0xcb8] sm:$0xff]
        %v790 = vld [vmem:[%s324 + $0xcc0] sm:$0xff]
        %v791 = vld [vmem:[%s324 + $0xcc8] sm:$0xff]
        %v792 = vld [vmem:[%s324 + $0xcd0] sm:$0xff]
        %v793 = vld [vmem:[%s324 + $0xcd8] sm:$0xff]
        %v794 = vld [vmem:[%s324 + $0xce0] sm:$0xff]
        %v795 = vld [vmem:[%s324 + $0xce8] sm:$0xff]
        %v796 = vld [vmem:[%s324 + $0xcf0] sm:$0xff]
        %v797 = vld [vmem:[%s324 + $0xcf8] sm:$0xff]
        %v798 = vld [vmem:[%s324 + $0xd00] sm:$0xff]
        %v799 = vld [vmem:[%s324 + $0xd08] sm:$0xff]
        %v800 = vld [vmem:[%s324 + $0xd10] sm:$0xff]
        %v801 = vld [vmem:[%s324 + $0xd18] sm:$0xff]
        %v802 = vld [vmem:[%s324 + $0xd20] sm:$0xff]
        %v803 = vld [vmem:[%s324 + $0xd28] sm:$0xff]
        %v804 = vld [vmem:[%s324 + $0xd30] sm:$0xff]
        %v805 = vld [vmem:[%s324 + $0xd38] sm:$0xff]
        %v806 = vld [vmem:[%s324 + $0xd40] sm:$0xff]
        %v807 = vld [vmem:[%s324 + $0xd48] sm:$0xff]
        %v808 = vld [vmem:[%s324 + $0xd50] sm:$0xff]
        %v809 = vld [vmem:[%s324 + $0xd58] sm:$0xff]
        %v810 = vld [vmem:[%s324 + $0xd60] sm:$0xff]
        %v811 = vld [vmem:[%s324 + $0xd68] sm:$0xff]
        %v812 = vld [vmem:[%s324 + $0xd70] sm:$0xff]
        %v813 = vld [vmem:[%s324 + $0xd78] sm:$0xff]
        %v814 = vld [vmem:[%s324 + $0xd80] sm:$0xff]
        %v815 = vld [vmem:[%s324 + $0xd88] sm:$0xff]
        %v816 = vld [vmem:[%s324 + $0xd90] sm:$0xff]
        %v817 = vld [vmem:[%s324 + $0xd98] sm:$0xff]
        %v818 = vld [vmem:[%s324 + $0xda0] sm:$0xff]
        %v819 = vld [vmem:[%s324 + $0xda8] sm:$0xff]
        %v820 = vld [vmem:[%s324 + $0xdb0] sm:$0xff]
        %v821 = vld [vmem:[%s324 + $0xdb8] sm:$0xff]
        %v822 = vld [vmem:[%s324 + $0xdc0] sm:$0xff]
        %v823 = vld [vmem:[%s324 + $0xdc8] sm:$0xff]
        %v824 = vld [vmem:[%s324 + $0xdd0] sm:$0xff]
        %v825 = vld [vmem:[%s324 + $0xdd8] sm:$0xff]
        %v826 = vld [vmem:[%s324 + $0xde0] sm:$0xff]
        %v827 = vld [vmem:[%s324 + $0xde8] sm:$0xff]
        %v828 = vld [vmem:[%s324 + $0xdf0] sm:$0xff]
        %v829 = vld [vmem:[%s324 + $0xdf8] sm:$0xff]
        %v830 = vld [vmem:[%s324 + $0xe00] sm:$0xff]
        %v831 = vld [vmem:[%s324 + $0xe08] sm:$0xff]
        %v832 = vld [vmem:[%s324 + $0xe10] sm:$0xff]
        %v833 = vld [vmem:[%s324 + $0xe18] sm:$0xff]
        %v834 = vld [vmem:[%s324 + $0xe20] sm:$0xff]
        %v835 = vld [vmem:[%s324 + $0xe28] sm:$0xff]
        %v836 = vld [vmem:[%s324 + $0xe30] sm:$0xff]
        %v837 = vld [vmem:[%s324 + $0xe38] sm:$0xff]
        %v838 = vld [vmem:[%s324 + $0xe40] sm:$0xff]
        %v839 = vld [vmem:[%s324 + $0xe48] sm:$0xff]
        %v840 = vld [vmem:[%s324 + $0xe50] sm:$0xff]
        %v841 = vld [vmem:[%s324 + $0xe58] sm:$0xff]
        %v842 = vld [vmem:[%s324 + $0xe60] sm:$0xff]
        %v843 = vld [vmem:[%s324 + $0xe68] sm:$0xff]
        %v844 = vld [vmem:[%s324 + $0xe70] sm:$0xff]
        %v845 = vld [vmem:[%s324 + $0xe78] sm:$0xff]
        %v846 = vld [vmem:[%s324 + $0xe80] sm:$0xff]
        %v847 = vld [vmem:[%s324 + $0xe88] sm:$0xff]
        %v848 = vld [vmem:[%s324 + $0xe90] sm:$0xff]
        %v849 = vld [vmem:[%s324 + $0xe98] sm:$0xff]
        %v850 = vld [vmem:[%s324 + $0xea0] sm:$0xff]
        %v851 = vld [vmem:[%s324 + $0xea8] sm:$0xff]
        %v852 = vld [vmem:[%s324 + $0xeb0] sm:$0xff]
        %v853 = vld [vmem:[%s324 + $0xeb8] sm:$0xff]
        %v854 = vld [vmem:[%s324 + $0xec0] sm:$0xff]
        %v855 = vld [vmem:[%s324 + $0xec8] sm:$0xff]
        %v856 = vld [vmem:[%s324 + $0xed0] sm:$0xff]
        %v857 = vld [vmem:[%s324 + $0xed8] sm:$0xff]
        %v858 = vld [vmem:[%s324 + $0xee0] sm:$0xff]
        %v859 = vld [vmem:[%s324 + $0xee8] sm:$0xff]
        %v860 = vld [vmem:[%s324 + $0xef0] sm:$0xff]
        %v861 = vld [vmem:[%s324 + $0xef8] sm:$0xff]
        %v862 = vld [vmem:[%s324 + $0xf00] sm:$0xff]
        %v863 = vld [vmem:[%s324 + $0xf08] sm:$0xff]
        %v864 = vld [vmem:[%s324 + $0xf10] sm:$0xff]
        %v865 = vld [vmem:[%s324 + $0xf18] sm:$0xff]
        %v866 = vld [vmem:[%s324 + $0xf20] sm:$0xff]
        %v867 = vld [vmem:[%s324 + $0xf28] sm:$0xff]
        %v868 = vld [vmem:[%s324 + $0xf30] sm:$0xff]
        %v869 = vld [vmem:[%s324 + $0xf38] sm:$0xff]
        %v870 = vld [vmem:[%s324 + $0xf40] sm:$0xff]
        %v871 = vld [vmem:[%s324 + $0xf48] sm:$0xff]
        %v872 = vld [vmem:[%s324 + $0xf50] sm:$0xff]
        %v873 = vld [vmem:[%s324 + $0xf58] sm:$0xff]
        %v874 = vld [vmem:[%s324 + $0xf60] sm:$0xff]
        %v875 = vld [vmem:[%s324 + $0xf68] sm:$0xff]
        %v876 = vld [vmem:[%s324 + $0xf70] sm:$0xff]
        %v877 = vld [vmem:[%s324 + $0xf78] sm:$0xff]
        %v878 = vld [vmem:[%s324 + $0xf80] sm:$0xff]
        %v879 = vld [vmem:[%s324 + $0xf88] sm:$0xff]
        %v880 = vld [vmem:[%s324 + $0xf90] sm:$0xff]
        %v881 = vld [vmem:[%s324 + $0xf98] sm:$0xff]
        %v882 = vld [vmem:[%s324 + $0xfa0] sm:$0xff]
        %v883 = vld [vmem:[%s324 + $0xfa8] sm:$0xff]
        %v884 = vld [vmem:[%s324 + $0xfb0] sm:$0xff]
        %v885 = vld [vmem:[%s324 + $0xfb8] sm:$0xff]
        %v886 = vld [vmem:[%s324 + $0xfc0] sm:$0xff]
        %v887 = vld [vmem:[%s324 + $0xfc8] sm:$0xff]
        %v888 = vld [vmem:[%s324 + $0xfd0] sm:$0xff]
        %v889 = vld [vmem:[%s324 + $0xfd8] sm:$0xff]
        %v890 = vld [vmem:[%s324 + $0xfe0] sm:$0xff]
        %v891 = vld [vmem:[%s324 + $0xfe8] sm:$0xff]
        %v892 = vld [vmem:[%s324 + $0xff0] sm:$0xff]
        %v893 = vld [vmem:[%s324 + $0xff8] sm:$0xff]
        %v894 = vld [vmem:[%s324 + $0x1000] sm:$0xff]
        %v895 = vld [vmem:[%s324 + $0x1008] sm:$0xff]
        %v896 = vld [vmem:[%s324 + $0x1010] sm:$0xff]
        %v897 = vld [vmem:[%s324 + $0x1018] sm:$0xff]
        %v898 = vld [vmem:[%s324 + $0x1020] sm:$0xff]
        %v899 = vld [vmem:[%s324 + $0x1028] sm:$0xff]
        %v900 = vld [vmem:[%s324 + $0x1030] sm:$0xff]
        %v901 = vld [vmem:[%s324 + $0x1038] sm:$0xff]
        %v902 = vld [vmem:[%s324 + $0x1040] sm:$0xff]
        %v903 = vld [vmem:[%s324 + $0x1048] sm:$0xff]
        %v904 = vld [vmem:[%s324 + $0x1050] sm:$0xff]
        %v905 = vld [vmem:[%s324 + $0x1058] sm:$0xff]
        %v906 = vld [vmem:[%s324 + $0x1060] sm:$0xff]
        %v907 = vld [vmem:[%s324 + $0x1068] sm:$0xff]
        %v908 = vld [vmem:[%s324 + $0x1070] sm:$0xff]
        %v909 = vld [vmem:[%s324 + $0x1078] sm:$0xff]
        %v910 = vld [vmem:[#allocation5] sm:$0xff]
        %v911 = vld [vmem:[#allocation5 + $0x8] sm:$0xff]
        %v912 = vld [vmem:[#allocation5 + $0x10] sm:$0xff]
        %v913 = vld [vmem:[#allocation5 + $0x18] sm:$0xff]
        %v914 = vld [vmem:[#allocation5 + $0x20] sm:$0xff]
        %v915 = vld [vmem:[#allocation5 + $0x28] sm:$0xff]
        %v916 = vld [vmem:[#allocation5 + $0x30] sm:$0xff]
        %v917 = vld [vmem:[#allocation5 + $0x38] sm:$0xff]
        %v918 = vld [vmem:[#allocation5 + $0x40] sm:$0xff]
        %v919 = vld [vmem:[#allocation5 + $0x48] sm:$0xff]
        %v920 = vld [vmem:[#allocation5 + $0x50] sm:$0xff]
        %v921 = vld [vmem:[#allocation5 + $0x58] sm:$0xff]
        %v922 = vld [vmem:[#allocation5 + $0x60] sm:$0xff]
        %v923 = vld [vmem:[#allocation5 + $0x68] sm:$0xff]
        %v924 = vld [vmem:[#allocation5 + $0x70] sm:$0xff]
        %v925 = vld [vmem:[#allocation5 + $0x78] sm:$0xff]
        %v926 = vld [vmem:[#allocation5 + $0x80] sm:$0xff]
        %v927 = vld [vmem:[#allocation5 + $0x88] sm:$0xff]
        %v928 = vld [vmem:[#allocation5 + $0x90] sm:$0xff]
        %v929 = vld [vmem:[#allocation5 + $0x98] sm:$0xff]
        %v930 = vld [vmem:[#allocation5 + $0xa0] sm:$0xff]
        %v931 = vld [vmem:[#allocation5 + $0xa8] sm:$0xff]
        %v932 = vld [vmem:[#allocation5 + $0xb0] sm:$0xff]
        %v933 = vld [vmem:[#allocation5 + $0xb8] sm:$0xff]
        %v934 = vld [vmem:[#allocation5 + $0xc0] sm:$0xff]
        %v935 = vld [vmem:[#allocation5 + $0xc8] sm:$0xff]
        %v936 = vld [vmem:[#allocation5 + $0xd0] sm:$0xff]
        %v937 = vld [vmem:[#allocation5 + $0xd8] sm:$0xff]
        %v938 = vld [vmem:[#allocation5 + $0xe0] sm:$0xff]
        %v939 = vld [vmem:[#allocation5 + $0xe8] sm:$0xff]
        %v940 = vld [vmem:[#allocation5 + $0xf0] sm:$0xff]
        %v941 = vld [vmem:[#allocation5 + $0xf8] sm:$0xff]
        %v942 = vld [vmem:[#allocation5 + $0x100] sm:$0xff]
        %v943 = vld [vmem:[#allocation5 + $0x108] sm:$0xff]
        %v944 = vld [vmem:[#allocation5 + $0x110] sm:$0xff]
        %v945 = vld [vmem:[#allocation5 + $0x118] sm:$0xff]
        %v946 = vld [vmem:[#allocation5 + $0x120] sm:$0xff]
        %v947 = vld [vmem:[#allocation5 + $0x128] sm:$0xff]
        %v948 = vld [vmem:[#allocation5 + $0x130] sm:$0xff]
        %v949 = vld [vmem:[#allocation5 + $0x138] sm:$0xff]
        %v950 = vld [vmem:[#allocation5 + $0x140] sm:$0xff]
        %v951 = vld [vmem:[#allocation5 + $0x148] sm:$0xff]
        %v952 = vld [vmem:[#allocation5 + $0x150] sm:$0xff]
        %v953 = vld [vmem:[#allocation5 + $0x158] sm:$0xff]
        %v954 = vld [vmem:[#allocation5 + $0x160] sm:$0xff]
        %v955 = vld [vmem:[#allocation5 + $0x168] sm:$0xff]
        %v956 = vld [vmem:[#allocation5 + $0x170] sm:$0xff]
        %v957 = vld [vmem:[#allocation5 + $0x178] sm:$0xff]
        %v958 = vld [vmem:[#allocation5 + $0x180] sm:$0xff]
        %v959 = vld [vmem:[#allocation5 + $0x188] sm:$0xff]
        %v960 = vld [vmem:[#allocation5 + $0x190] sm:$0xff]
        %v961 = vld [vmem:[#allocation5 + $0x198] sm:$0xff]
        %v962 = vld [vmem:[#allocation5 + $0x1a0] sm:$0xff]
        %v963 = vld [vmem:[#allocation5 + $0x1a8] sm:$0xff]
        %v964 = vld [vmem:[#allocation5 + $0x1b0] sm:$0xff]
        %v965 = vld [vmem:[#allocation5 + $0x1b8] sm:$0xff]
        %v966 = vld [vmem:[#allocation5 + $0x1c0] sm:$0xff]
        %v967 = vld [vmem:[#allocation5 + $0x1c8] sm:$0xff]
        %v968 = vld [vmem:[#allocation5 + $0x1d0] sm:$0xff]
        %v969 = vld [vmem:[#allocation5 + $0x1d8] sm:$0xff]
        %v970 = vld [vmem:[#allocation5 + $0x1e0] sm:$0xff]
        %v971 = vld [vmem:[#allocation5 + $0x1e8] sm:$0xff]
        %v972 = vld [vmem:[#allocation5 + $0x1f0] sm:$0xff]
        %v973 = vld [vmem:[#allocation5 + $0x1f8] sm:$0xff]
        %v974 = vld [vmem:[#allocation5 + $0x200] sm:$0xff]
        %v975 = vld [vmem:[#allocation5 + $0x208] sm:$0xff]
        %v976 = vld [vmem:[#allocation5 + $0x210] sm:$0xff]
        %v977 = vld [vmem:[#allocation5 + $0x218] sm:$0xff]
        %v978 = vld [vmem:[#allocation5 + $0x220] sm:$0xff]
        %v979 = vld [vmem:[#allocation5 + $0x228] sm:$0xff]
        %v980 = vld [vmem:[#allocation5 + $0x230] sm:$0xff]
        %v981 = vld [vmem:[#allocation5 + $0x238] sm:$0xff]
        %v982 = vld [vmem:[#allocation5 + $0x240] sm:$0xff]
        %v983 = vld [vmem:[#allocation5 + $0x248] sm:$0xff]
        %v984 = vld [vmem:[#allocation5 + $0x250] sm:$0xff]
        %v985 = vld [vmem:[#allocation5 + $0x258] sm:$0xff]
        %v986 = vld [vmem:[#allocation5 + $0x260] sm:$0xff]
        %v987 = vld [vmem:[#allocation5 + $0x268] sm:$0xff]
        %v988 = vld [vmem:[#allocation5 + $0x270] sm:$0xff]
        %v989 = vld [vmem:[#allocation5 + $0x278] sm:$0xff]
        %v990 = vld [vmem:[#allocation5 + $0x280] sm:$0xff]
        %v991 = vld [vmem:[#allocation5 + $0x288] sm:$0xff]
        %v992 = vld [vmem:[#allocation5 + $0x290] sm:$0xff]
        %v993 = vld [vmem:[#allocation5 + $0x298] sm:$0xff]
        %v994 = vld [vmem:[#allocation5 + $0x2a0] sm:$0xff]
        %v995 = vld [vmem:[#allocation5 + $0x2a8] sm:$0xff]
        %v996 = vld [vmem:[#allocation5 + $0x2b0] sm:$0xff]
        %v997 = vld [vmem:[#allocation5 + $0x2b8] sm:$0xff]
        %v998 = vld [vmem:[#allocation5 + $0x2c0] sm:$0xff]
        %v999 = vld [vmem:[#allocation5 + $0x2c8] sm:$0xff]
        %v1000 = vld [vmem:[#allocation5 + $0x2d0] sm:$0xff]
        %v1001 = vld [vmem:[#allocation5 + $0x2d8] sm:$0xff]
        %v1002 = vld [vmem:[#allocation5 + $0x2e0] sm:$0xff]
        %v1003 = vld [vmem:[#allocation5 + $0x2e8] sm:$0xff]
        %v1004 = vld [vmem:[#allocation5 + $0x2f0] sm:$0xff]
        %v1005 = vld [vmem:[#allocation5 + $0x2f8] sm:$0xff]
        %v1006 = vld [vmem:[#allocation5 + $0x300] sm:$0xff]
        %v1007 = vld [vmem:[#allocation5 + $0x308] sm:$0xff]
        %v1008 = vld [vmem:[#allocation5 + $0x310] sm:$0xff]
        %v1009 = vld [vmem:[#allocation5 + $0x318] sm:$0xff]
        %v1010 = vld [vmem:[#allocation5 + $0x320] sm:$0xff]
        %v1011 = vld [vmem:[#allocation5 + $0x328] sm:$0xff]
        %v1012 = vld [vmem:[#allocation5 + $0x330] sm:$0xff]
        %v1013 = vld [vmem:[#allocation5 + $0x338] sm:$0xff]
        %v1014 = vld [vmem:[#allocation5 + $0x340] sm:$0xff]
        %v1015 = vld [vmem:[#allocation5 + $0x348] sm:$0xff]
        %v1016 = vld [vmem:[#allocation5 + $0x350] sm:$0xff]
        %v1017 = vld [vmem:[#allocation5 + $0x358] sm:$0xff]
        %v1018 = vld [vmem:[#allocation5 + $0x360] sm:$0xff]
        %v1019 = vld [vmem:[#allocation5 + $0x368] sm:$0xff]
        %v1020 = vld [vmem:[#allocation5 + $0x370] sm:$0xff]
        %v1021 = vld [vmem:[#allocation5 + $0x378] sm:$0xff]
        %v1022 = vld [vmem:[#allocation5 + $0x380] sm:$0xff]
        %v1023 = vld [vmem:[#allocation5 + $0x388] sm:$0xff]
        %v1024 = vld [vmem:[#allocation5 + $0x390] sm:$0xff]
        %v1025 = vld [vmem:[#allocation5 + $0x398] sm:$0xff]
        %v1026 = vld [vmem:[#allocation5 + $0x3a0] sm:$0xff]
        %v1027 = vld [vmem:[#allocation5 + $0x3a8] sm:$0xff]
        %v1028 = vld [vmem:[#allocation5 + $0x3b0] sm:$0xff]
        %v1029 = vld [vmem:[#allocation5 + $0x3b8] sm:$0xff]
        %v1030 = vld [vmem:[#allocation5 + $0x3c0] sm:$0xff]
        %v1031 = vld [vmem:[#allocation5 + $0x3c8] sm:$0xff]
        %v1032 = vld [vmem:[#allocation5 + $0x3d0] sm:$0xff]
        %v1033 = vld [vmem:[#allocation5 + $0x3d8] sm:$0xff]
        %v1034 = vld [vmem:[#allocation5 + $0x3e0] sm:$0xff]
        %v1035 = vld [vmem:[#allocation5 + $0x3e8] sm:$0xff]
        %v1036 = vld [vmem:[#allocation5 + $0x3f0] sm:$0xff]
        %v1037 = vld [vmem:[#allocation5 + $0x3f8] sm:$0xff]
        %v1038 = vld [vmem:[#allocation5 + $0x400] sm:$0xff]
        %v1039 = vld [vmem:[#allocation5 + $0x408] sm:$0xff]
        %v1040 = vld [vmem:[#allocation5 + $0x410] sm:$0xff]
        %v1041 = vld [vmem:[#allocation5 + $0x418] sm:$0xff]
        %v1042 = vld [vmem:[#allocation5 + $0x420] sm:$0xff]
        %v1043 = vld [vmem:[#allocation5 + $0x428] sm:$0xff]
        %v1044 = vld [vmem:[#allocation5 + $0x430] sm:$0xff]
        %v1045 = vld [vmem:[#allocation5 + $0x438] sm:$0xff]
        %v1046 = vld [vmem:[#allocation5 + $0x440] sm:$0xff]
        %v1047 = vld [vmem:[#allocation5 + $0x448] sm:$0xff]
        %v1048 = vld [vmem:[#allocation5 + $0x450] sm:$0xff]
        %v1049 = vld [vmem:[#allocation5 + $0x458] sm:$0xff]
        %v1050 = vld [vmem:[#allocation5 + $0x460] sm:$0xff]
        %v1051 = vld [vmem:[#allocation5 + $0x468] sm:$0xff]
        %v1052 = vld [vmem:[#allocation5 + $0x470] sm:$0xff]
        %v1053 = vld [vmem:[#allocation5 + $0x478] sm:$0xff]
        %v1054 = vld [vmem:[#allocation5 + $0x480] sm:$0xff]
        %v1055 = vld [vmem:[#allocation5 + $0x488] sm:$0xff]
        %v1056 = vld [vmem:[#allocation5 + $0x490] sm:$0xff]
        %v1057 = vld [vmem:[#allocation5 + $0x498] sm:$0xff]
        %v1058 = vld [vmem:[#allocation5 + $0x4a0] sm:$0xff]
        %v1059 = vld [vmem:[#allocation5 + $0x4a8] sm:$0xff]
        %v1060 = vld [vmem:[#allocation5 + $0x4b0] sm:$0xff]
        %v1061 = vld [vmem:[#allocation5 + $0x4b8] sm:$0xff]
        %v1062 = vld [vmem:[#allocation5 + $0x4c0] sm:$0xff]
        %v1063 = vld [vmem:[#allocation5 + $0x4c8] sm:$0xff]
        %v1064 = vld [vmem:[#allocation5 + $0x4d0] sm:$0xff]
        %v1065 = vld [vmem:[#allocation5 + $0x4d8] sm:$0xff]
        %v1066 = vld [vmem:[#allocation5 + $0x4e0] sm:$0xff]
        %v1067 = vld [vmem:[#allocation5 + $0x4e8] sm:$0xff]
        %v1068 = vld [vmem:[#allocation5 + $0x4f0] sm:$0xff]
        %v1069 = vld [vmem:[#allocation5 + $0x4f8] sm:$0xff]
        %v1070 = vld [vmem:[#allocation5 + $0x500] sm:$0xff]
        %v1071 = vld [vmem:[#allocation5 + $0x508] sm:$0xff]
        %v1072 = vld [vmem:[#allocation5 + $0x510] sm:$0xff]
        %v1073 = vld [vmem:[#allocation5 + $0x518] sm:$0xff]
        %v1074 = vld [vmem:[#allocation5 + $0x520] sm:$0xff]
        %v1075 = vld [vmem:[#allocation5 + $0x528] sm:$0xff]
        %v1076 = vld [vmem:[#allocation5 + $0x530] sm:$0xff]
        %v1077 = vld [vmem:[#allocation5 + $0x538] sm:$0xff]
        %v1078 = vld [vmem:[#allocation5 + $0x540] sm:$0xff]
        %v1079 = vld [vmem:[#allocation5 + $0x548] sm:$0xff]
        %v1080 = vld [vmem:[#allocation5 + $0x550] sm:$0xff]
        %v1081 = vld [vmem:[#allocation5 + $0x558] sm:$0xff]
        %v1082 = vld [vmem:[#allocation5 + $0x560] sm:$0xff]
        %v1083 = vld [vmem:[#allocation5 + $0x568] sm:$0xff]
        %v1084 = vld [vmem:[#allocation5 + $0x570] sm:$0xff]
        %v1085 = vld [vmem:[#allocation5 + $0x578] sm:$0xff]
        %v1086 = vld [vmem:[#allocation5 + $0x580] sm:$0xff]
        %v1087 = vld [vmem:[#allocation5 + $0x588] sm:$0xff]
        %v1088 = vld [vmem:[#allocation5 + $0x590] sm:$0xff]
        %v1089 = vld [vmem:[#allocation5 + $0x598] sm:$0xff]
        %v1090 = vld [vmem:[#allocation5 + $0x5a0] sm:$0xff]
        %v1091 = vld [vmem:[#allocation5 + $0x5a8] sm:$0xff]
        %v1092 = vld [vmem:[#allocation5 + $0x5b0] sm:$0xff]
        %v1093 = vld [vmem:[#allocation5 + $0x5b8] sm:$0xff]
        %v1094 = vld [vmem:[#allocation5 + $0x5c0] sm:$0xff]
        %v1095 = vld [vmem:[#allocation5 + $0x5c8] sm:$0xff]
        %v1096 = vld [vmem:[#allocation5 + $0x5d0] sm:$0xff]
        %v1097 = vld [vmem:[#allocation5 + $0x5d8] sm:$0xff]
        %v1098 = vld [vmem:[#allocation5 + $0x5e0] sm:$0xff]
        %v1099 = vld [vmem:[#allocation5 + $0x5e8] sm:$0xff]
        %v1100 = vld [vmem:[#allocation5 + $0x5f0] sm:$0xff]
        %v1101 = vld [vmem:[#allocation5 + $0x5f8] sm:$0xff]
        %v1102 = vld [vmem:[#allocation5 + $0x600] sm:$0xff]
        %v1103 = vld [vmem:[#allocation5 + $0x608] sm:$0xff]
        %v1104 = vld [vmem:[#allocation5 + $0x610] sm:$0xff]
        %v1105 = vld [vmem:[#allocation5 + $0x618] sm:$0xff]
        %v1106 = vld [vmem:[#allocation5 + $0x620] sm:$0xff]
        %v1107 = vld [vmem:[#allocation5 + $0x628] sm:$0xff]
        %v1108 = vld [vmem:[#allocation5 + $0x630] sm:$0xff]
        %v1109 = vld [vmem:[#allocation5 + $0x638] sm:$0xff]
        %v1110 = vld [vmem:[#allocation5 + $0x640] sm:$0xff]
        %v1111 = vld [vmem:[#allocation5 + $0x648] sm:$0xff]
        %v1112 = vld [vmem:[#allocation5 + $0x650] sm:$0xff]
        %v1113 = vld [vmem:[#allocation5 + $0x658] sm:$0xff]
        %v1114 = vld [vmem:[#allocation5 + $0x660] sm:$0xff]
        %v1115 = vld [vmem:[#allocation5 + $0x668] sm:$0xff]
        %v1116 = vld [vmem:[#allocation5 + $0x670] sm:$0xff]
        %v1117 = vld [vmem:[#allocation5 + $0x678] sm:$0xff]
        %v1118 = vld [vmem:[#allocation5 + $0x680] sm:$0xff]
        %v1119 = vld [vmem:[#allocation5 + $0x688] sm:$0xff]
        %v1120 = vld [vmem:[#allocation5 + $0x690] sm:$0xff]
        %v1121 = vld [vmem:[#allocation5 + $0x698] sm:$0xff]
        %v1122 = vld [vmem:[#allocation5 + $0x6a0] sm:$0xff]
        %v1123 = vld [vmem:[#allocation5 + $0x6a8] sm:$0xff]
        %v1124 = vld [vmem:[#allocation5 + $0x6b0] sm:$0xff]
        %v1125 = vld [vmem:[#allocation5 + $0x6b8] sm:$0xff]
        %v1126 = vld [vmem:[#allocation5 + $0x6c0] sm:$0xff]
        %v1127 = vld [vmem:[#allocation5 + $0x6c8] sm:$0xff]
        %v1128 = vld [vmem:[#allocation5 + $0x6d0] sm:$0xff]
        %v1129 = vld [vmem:[#allocation5 + $0x6d8] sm:$0xff]
        %v1130 = vld [vmem:[#allocation5 + $0x6e0] sm:$0xff]
        %v1131 = vld [vmem:[#allocation5 + $0x6e8] sm:$0xff]
        %v1132 = vld [vmem:[#allocation5 + $0x6f0] sm:$0xff]
        %v1133 = vld [vmem:[#allocation5 + $0x6f8] sm:$0xff]
        %v1134 = vld [vmem:[#allocation5 + $0x700] sm:$0xff]
        %v1135 = vld [vmem:[#allocation5 + $0x708] sm:$0xff]
        %v1136 = vld [vmem:[#allocation5 + $0x710] sm:$0xff]
        %v1137 = vld [vmem:[#allocation5 + $0x718] sm:$0xff]
        %v1138 = vld [vmem:[#allocation5 + $0x720] sm:$0xff]
        %v1139 = vld [vmem:[#allocation5 + $0x728] sm:$0xff]
        %v1140 = vld [vmem:[#allocation5 + $0x730] sm:$0xff]
        %v1141 = vld [vmem:[#allocation5 + $0x738] sm:$0xff]
        %v1142 = vld [vmem:[#allocation5 + $0x740] sm:$0xff]
        %v1143 = vld [vmem:[#allocation5 + $0x748] sm:$0xff]
        %v1144 = vld [vmem:[#allocation5 + $0x750] sm:$0xff]
        %v1145 = vld [vmem:[#allocation5 + $0x758] sm:$0xff]
        %v1146 = vld [vmem:[#allocation5 + $0x760] sm:$0xff]
        %v1147 = vld [vmem:[#allocation5 + $0x768] sm:$0xff]
        %v1148 = vld [vmem:[#allocation5 + $0x770] sm:$0xff]
        %v1149 = vld [vmem:[#allocation5 + $0x778] sm:$0xff]
        %v1150 = vld [vmem:[#allocation5 + $0x780] sm:$0xff]
        %v1151 = vld [vmem:[#allocation5 + $0x788] sm:$0xff]
        %v1152 = vld [vmem:[#allocation5 + $0x790] sm:$0xff]
        %v1153 = vld [vmem:[#allocation5 + $0x798] sm:$0xff]
        %v1154 = vld [vmem:[#allocation5 + $0x7a0] sm:$0xff]
        %v1155 = vld [vmem:[#allocation5 + $0x7a8] sm:$0xff]
        %v1156 = vld [vmem:[#allocation5 + $0x7b0] sm:$0xff]
        %v1157 = vld [vmem:[#allocation5 + $0x7b8] sm:$0xff]
        %v1158 = vld [vmem:[#allocation5 + $0x7c0] sm:$0xff]
        %v1159 = vld [vmem:[#allocation5 + $0x7c8] sm:$0xff]
        %v1160 = vld [vmem:[#allocation5 + $0x7d0] sm:$0xff]
        %v1161 = vld [vmem:[#allocation5 + $0x7d8] sm:$0xff]
        %v1162 = vld [vmem:[#allocation5 + $0x7e0] sm:$0xff]
        %v1163 = vld [vmem:[#allocation5 + $0x7e8] sm:$0xff]
        %v1164 = vld [vmem:[#allocation5 + $0x7f0] sm:$0xff]
        %v1165 = vld [vmem:[#allocation5 + $0x7f8] sm:$0xff]
        %v1166 = vld [vmem:[#allocation5 + $0x800] sm:$0xff]
        %v1167 = vld [vmem:[#allocation5 + $0x808] sm:$0xff]
        %v1168 = vld [vmem:[#allocation5 + $0x810] sm:$0xff]
        %v1169 = vld [vmem:[#allocation5 + $0x818] sm:$0xff]
        %v1170 = vld [vmem:[#allocation5 + $0x820] sm:$0xff]
        %v1171 = vld [vmem:[#allocation5 + $0x828] sm:$0xff]
        %v1172 = vld [vmem:[#allocation5 + $0x830] sm:$0xff]
        %v1173 = vld [vmem:[#allocation5 + $0x838] sm:$0xff]
        %v1174 = vld [vmem:[#allocation5 + $0x840] sm:$0xff]
        %v1175 = vld [vmem:[#allocation5 + $0x848] sm:$0xff]
        %v1176 = vld [vmem:[#allocation5 + $0x850] sm:$0xff]
        %v1177 = vld [vmem:[#allocation5 + $0x858] sm:$0xff]
        %v1178 = vld [vmem:[#allocation5 + $0x860] sm:$0xff]
        %v1179 = vld [vmem:[#allocation5 + $0x868] sm:$0xff]
        %v1180 = vld [vmem:[#allocation5 + $0x870] sm:$0xff]
        %v1181 = vld [vmem:[#allocation5 + $0x878] sm:$0xff]
        %v1182 = vld [vmem:[#allocation5 + $0x880] sm:$0xff]
        %v1183 = vld [vmem:[#allocation5 + $0x888] sm:$0xff]
        %v1184 = vld [vmem:[#allocation5 + $0x890] sm:$0xff]
        %v1185 = vld [vmem:[#allocation5 + $0x898] sm:$0xff]
        %v1186 = vld [vmem:[#allocation5 + $0x8a0] sm:$0xff]
        %v1187 = vld [vmem:[#allocation5 + $0x8a8] sm:$0xff]
        %v1188 = vld [vmem:[#allocation5 + $0x8b0] sm:$0xff]
        %v1189 = vld [vmem:[#allocation5 + $0x8b8] sm:$0xff]
        %v1190 = vld [vmem:[#allocation5 + $0x8c0] sm:$0xff]
        %v1191 = vld [vmem:[#allocation5 + $0x8c8] sm:$0xff]
        %v1192 = vld [vmem:[#allocation5 + $0x8d0] sm:$0xff]
        %v1193 = vld [vmem:[#allocation5 + $0x8d8] sm:$0xff]
        %v1194 = vld [vmem:[#allocation5 + $0x8e0] sm:$0xff]
        %v1195 = vld [vmem:[#allocation5 + $0x8e8] sm:$0xff]
        %v1196 = vld [vmem:[#allocation5 + $0x8f0] sm:$0xff]
        %v1197 = vld [vmem:[#allocation5 + $0x8f8] sm:$0xff]
        %v1198 = vld [vmem:[#allocation5 + $0x900] sm:$0xff]
        %v1199 = vld [vmem:[#allocation5 + $0x908] sm:$0xff]
        %v1200 = vld [vmem:[#allocation5 + $0x910] sm:$0xff]
        %v1201 = vld [vmem:[#allocation5 + $0x918] sm:$0xff]
        %v1202 = vld [vmem:[#allocation5 + $0x920] sm:$0xff]
        %v1203 = vld [vmem:[#allocation5 + $0x928] sm:$0xff]
        %v1204 = vld [vmem:[#allocation5 + $0x930] sm:$0xff]
        %v1205 = vld [vmem:[#allocation5 + $0x938] sm:$0xff]
        %v1206 = vld [vmem:[#allocation5 + $0x940] sm:$0xff]
        %v1207 = vld [vmem:[#allocation5 + $0x948] sm:$0xff]
        %v1208 = vld [vmem:[#allocation5 + $0x950] sm:$0xff]
        %v1209 = vld [vmem:[#allocation5 + $0x958] sm:$0xff]
        %v1210 = vld [vmem:[#allocation5 + $0x960] sm:$0xff]
        %v1211 = vld [vmem:[#allocation5 + $0x968] sm:$0xff]
        %v1212 = vld [vmem:[#allocation5 + $0x970] sm:$0xff]
        %v1213 = vld [vmem:[#allocation5 + $0x978] sm:$0xff]
        %v1214 = vld [vmem:[#allocation5 + $0x980] sm:$0xff]
        %v1215 = vld [vmem:[#allocation5 + $0x988] sm:$0xff]
        %v1216 = vld [vmem:[#allocation5 + $0x990] sm:$0xff]
        %v1217 = vld [vmem:[#allocation5 + $0x998] sm:$0xff]
        %v1218 = vld [vmem:[#allocation5 + $0x9a0] sm:$0xff]
        %v1219 = vld [vmem:[#allocation5 + $0x9a8] sm:$0xff]
        %v1220 = vld [vmem:[#allocation5 + $0x9b0] sm:$0xff]
        %v1221 = vld [vmem:[#allocation5 + $0x9b8] sm:$0xff]
        %v1222 = vld [vmem:[#allocation5 + $0x9c0] sm:$0xff]
        %v1223 = vld [vmem:[#allocation5 + $0x9c8] sm:$0xff]
        %v1224 = vld [vmem:[#allocation5 + $0x9d0] sm:$0xff]
        %v1225 = vld [vmem:[#allocation5 + $0x9d8] sm:$0xff]
        %v1226 = vld [vmem:[#allocation5 + $0x9e0] sm:$0xff]
        %v1227 = vld [vmem:[#allocation5 + $0x9e8] sm:$0xff]
        %v1228 = vld [vmem:[#allocation5 + $0x9f0] sm:$0xff]
        %v1229 = vld [vmem:[#allocation5 + $0x9f8] sm:$0xff]
        %v1230 = vld [vmem:[#allocation5 + $0xa00] sm:$0xff]
        %v1231 = vld [vmem:[#allocation5 + $0xa08] sm:$0xff]
        %v1232 = vld [vmem:[#allocation5 + $0xa10] sm:$0xff]
        %v1233 = vld [vmem:[#allocation5 + $0xa18] sm:$0xff]
        %v1234 = vld [vmem:[#allocation5 + $0xa20] sm:$0xff]
        %v1235 = vld [vmem:[#allocation5 + $0xa28] sm:$0xff]
        %v1236 = vld [vmem:[#allocation5 + $0xa30] sm:$0xff]
        %v1237 = vld [vmem:[#allocation5 + $0xa38] sm:$0xff]
        %v1238 = vld [vmem:[#allocation5 + $0xa40] sm:$0xff]
        %v1239 = vld [vmem:[#allocation5 + $0xa48] sm:$0xff]
        %v1240 = vld [vmem:[#allocation5 + $0xa50] sm:$0xff]
        %v1241 = vld [vmem:[#allocation5 + $0xa58] sm:$0xff]
        %v1242 = vld [vmem:[#allocation5 + $0xa60] sm:$0xff]
        %v1243 = vld [vmem:[#allocation5 + $0xa68] sm:$0xff]
        %v1244 = vld [vmem:[#allocation5 + $0xa70] sm:$0xff]
        %v1245 = vld [vmem:[#allocation5 + $0xa78] sm:$0xff]
        %v1246 = vld [vmem:[#allocation5 + $0xa80] sm:$0xff]
        %v1247 = vld [vmem:[#allocation5 + $0xa88] sm:$0xff]
        %v1248 = vld [vmem:[#allocation5 + $0xa90] sm:$0xff]
        %v1249 = vld [vmem:[#allocation5 + $0xa98] sm:$0xff]
        %v1250 = vld [vmem:[#allocation5 + $0xaa0] sm:$0xff]
        %v1251 = vld [vmem:[#allocation5 + $0xaa8] sm:$0xff]
        %v1252 = vld [vmem:[#allocation5 + $0xab0] sm:$0xff]
        %v1253 = vld [vmem:[#allocation5 + $0xab8] sm:$0xff]
        %v1254 = vld [vmem:[#allocation5 + $0xac0] sm:$0xff]
        %v1255 = vld [vmem:[#allocation5 + $0xac8] sm:$0xff]
        %v1256 = vld [vmem:[#allocation5 + $0xad0] sm:$0xff]
        %v1257 = vld [vmem:[#allocation5 + $0xad8] sm:$0xff]
        %v1258 = vld [vmem:[#allocation5 + $0xae0] sm:$0xff]
        %v1259 = vld [vmem:[#allocation5 + $0xae8] sm:$0xff]
        %v1260 = vld [vmem:[#allocation5 + $0xaf0] sm:$0xff]
        %v1261 = vld [vmem:[#allocation5 + $0xaf8] sm:$0xff]
        %v1262 = vld [vmem:[#allocation5 + $0xb00] sm:$0xff]
        %v1263 = vld [vmem:[#allocation5 + $0xb08] sm:$0xff]
        %v1264 = vld [vmem:[#allocation5 + $0xb10] sm:$0xff]
        %v1265 = vld [vmem:[#allocation5 + $0xb18] sm:$0xff]
        %v1266 = vld [vmem:[#allocation5 + $0xb20] sm:$0xff]
        %v1267 = vld [vmem:[#allocation5 + $0xb28] sm:$0xff]
        %v1268 = vld [vmem:[#allocation5 + $0xb30] sm:$0xff]
        %v1269 = vld [vmem:[#allocation5 + $0xb38] sm:$0xff]
        %v1270 = vld [vmem:[#allocation5 + $0xb40] sm:$0xff]
        %v1271 = vld [vmem:[#allocation5 + $0xb48] sm:$0xff]
        %v1272 = vld [vmem:[#allocation5 + $0xb50] sm:$0xff]
        %v1273 = vld [vmem:[#allocation5 + $0xb58] sm:$0xff]
        %v1274 = vld [vmem:[#allocation5 + $0xb60] sm:$0xff]
        %v1275 = vld [vmem:[#allocation5 + $0xb68] sm:$0xff]
        %v1276 = vld [vmem:[#allocation5 + $0xb70] sm:$0xff]
        %v1277 = vld [vmem:[#allocation5 + $0xb78] sm:$0xff]
        %v1278 = vld [vmem:[#allocation5 + $0xb80] sm:$0xff]
        %v1279 = vld [vmem:[#allocation5 + $0xb88] sm:$0xff]
        %v1280 = vld [vmem:[#allocation5 + $0xb90] sm:$0xff]
        %v1281 = vld [vmem:[#allocation5 + $0xb98] sm:$0xff]
        %v1282 = vld [vmem:[#allocation5 + $0xba0] sm:$0xff]
        %v1283 = vld [vmem:[#allocation5 + $0xba8] sm:$0xff]
        %v1284 = vld [vmem:[#allocation5 + $0xbb0] sm:$0xff]
        %v1285 = vld [vmem:[#allocation5 + $0xbb8] sm:$0xff]
        %v1286 = vld [vmem:[#allocation5 + $0xbc0] sm:$0xff]
        %v1287 = vld [vmem:[#allocation5 + $0xbc8] sm:$0xff]
        %v1288 = vld [vmem:[#allocation5 + $0xbd0] sm:$0xff]
        %v1289 = vld [vmem:[#allocation5 + $0xbd8] sm:$0xff]
        %v1290 = vld [vmem:[#allocation5 + $0xbe0] sm:$0xff]
        %v1291 = vld [vmem:[#allocation5 + $0xbe8] sm:$0xff]
        %v1292 = vld [vmem:[#allocation5 + $0xbf0] sm:$0xff]
        %v1293 = vld [vmem:[#allocation5 + $0xbf8] sm:$0xff]
        %v1294 = vld [vmem:[#allocation5 + $0xc00] sm:$0xff]
        %v1295 = vld [vmem:[#allocation5 + $0xc08] sm:$0xff]
        %v1296 = vld [vmem:[#allocation5 + $0xc10] sm:$0xff]
        %v1297 = vld [vmem:[#allocation5 + $0xc18] sm:$0xff]
        %v1298 = vld [vmem:[#allocation5 + $0xc20] sm:$0xff]
        %v1299 = vld [vmem:[#allocation5 + $0xc28] sm:$0xff]
        %v1300 = vld [vmem:[#allocation5 + $0xc30] sm:$0xff]
        %v1301 = vld [vmem:[#allocation5 + $0xc38] sm:$0xff]
        %v1302 = vld [vmem:[#allocation5 + $0xc40] sm:$0xff]
        %v1303 = vld [vmem:[#allocation5 + $0xc48] sm:$0xff]
        %v1304 = vld [vmem:[#allocation5 + $0xc50] sm:$0xff]
        %v1305 = vld [vmem:[#allocation5 + $0xc58] sm:$0xff]
        %v1306 = vld [vmem:[#allocation5 + $0xc60] sm:$0xff]
        %v1307 = vld [vmem:[#allocation5 + $0xc68] sm:$0xff]
        %v1308 = vld [vmem:[#allocation5 + $0xc70] sm:$0xff]
        %v1309 = vld [vmem:[#allocation5 + $0xc78] sm:$0xff]
        %v1310 = vld [vmem:[#allocation5 + $0xc80] sm:$0xff]
        %v1311 = vld [vmem:[#allocation5 + $0xc88] sm:$0xff]
        %v1312 = vld [vmem:[#allocation5 + $0xc90] sm:$0xff]
        %v1313 = vld [vmem:[#allocation5 + $0xc98] sm:$0xff]
        %v1314 = vld [vmem:[#allocation5 + $0xca0] sm:$0xff]
        %v1315 = vld [vmem:[#allocation5 + $0xca8] sm:$0xff]
        %v1316 = vld [vmem:[#allocation5 + $0xcb0] sm:$0xff]
        %v1317 = vld [vmem:[#allocation5 + $0xcb8] sm:$0xff]
        %v1318 = vld [vmem:[#allocation5 + $0xcc0] sm:$0xff]
        %v1319 = vld [vmem:[#allocation5 + $0xcc8] sm:$0xff]
        %v1320 = vld [vmem:[#allocation5 + $0xcd0] sm:$0xff]
        %v1321 = vld [vmem:[#allocation5 + $0xcd8] sm:$0xff]
        %v1322 = vld [vmem:[#allocation5 + $0xce0] sm:$0xff]
        %v1323 = vld [vmem:[#allocation5 + $0xce8] sm:$0xff]
        %v1324 = vld [vmem:[#allocation5 + $0xcf0] sm:$0xff]
        %v1325 = vld [vmem:[#allocation5 + $0xcf8] sm:$0xff]
        %v1326 = vld [vmem:[#allocation5 + $0xd00] sm:$0xff]
        %v1327 = vld [vmem:[#allocation5 + $0xd08] sm:$0xff]
        %v1328 = vld [vmem:[#allocation5 + $0xd10] sm:$0xff]
        %v1329 = vld [vmem:[#allocation5 + $0xd18] sm:$0xff]
        %v1330 = vld [vmem:[#allocation5 + $0xd20] sm:$0xff]
        %v1331 = vld [vmem:[#allocation5 + $0xd28] sm:$0xff]
        %v1332 = vld [vmem:[#allocation5 + $0xd30] sm:$0xff]
        %v1333 = vld [vmem:[#allocation5 + $0xd38] sm:$0xff]
        %v1334 = vld [vmem:[#allocation5 + $0xd40] sm:$0xff]
        %v1335 = vld [vmem:[#allocation5 + $0xd48] sm:$0xff]
        %v1336 = vld [vmem:[#allocation5 + $0xd50] sm:$0xff]
        %v1337 = vld [vmem:[#allocation5 + $0xd58] sm:$0xff]
        %v1338 = vld [vmem:[#allocation5 + $0xd60] sm:$0xff]
        %v1339 = vld [vmem:[#allocation5 + $0xd68] sm:$0xff]
        %v1340 = vld [vmem:[#allocation5 + $0xd70] sm:$0xff]
        %v1341 = vld [vmem:[#allocation5 + $0xd78] sm:$0xff]
        %v1342 = vld [vmem:[#allocation5 + $0xd80] sm:$0xff]
        %v1343 = vld [vmem:[#allocation5 + $0xd88] sm:$0xff]
        %v1344 = vld [vmem:[#allocation5 + $0xd90] sm:$0xff]
        %v1345 = vld [vmem:[#allocation5 + $0xd98] sm:$0xff]
        %v1346 = vld [vmem:[#allocation5 + $0xda0] sm:$0xff]
        %v1347 = vld [vmem:[#allocation5 + $0xda8] sm:$0xff]
        %v1348 = vld [vmem:[#allocation5 + $0xdb0] sm:$0xff]
        %v1349 = vld [vmem:[#allocation5 + $0xdb8] sm:$0xff]
        %v1350 = vld [vmem:[#allocation5 + $0xdc0] sm:$0xff]
        %v1351 = vld [vmem:[#allocation5 + $0xdc8] sm:$0xff]
        %v1352 = vld [vmem:[#allocation5 + $0xdd0] sm:$0xff]
        %v1353 = vld [vmem:[#allocation5 + $0xdd8] sm:$0xff]
        %v1354 = vld [vmem:[#allocation5 + $0xde0] sm:$0xff]
        %v1355 = vld [vmem:[#allocation5 + $0xde8] sm:$0xff]
        %v1356 = vld [vmem:[#allocation5 + $0xdf0] sm:$0xff]
        %v1357 = vld [vmem:[#allocation5 + $0xdf8] sm:$0xff]
        %v1358 = vld [vmem:[#allocation5 + $0xe00] sm:$0xff]
        %v1359 = vld [vmem:[#allocation5 + $0xe08] sm:$0xff]
        %v1360 = vld [vmem:[#allocation5 + $0xe10] sm:$0xff]
        %v1361 = vld [vmem:[#allocation5 + $0xe18] sm:$0xff]
        %v1362 = vld [vmem:[#allocation5 + $0xe20] sm:$0xff]
        %v1363 = vld [vmem:[#allocation5 + $0xe28] sm:$0xff]
        %v1364 = vld [vmem:[#allocation5 + $0xe30] sm:$0xff]
        %v1365 = vld [vmem:[#allocation5 + $0xe38] sm:$0xff]
        %v1366 = vld [vmem:[#allocation5 + $0xe40] sm:$0xff]
        %v1367 = vld [vmem:[#allocation5 + $0xe48] sm:$0xff]
        %v1368 = vld [vmem:[#allocation5 + $0xe50] sm:$0xff]
        %v1369 = vld [vmem:[#allocation5 + $0xe58] sm:$0xff]
        %v1370 = vld [vmem:[#allocation5 + $0xe60] sm:$0xff]
        %v1371 = vld [vmem:[#allocation5 + $0xe68] sm:$0xff]
        %v1372 = vld [vmem:[#allocation5 + $0xe70] sm:$0xff]
        %v1373 = vld [vmem:[#allocation5 + $0xe78] sm:$0xff]
        %v1374 = vld [vmem:[#allocation5 + $0xe80] sm:$0xff]
        %v1375 = vld [vmem:[#allocation5 + $0xe88] sm:$0xff]
        %v1376 = vld [vmem:[#allocation5 + $0xe90] sm:$0xff]
        %v1377 = vld [vmem:[#allocation5 + $0xe98] sm:$0xff]
        %v1378 = vld [vmem:[#allocation5 + $0xea0] sm:$0xff]
        %v1379 = vld [vmem:[#allocation5 + $0xea8] sm:$0xff]
        %v1380 = vld [vmem:[#allocation5 + $0xeb0] sm:$0xff]
        %v1381 = vld [vmem:[#allocation5 + $0xeb8] sm:$0xff]
        %v1382 = vld [vmem:[#allocation5 + $0xec0] sm:$0xff]
        %v1383 = vld [vmem:[#allocation5 + $0xec8] sm:$0xff]
        %v1384 = vld [vmem:[#allocation5 + $0xed0] sm:$0xff]
        %v1385 = vld [vmem:[#allocation5 + $0xed8] sm:$0xff]
        %v1386 = vld [vmem:[#allocation5 + $0xee0] sm:$0xff]
        %v1387 = vld [vmem:[#allocation5 + $0xee8] sm:$0xff]
        %v1388 = vld [vmem:[#allocation5 + $0xef0] sm:$0xff]
        %v1389 = vld [vmem:[#allocation5 + $0xef8] sm:$0xff]
        %v1390 = vld [vmem:[#allocation5 + $0xf00] sm:$0xff]
        %v1391 = vld [vmem:[#allocation5 + $0xf08] sm:$0xff]
        %v1392 = vld [vmem:[#allocation5 + $0xf10] sm:$0xff]
        %v1393 = vld [vmem:[#allocation5 + $0xf18] sm:$0xff]
        %v1394 = vld [vmem:[#allocation5 + $0xf20] sm:$0xff]
        %v1395 = vld [vmem:[#allocation5 + $0xf28] sm:$0xff]
        %v1396 = vld [vmem:[#allocation5 + $0xf30] sm:$0xff]
        %v1397 = vld [vmem:[#allocation5 + $0xf38] sm:$0xff]
        %v1398 = vld [vmem:[#allocation5 + $0xf40] sm:$0xff]
        %v1399 = vld [vmem:[#allocation5 + $0xf48] sm:$0xff]
        %v1400 = vld [vmem:[#allocation5 + $0xf50] sm:$0xff]
        %v1401 = vld [vmem:[#allocation5 + $0xf58] sm:$0xff]
        %v1402 = vld [vmem:[#allocation5 + $0xf60] sm:$0xff]
        %v1403 = vld [vmem:[#allocation5 + $0xf68] sm:$0xff]
        %v1404 = vld [vmem:[#allocation5 + $0xf70] sm:$0xff]
        %v1405 = vld [vmem:[#allocation5 + $0xf78] sm:$0xff]
        %v1406 = vld [vmem:[#allocation5 + $0xf80] sm:$0xff]
        %v1407 = vld [vmem:[#allocation5 + $0xf88] sm:$0xff]
        %v1408 = vld [vmem:[#allocation5 + $0xf90] sm:$0xff]
        %v1409 = vld [vmem:[#allocation5 + $0xf98] sm:$0xff]
        %v1410 = vld [vmem:[#allocation5 + $0xfa0] sm:$0xff]
        %v1411 = vld [vmem:[#allocation5 + $0xfa8] sm:$0xff]
        %v1412 = vld [vmem:[#allocation5 + $0xfb0] sm:$0xff]
        %v1413 = vld [vmem:[#allocation5 + $0xfb8] sm:$0xff]
        %v1414 = vld [vmem:[#allocation5 + $0xfc0] sm:$0xff]
        %v1415 = vld [vmem:[#allocation5 + $0xfc8] sm:$0xff]
        %v1416 = vld [vmem:[#allocation5 + $0xfd0] sm:$0xff]
        %v1417 = vld [vmem:[#allocation5 + $0xfd8] sm:$0xff]
        %v1418 = vld [vmem:[#allocation5 + $0xfe0] sm:$0xff]
        %v1419 = vld [vmem:[#allocation5 + $0xfe8] sm:$0xff]
        %v1420 = vld [vmem:[#allocation5 + $0xff0] sm:$0xff]
        %v1421 = vld [vmem:[#allocation5 + $0xff8] sm:$0xff]
        %v1422 = vld [vmem:[#allocation5 + $0x1000] sm:$0xff]
        %v1423 = vld [vmem:[#allocation5 + $0x1008] sm:$0xff]
        %v1424 = vld [vmem:[#allocation5 + $0x1010] sm:$0xff]
        %v1425 = vld [vmem:[#allocation5 + $0x1018] sm:$0xff]
        %v1426 = vld [vmem:[#allocation5 + $0x1020] sm:$0xff]
        %v1427 = vld [vmem:[#allocation5 + $0x1028] sm:$0xff]
        %v1428 = vld [vmem:[#allocation5 + $0x1030] sm:$0xff]
        %v1429 = vld [vmem:[#allocation5 + $0x1038] sm:$0xff]
        %v1430 = vld [vmem:[#allocation5 + $0x1040] sm:$0xff]
        %v1431 = vld [vmem:[#allocation5 + $0x1048] sm:$0xff]
        %v1432 = vld [vmem:[#allocation5 + $0x1050] sm:$0xff]
        %v1433 = vld [vmem:[#allocation5 + $0x1058] sm:$0xff]
        %v1434 = vld [vmem:[#allocation5 + $0x1060] sm:$0xff]
        %v1435 = vld [vmem:[#allocation5 + $0x1068] sm:$0xff]
        %v1436 = vld [vmem:[#allocation5 + $0x1070] sm:$0xff]
        %v1437 = vld [vmem:[#allocation5 + $0x1078] sm:$0xff]
        %v1438 = vld [vmem:[#allocation7] sm:$0x3]
        %v1439 = vpack.c.bf16 %v415, %v382
        %v1440 = vpack.c.bf16 %v416, %v383
        %v1441 = vpack.c.bf16 %v417, %v384
        %v1442 = vpack.c.bf16 %v418, %v385
        %v1443 = vpack.c.bf16 %v419, %v386
        %v1444 = vpack.c.bf16 %v420, %v387
        %v1445 = vpack.c.bf16 %v421, %v388
        %v1446 = vpack.c.bf16 %v422, %v389
        %v1447 = vpack.c.bf16 %v423, %v390
        %v1448 = vpack.c.bf16 %v424, %v391
        %v1449 = vpack.c.bf16 %v425, %v392
        %v1450 = vpack.c.bf16 %v426, %v393
        %v1451 = vpack.c.bf16 %v427, %v394
        %v1452 = vpack.c.bf16 %v428, %v395
        %v1453 = vpack.c.bf16 %v429, %v396
        %v1454 = vpack.c.bf16 %v430, %v397
        %v1455 = vpack.c.bf16 %v431, %v398
        %v1456 = vpack.c.bf16 %v432, %v399
        %v1457 = vpack.c.bf16 %v433, %v400
        %v1458 = vpack.c.bf16 %v434, %v401
        %v1459 = vpack.c.bf16 %v435, %v402
        %v1460 = vpack.c.bf16 %v436, %v403
        %v1461 = vpack.c.bf16 %v437, %v404
        %v1462 = vpack.c.bf16 %v438, %v405
        %v1463 = vpack.c.bf16 %v439, %v406
        %v1464 = vpack.c.bf16 %v440, %v407
        %v1465 = vpack.c.bf16 %v441, %v408
        %v1466 = vpack.c.bf16 %v442, %v409
        %v1467 = vpack.c.bf16 %v443, %v410
        %v1468 = vpack.c.bf16 %v444, %v411
        %v1469 = vpack.c.bf16 %v445, %v412
        %v1470 = vpack.c.bf16 %v446, %v413
        %v1471 = vpack.c.bf16 %v447, %v414
        %v1472 = vpack.c.bf16 %v481, %v448
        %v1473 = vpack.c.bf16 %v482, %v449
        %v1474 = vpack.c.bf16 %v483, %v450
        %v1475 = vpack.c.bf16 %v484, %v451
        %v1476 = vpack.c.bf16 %v485, %v452
        %v1477 = vpack.c.bf16 %v486, %v453
        %v1478 = vpack.c.bf16 %v487, %v454
        %v1479 = vpack.c.bf16 %v488, %v455
        %v1480 = vpack.c.bf16 %v489, %v456
        %v1481 = vpack.c.bf16 %v490, %v457
        %v1482 = vpack.c.bf16 %v491, %v458
        %v1483 = vpack.c.bf16 %v492, %v459
        %v1484 = vpack.c.bf16 %v493, %v460
        %v1485 = vpack.c.bf16 %v494, %v461
        %v1486 = vpack.c.bf16 %v495, %v462
        %v1487 = vpack.c.bf16 %v496, %v463
        %v1488 = vpack.c.bf16 %v497, %v464
        %v1489 = vpack.c.bf16 %v498, %v465
        %v1490 = vpack.c.bf16 %v499, %v466
        %v1491 = vpack.c.bf16 %v500, %v467
        %v1492 = vpack.c.bf16 %v501, %v468
        %v1493 = vpack.c.bf16 %v502, %v469
        %v1494 = vpack.c.bf16 %v503, %v470
        %v1495 = vpack.c.bf16 %v504, %v471
        %v1496 = vpack.c.bf16 %v505, %v472
        %v1497 = vpack.c.bf16 %v506, %v473
        %v1498 = vpack.c.bf16 %v507, %v474
        %v1499 = vpack.c.bf16 %v508, %v475
        %v1500 = vpack.c.bf16 %v509, %v476
        %v1501 = vpack.c.bf16 %v510, %v477
        %v1502 = vpack.c.bf16 %v511, %v478
        %v1503 = vpack.c.bf16 %v512, %v479
        %v1504 = vpack.c.bf16 %v513, %v480
        %v1505 = vpack.c.bf16 %v547, %v514
        %v1506 = vpack.c.bf16 %v548, %v515
        %v1507 = vpack.c.bf16 %v549, %v516
        %v1508 = vpack.c.bf16 %v550, %v517
        %v1509 = vpack.c.bf16 %v551, %v518
        %v1510 = vpack.c.bf16 %v552, %v519
        %v1511 = vpack.c.bf16 %v553, %v520
        %v1512 = vpack.c.bf16 %v554, %v521
        %v1513 = vpack.c.bf16 %v555, %v522
        %v1514 = vpack.c.bf16 %v556, %v523
        %v1515 = vpack.c.bf16 %v557, %v524
        %v1516 = vpack.c.bf16 %v558, %v525
        %v1517 = vpack.c.bf16 %v559, %v526
        %v1518 = vpack.c.bf16 %v560, %v527
        %v1519 = vpack.c.bf16 %v561, %v528
        %v1520 = vpack.c.bf16 %v562, %v529
        %v1521 = vpack.c.bf16 %v563, %v530
        %v1522 = vpack.c.bf16 %v564, %v531
        %v1523 = vpack.c.bf16 %v565, %v532
        %v1524 = vpack.c.bf16 %v566, %v533
        %v1525 = vpack.c.bf16 %v567, %v534
        %v1526 = vpack.c.bf16 %v568, %v535
        %v1527 = vpack.c.bf16 %v569, %v536
        %v1528 = vpack.c.bf16 %v570, %v537
        %v1529 = vpack.c.bf16 %v571, %v538
        %v1530 = vpack.c.bf16 %v572, %v539
        %v1531 = vpack.c.bf16 %v573, %v540
        %v1532 = vpack.c.bf16 %v574, %v541
        %v1533 = vpack.c.bf16 %v575, %v542
        %v1534 = vpack.c.bf16 %v576, %v543
        %v1535 = vpack.c.bf16 %v577, %v544
        %v1536 = vpack.c.bf16 %v578, %v545
        %v1537 = vpack.c.bf16 %v579, %v546
        %v1538 = vpack.c.bf16 %v613, %v580
        %v1539 = vpack.c.bf16 %v614, %v581
        %v1540 = vpack.c.bf16 %v615, %v582
        %v1541 = vpack.c.bf16 %v616, %v583
        %v1542 = vpack.c.bf16 %v617, %v584
        %v1543 = vpack.c.bf16 %v618, %v585
        %v1544 = vpack.c.bf16 %v619, %v586
        %v1545 = vpack.c.bf16 %v620, %v587
        %v1546 = vpack.c.bf16 %v621, %v588
        %v1547 = vpack.c.bf16 %v622, %v589
        %v1548 = vpack.c.bf16 %v623, %v590
        %v1549 = vpack.c.bf16 %v624, %v591
        %v1550 = vpack.c.bf16 %v625, %v592
        %v1551 = vpack.c.bf16 %v626, %v593
        %v1552 = vpack.c.bf16 %v627, %v594
        %v1553 = vpack.c.bf16 %v628, %v595
        %v1554 = vpack.c.bf16 %v629, %v596
        %v1555 = vpack.c.bf16 %v630, %v597
        %v1556 = vpack.c.bf16 %v631, %v598
        %v1557 = vpack.c.bf16 %v632, %v599
        %v1558 = vpack.c.bf16 %v633, %v600
        %v1559 = vpack.c.bf16 %v634, %v601
        %v1560 = vpack.c.bf16 %v635, %v602
        %v1561 = vpack.c.bf16 %v636, %v603
        %v1562 = vpack.c.bf16 %v637, %v604
        %v1563 = vpack.c.bf16 %v638, %v605
        %v1564 = vpack.c.bf16 %v639, %v606
        %v1565 = vpack.c.bf16 %v640, %v607
        %v1566 = vpack.c.bf16 %v641, %v608
        %v1567 = vpack.c.bf16 %v642, %v609
        %v1568 = vpack.c.bf16 %v643, %v610
        %v1569 = vpack.c.bf16 %v644, %v611
        %v1570 = vpack.c.bf16 %v645, %v612
        %v1571 = vpack.c.bf16 %v679, %v646
        %v1572 = vpack.c.bf16 %v680, %v647
        %v1573 = vpack.c.bf16 %v681, %v648
        %v1574 = vpack.c.bf16 %v682, %v649
        %v1575 = vpack.c.bf16 %v683, %v650
        %v1576 = vpack.c.bf16 %v684, %v651
        %v1577 = vpack.c.bf16 %v685, %v652
        %v1578 = vpack.c.bf16 %v686, %v653
        %v1579 = vpack.c.bf16 %v687, %v654
        %v1580 = vpack.c.bf16 %v688, %v655
        %v1581 = vpack.c.bf16 %v689, %v656
        %v1582 = vpack.c.bf16 %v690, %v657
        %v1583 = vpack.c.bf16 %v691, %v658
        %v1584 = vpack.c.bf16 %v692, %v659
        %v1585 = vpack.c.bf16 %v693, %v660
        %v1586 = vpack.c.bf16 %v694, %v661
        %v1587 = vpack.c.bf16 %v695, %v662
        %v1588 = vpack.c.bf16 %v696, %v663
        %v1589 = vpack.c.bf16 %v697, %v664
        %v1590 = vpack.c.bf16 %v698, %v665
        %v1591 = vpack.c.bf16 %v699, %v666
        %v1592 = vpack.c.bf16 %v700, %v667
        %v1593 = vpack.c.bf16 %v701, %v668
        %v1594 = vpack.c.bf16 %v702, %v669
        %v1595 = vpack.c.bf16 %v703, %v670
        %v1596 = vpack.c.bf16 %v704, %v671
        %v1597 = vpack.c.bf16 %v705, %v672
        %v1598 = vpack.c.bf16 %v706, %v673
        %v1599 = vpack.c.bf16 %v707, %v674
        %v1600 = vpack.c.bf16 %v708, %v675
        %v1601 = vpack.c.bf16 %v709, %v676
        %v1602 = vpack.c.bf16 %v710, %v677
        %v1603 = vpack.c.bf16 %v711, %v678
        %v1604 = vpack.c.bf16 %v745, %v712
        %v1605 = vpack.c.bf16 %v746, %v713
        %v1606 = vpack.c.bf16 %v747, %v714
        %v1607 = vpack.c.bf16 %v748, %v715
        %v1608 = vpack.c.bf16 %v749, %v716
        %v1609 = vpack.c.bf16 %v750, %v717
        %v1610 = vpack.c.bf16 %v751, %v718
        %v1611 = vpack.c.bf16 %v752, %v719
        %v1612 = vpack.c.bf16 %v753, %v720
        %v1613 = vpack.c.bf16 %v754, %v721
        %v1614 = vpack.c.bf16 %v755, %v722
        %v1615 = vpack.c.bf16 %v756, %v723
        %v1616 = vpack.c.bf16 %v757, %v724
        %v1617 = vpack.c.bf16 %v758, %v725
        %v1618 = vpack.c.bf16 %v759, %v726
        %v1619 = vpack.c.bf16 %v760, %v727
        %v1620 = vpack.c.bf16 %v761, %v728
        %v1621 = vpack.c.bf16 %v762, %v729
        %v1622 = vpack.c.bf16 %v763, %v730
        %v1623 = vpack.c.bf16 %v764, %v731
        %v1624 = vpack.c.bf16 %v765, %v732
        %v1625 = vpack.c.bf16 %v766, %v733
        %v1626 = vpack.c.bf16 %v767, %v734
        %v1627 = vpack.c.bf16 %v768, %v735
        %v1628 = vpack.c.bf16 %v769, %v736
        %v1629 = vpack.c.bf16 %v770, %v737
        %v1630 = vpack.c.bf16 %v771, %v738
        %v1631 = vpack.c.bf16 %v772, %v739
        %v1632 = vpack.c.bf16 %v773, %v740
        %v1633 = vpack.c.bf16 %v774, %v741
        %v1634 = vpack.c.bf16 %v775, %v742
        %v1635 = vpack.c.bf16 %v776, %v743
        %v1636 = vpack.c.bf16 %v777, %v744
        %v1637 = vpack.c.bf16 %v811, %v778
        %v1638 = vpack.c.bf16 %v812, %v779
        %v1639 = vpack.c.bf16 %v813, %v780
        %v1640 = vpack.c.bf16 %v814, %v781
        %v1641 = vpack.c.bf16 %v815, %v782
        %v1642 = vpack.c.bf16 %v816, %v783
        %v1643 = vpack.c.bf16 %v817, %v784
        %v1644 = vpack.c.bf16 %v818, %v785
        %v1645 = vpack.c.bf16 %v819, %v786
        %v1646 = vpack.c.bf16 %v820, %v787
        %v1647 = vpack.c.bf16 %v821, %v788
        %v1648 = vpack.c.bf16 %v822, %v789
        %v1649 = vpack.c.bf16 %v823, %v790
        %v1650 = vpack.c.bf16 %v824, %v791
        %v1651 = vpack.c.bf16 %v825, %v792
        %v1652 = vpack.c.bf16 %v826, %v793
        %v1653 = vpack.c.bf16 %v827, %v794
        %v1654 = vpack.c.bf16 %v828, %v795
        %v1655 = vpack.c.bf16 %v829, %v796
        %v1656 = vpack.c.bf16 %v830, %v797
        %v1657 = vpack.c.bf16 %v831, %v798
        %v1658 = vpack.c.bf16 %v832, %v799
        %v1659 = vpack.c.bf16 %v833, %v800
        %v1660 = vpack.c.bf16 %v834, %v801
        %v1661 = vpack.c.bf16 %v835, %v802
        %v1662 = vpack.c.bf16 %v836, %v803
        %v1663 = vpack.c.bf16 %v837, %v804
        %v1664 = vpack.c.bf16 %v838, %v805
        %v1665 = vpack.c.bf16 %v839, %v806
        %v1666 = vpack.c.bf16 %v840, %v807
        %v1667 = vpack.c.bf16 %v841, %v808
        %v1668 = vpack.c.bf16 %v842, %v809
        %v1669 = vpack.c.bf16 %v843, %v810
        %v1670 = vpack.c.bf16 %v877, %v844
        %v1671 = vpack.c.bf16 %v878, %v845
        %v1672 = vpack.c.bf16 %v879, %v846
        %v1673 = vpack.c.bf16 %v880, %v847
        %v1674 = vpack.c.bf16 %v881, %v848
        %v1675 = vpack.c.bf16 %v882, %v849
        %v1676 = vpack.c.bf16 %v883, %v850
        %v1677 = vpack.c.bf16 %v884, %v851
        %v1678 = vpack.c.bf16 %v885, %v852
        %v1679 = vpack.c.bf16 %v886, %v853
        %v1680 = vpack.c.bf16 %v887, %v854
        %v1681 = vpack.c.bf16 %v888, %v855
        %v1682 = vpack.c.bf16 %v889, %v856
        %v1683 = vpack.c.bf16 %v890, %v857
        %v1684 = vpack.c.bf16 %v891, %v858
        %v1685 = vpack.c.bf16 %v892, %v859
        %v1686 = vpack.c.bf16 %v893, %v860
        %v1687 = vpack.c.bf16 %v894, %v861
        %v1688 = vpack.c.bf16 %v895, %v862
        %v1689 = vpack.c.bf16 %v896, %v863
        %v1690 = vpack.c.bf16 %v897, %v864
        %v1691 = vpack.c.bf16 %v898, %v865
        %v1692 = vpack.c.bf16 %v899, %v866
        %v1693 = vpack.c.bf16 %v900, %v867
        %v1694 = vpack.c.bf16 %v901, %v868
        %v1695 = vpack.c.bf16 %v902, %v869
        %v1696 = vpack.c.bf16 %v903, %v870
        %v1697 = vpack.c.bf16 %v904, %v871
        %v1698 = vpack.c.bf16 %v905, %v872
        %v1699 = vpack.c.bf16 %v906, %v873
        %v1700 = vpack.c.bf16 %v907, %v874
        %v1701 = vpack.c.bf16 %v908, %v875
        %v1702 = vpack.c.bf16 %v909, %v876
        %v1704 = vlaneseq
        %v1705 = vshrl.u32 %v1704, 7
        %v1706 = vsub.s32 0, %v1705
        %v1707 = vrot.slane %v1438, %v1706
        %v1708 = vlaneseq
        %v1709 = vshrl.u32 %v1708, 7
        %v1710 = vsub.s32 1, %v1709
        %v1711 = vrot.slane %v1438, %v1710
        %v2242 = vunpack.c.l.b16 %v910
        %v2243 = vunpack.c.h.b16 %v910
        %v2244 = vunpack.c.l.b16 %v911
        %v2245 = vunpack.c.h.b16 %v911
        %v2246 = vunpack.c.l.b16 %v912
        %v2247 = vunpack.c.h.b16 %v912
        %v2248 = vunpack.c.l.b16 %v913
        %v2249 = vunpack.c.h.b16 %v913
        %v2250 = vunpack.c.l.b16 %v914
        %v2251 = vunpack.c.h.b16 %v914
        %v2252 = vunpack.c.l.b16 %v915
        %v2253 = vunpack.c.h.b16 %v915
        %v2254 = vunpack.c.l.b16 %v916
        %v2255 = vunpack.c.h.b16 %v916
        %v2256 = vunpack.c.l.b16 %v917
        %v2257 = vunpack.c.h.b16 %v917
        %v2258 = vunpack.c.l.b16 %v918
        %v2259 = vunpack.c.h.b16 %v918
        %v2260 = vunpack.c.l.b16 %v919
        %v2261 = vunpack.c.h.b16 %v919
        %v2262 = vunpack.c.l.b16 %v920
        %v2263 = vunpack.c.h.b16 %v920
        %v2264 = vunpack.c.l.b16 %v921
        %v2265 = vunpack.c.h.b16 %v921
        %v2266 = vunpack.c.l.b16 %v922
        %v2267 = vunpack.c.h.b16 %v922
        %v2268 = vunpack.c.l.b16 %v923
        %v2269 = vunpack.c.h.b16 %v923
        %v2270 = vunpack.c.l.b16 %v924
        %v2271 = vunpack.c.h.b16 %v924
        %v2272 = vunpack.c.l.b16 %v925
        %v2273 = vunpack.c.h.b16 %v925
        %v2274 = vunpack.c.l.b16 %v926
        %v2275 = vunpack.c.h.b16 %v926
        %v2276 = vunpack.c.l.b16 %v927
        %v2277 = vunpack.c.h.b16 %v927
        %v2278 = vunpack.c.l.b16 %v928
        %v2279 = vunpack.c.h.b16 %v928
        %v2280 = vunpack.c.l.b16 %v929
        %v2281 = vunpack.c.h.b16 %v929
        %v2282 = vunpack.c.l.b16 %v930
        %v2283 = vunpack.c.h.b16 %v930
        %v2284 = vunpack.c.l.b16 %v931
        %v2285 = vunpack.c.h.b16 %v931
        %v2286 = vunpack.c.l.b16 %v932
        %v2287 = vunpack.c.h.b16 %v932
        %v2288 = vunpack.c.l.b16 %v933
        %v2289 = vunpack.c.h.b16 %v933
        %v2290 = vunpack.c.l.b16 %v934
        %v2291 = vunpack.c.h.b16 %v934
        %v2292 = vunpack.c.l.b16 %v935
        %v2293 = vunpack.c.h.b16 %v935
        %v2294 = vunpack.c.l.b16 %v936
        %v2295 = vunpack.c.h.b16 %v936
        %v2296 = vunpack.c.l.b16 %v937
        %v2297 = vunpack.c.h.b16 %v937
        %v2298 = vunpack.c.l.b16 %v938
        %v2299 = vunpack.c.h.b16 %v938
        %v2300 = vunpack.c.l.b16 %v939
        %v2301 = vunpack.c.h.b16 %v939
        %v2302 = vunpack.c.l.b16 %v940
        %v2303 = vunpack.c.h.b16 %v940
        %v2304 = vunpack.c.l.b16 %v941
        %v2305 = vunpack.c.h.b16 %v941
        %v2306 = vunpack.c.l.b16 %v942
        %v2307 = vunpack.c.h.b16 %v942
        %v2308 = vunpack.c.l.b16 %v943
        %v2309 = vunpack.c.h.b16 %v943
        %v2310 = vunpack.c.l.b16 %v944
        %v2311 = vunpack.c.h.b16 %v944
        %v2312 = vunpack.c.l.b16 %v945
        %v2313 = vunpack.c.h.b16 %v945
        %v2314 = vunpack.c.l.b16 %v946
        %v2315 = vunpack.c.h.b16 %v946
        %v2316 = vunpack.c.l.b16 %v947
        %v2317 = vunpack.c.h.b16 %v947
        %v2318 = vunpack.c.l.b16 %v948
        %v2319 = vunpack.c.h.b16 %v948
        %v2320 = vunpack.c.l.b16 %v949
        %v2321 = vunpack.c.h.b16 %v949
        %v2322 = vunpack.c.l.b16 %v950
        %v2323 = vunpack.c.h.b16 %v950
        %v2324 = vunpack.c.l.b16 %v951
        %v2325 = vunpack.c.h.b16 %v951
        %v2326 = vunpack.c.l.b16 %v952
        %v2327 = vunpack.c.h.b16 %v952
        %v2328 = vunpack.c.l.b16 %v953
        %v2329 = vunpack.c.h.b16 %v953
        %v2330 = vunpack.c.l.b16 %v954
        %v2331 = vunpack.c.h.b16 %v954
        %v2332 = vunpack.c.l.b16 %v955
        %v2333 = vunpack.c.h.b16 %v955
        %v2334 = vunpack.c.l.b16 %v956
        %v2335 = vunpack.c.h.b16 %v956
        %v2336 = vunpack.c.l.b16 %v957
        %v2337 = vunpack.c.h.b16 %v957
        %v2338 = vunpack.c.l.b16 %v958
        %v2339 = vunpack.c.h.b16 %v958
        %v2340 = vunpack.c.l.b16 %v959
        %v2341 = vunpack.c.h.b16 %v959
        %v2342 = vunpack.c.l.b16 %v960
        %v2343 = vunpack.c.h.b16 %v960
        %v2344 = vunpack.c.l.b16 %v961
        %v2345 = vunpack.c.h.b16 %v961
        %v2346 = vunpack.c.l.b16 %v962
        %v2347 = vunpack.c.h.b16 %v962
        %v2348 = vunpack.c.l.b16 %v963
        %v2349 = vunpack.c.h.b16 %v963
        %v2350 = vunpack.c.l.b16 %v964
        %v2351 = vunpack.c.h.b16 %v964
        %v2352 = vunpack.c.l.b16 %v965
        %v2353 = vunpack.c.h.b16 %v965
        %v2354 = vunpack.c.l.b16 %v966
        %v2355 = vunpack.c.h.b16 %v966
        %v2356 = vunpack.c.l.b16 %v967
        %v2357 = vunpack.c.h.b16 %v967
        %v2358 = vunpack.c.l.b16 %v968
        %v2359 = vunpack.c.h.b16 %v968
        %v2360 = vunpack.c.l.b16 %v969
        %v2361 = vunpack.c.h.b16 %v969
        %v2362 = vunpack.c.l.b16 %v970
        %v2363 = vunpack.c.h.b16 %v970
        %v2364 = vunpack.c.l.b16 %v971
        %v2365 = vunpack.c.h.b16 %v971
        %v2366 = vunpack.c.l.b16 %v972
        %v2367 = vunpack.c.h.b16 %v972
        %v2368 = vunpack.c.l.b16 %v973
        %v2369 = vunpack.c.h.b16 %v973
        %v2370 = vunpack.c.l.b16 %v974
        %v2371 = vunpack.c.h.b16 %v974
        %v2372 = vunpack.c.l.b16 %v975
        %v2373 = vunpack.c.h.b16 %v975
        %v2374 = vunpack.c.l.b16 %v976
        %v2375 = vunpack.c.h.b16 %v976
        %v2376 = vunpack.c.l.b16 %v977
        %v2377 = vunpack.c.h.b16 %v977
        %v2378 = vunpack.c.l.b16 %v978
        %v2379 = vunpack.c.h.b16 %v978
        %v2380 = vunpack.c.l.b16 %v979
        %v2381 = vunpack.c.h.b16 %v979
        %v2382 = vunpack.c.l.b16 %v980
        %v2383 = vunpack.c.h.b16 %v980
        %v2384 = vunpack.c.l.b16 %v981
        %v2385 = vunpack.c.h.b16 %v981
        %v2386 = vunpack.c.l.b16 %v982
        %v2387 = vunpack.c.h.b16 %v982
        %v2388 = vunpack.c.l.b16 %v983
        %v2389 = vunpack.c.h.b16 %v983
        %v2390 = vunpack.c.l.b16 %v984
        %v2391 = vunpack.c.h.b16 %v984
        %v2392 = vunpack.c.l.b16 %v985
        %v2393 = vunpack.c.h.b16 %v985
        %v2394 = vunpack.c.l.b16 %v986
        %v2395 = vunpack.c.h.b16 %v986
        %v2396 = vunpack.c.l.b16 %v987
        %v2397 = vunpack.c.h.b16 %v987
        %v2398 = vunpack.c.l.b16 %v988
        %v2399 = vunpack.c.h.b16 %v988
        %v2400 = vunpack.c.l.b16 %v989
        %v2401 = vunpack.c.h.b16 %v989
        %v2402 = vunpack.c.l.b16 %v990
        %v2403 = vunpack.c.h.b16 %v990
        %v2404 = vunpack.c.l.b16 %v991
        %v2405 = vunpack.c.h.b16 %v991
        %v2406 = vunpack.c.l.b16 %v992
        %v2407 = vunpack.c.h.b16 %v992
        %v2408 = vunpack.c.l.b16 %v993
        %v2409 = vunpack.c.h.b16 %v993
        %v2410 = vunpack.c.l.b16 %v994
        %v2411 = vunpack.c.h.b16 %v994
        %v2412 = vunpack.c.l.b16 %v995
        %v2413 = vunpack.c.h.b16 %v995
        %v2414 = vunpack.c.l.b16 %v996
        %v2415 = vunpack.c.h.b16 %v996
        %v2416 = vunpack.c.l.b16 %v997
        %v2417 = vunpack.c.h.b16 %v997
        %v2418 = vunpack.c.l.b16 %v998
        %v2419 = vunpack.c.h.b16 %v998
        %v2420 = vunpack.c.l.b16 %v999
        %v2421 = vunpack.c.h.b16 %v999
        %v2422 = vunpack.c.l.b16 %v1000
        %v2423 = vunpack.c.h.b16 %v1000
        %v2424 = vunpack.c.l.b16 %v1001
        %v2425 = vunpack.c.h.b16 %v1001
        %v2426 = vunpack.c.l.b16 %v1002
        %v2427 = vunpack.c.h.b16 %v1002
        %v2428 = vunpack.c.l.b16 %v1003
        %v2429 = vunpack.c.h.b16 %v1003
        %v2430 = vunpack.c.l.b16 %v1004
        %v2431 = vunpack.c.h.b16 %v1004
        %v2432 = vunpack.c.l.b16 %v1005
        %v2433 = vunpack.c.h.b16 %v1005
        %v2434 = vunpack.c.l.b16 %v1006
        %v2435 = vunpack.c.h.b16 %v1006
        %v2436 = vunpack.c.l.b16 %v1007
        %v2437 = vunpack.c.h.b16 %v1007
        %v2438 = vunpack.c.l.b16 %v1008
        %v2439 = vunpack.c.h.b16 %v1008
        %v2440 = vunpack.c.l.b16 %v1009
        %v2441 = vunpack.c.h.b16 %v1009
        %v2442 = vunpack.c.l.b16 %v1010
        %v2443 = vunpack.c.h.b16 %v1010
        %v2444 = vunpack.c.l.b16 %v1011
        %v2445 = vunpack.c.h.b16 %v1011
        %v2446 = vunpack.c.l.b16 %v1012
        %v2447 = vunpack.c.h.b16 %v1012
        %v2448 = vunpack.c.l.b16 %v1013
        %v2449 = vunpack.c.h.b16 %v1013
        %v2450 = vunpack.c.l.b16 %v1014
        %v2451 = vunpack.c.h.b16 %v1014
        %v2452 = vunpack.c.l.b16 %v1015
        %v2453 = vunpack.c.h.b16 %v1015
        %v2454 = vunpack.c.l.b16 %v1016
        %v2455 = vunpack.c.h.b16 %v1016
        %v2456 = vunpack.c.l.b16 %v1017
        %v2457 = vunpack.c.h.b16 %v1017
        %v2458 = vunpack.c.l.b16 %v1018
        %v2459 = vunpack.c.h.b16 %v1018
        %v2460 = vunpack.c.l.b16 %v1019
        %v2461 = vunpack.c.h.b16 %v1019
        %v2462 = vunpack.c.l.b16 %v1020
        %v2463 = vunpack.c.h.b16 %v1020
        %v2464 = vunpack.c.l.b16 %v1021
        %v2465 = vunpack.c.h.b16 %v1021
        %v2466 = vunpack.c.l.b16 %v1022
        %v2467 = vunpack.c.h.b16 %v1022
        %v2468 = vunpack.c.l.b16 %v1023
        %v2469 = vunpack.c.h.b16 %v1023
        %v2470 = vunpack.c.l.b16 %v1024
        %v2471 = vunpack.c.h.b16 %v1024
        %v2472 = vunpack.c.l.b16 %v1025
        %v2473 = vunpack.c.h.b16 %v1025
        %v2474 = vunpack.c.l.b16 %v1026
        %v2475 = vunpack.c.h.b16 %v1026
        %v2476 = vunpack.c.l.b16 %v1027
        %v2477 = vunpack.c.h.b16 %v1027
        %v2478 = vunpack.c.l.b16 %v1028
        %v2479 = vunpack.c.h.b16 %v1028
        %v2480 = vunpack.c.l.b16 %v1029
        %v2481 = vunpack.c.h.b16 %v1029
        %v2482 = vunpack.c.l.b16 %v1030
        %v2483 = vunpack.c.h.b16 %v1030
        %v2484 = vunpack.c.l.b16 %v1031
        %v2485 = vunpack.c.h.b16 %v1031
        %v2486 = vunpack.c.l.b16 %v1032
        %v2487 = vunpack.c.h.b16 %v1032
        %v2488 = vunpack.c.l.b16 %v1033
        %v2489 = vunpack.c.h.b16 %v1033
        %v2490 = vunpack.c.l.b16 %v1034
        %v2491 = vunpack.c.h.b16 %v1034
        %v2492 = vunpack.c.l.b16 %v1035
        %v2493 = vunpack.c.h.b16 %v1035
        %v2494 = vunpack.c.l.b16 %v1036
        %v2495 = vunpack.c.h.b16 %v1036
        %v2496 = vunpack.c.l.b16 %v1037
        %v2497 = vunpack.c.h.b16 %v1037
        %v2498 = vunpack.c.l.b16 %v1038
        %v2499 = vunpack.c.h.b16 %v1038
        %v2500 = vunpack.c.l.b16 %v1039
        %v2501 = vunpack.c.h.b16 %v1039
        %v2502 = vunpack.c.l.b16 %v1040
        %v2503 = vunpack.c.h.b16 %v1040
        %v2504 = vunpack.c.l.b16 %v1041
        %v2505 = vunpack.c.h.b16 %v1041
        %v2506 = vunpack.c.l.b16 %v1042
        %v2507 = vunpack.c.h.b16 %v1042
        %v2508 = vunpack.c.l.b16 %v1043
        %v2509 = vunpack.c.h.b16 %v1043
        %v2510 = vunpack.c.l.b16 %v1044
        %v2511 = vunpack.c.h.b16 %v1044
        %v2512 = vunpack.c.l.b16 %v1045
        %v2513 = vunpack.c.h.b16 %v1045
        %v2514 = vunpack.c.l.b16 %v1046
        %v2515 = vunpack.c.h.b16 %v1046
        %v2516 = vunpack.c.l.b16 %v1047
        %v2517 = vunpack.c.h.b16 %v1047
        %v2518 = vunpack.c.l.b16 %v1048
        %v2519 = vunpack.c.h.b16 %v1048
        %v2520 = vunpack.c.l.b16 %v1049
        %v2521 = vunpack.c.h.b16 %v1049
        %v2522 = vunpack.c.l.b16 %v1050
        %v2523 = vunpack.c.h.b16 %v1050
        %v2524 = vunpack.c.l.b16 %v1051
        %v2525 = vunpack.c.h.b16 %v1051
        %v2526 = vunpack.c.l.b16 %v1052
        %v2527 = vunpack.c.h.b16 %v1052
        %v2528 = vunpack.c.l.b16 %v1053
        %v2529 = vunpack.c.h.b16 %v1053
        %v2530 = vunpack.c.l.b16 %v1054
        %v2531 = vunpack.c.h.b16 %v1054
        %v2532 = vunpack.c.l.b16 %v1055
        %v2533 = vunpack.c.h.b16 %v1055
        %v2534 = vunpack.c.l.b16 %v1056
        %v2535 = vunpack.c.h.b16 %v1056
        %v2536 = vunpack.c.l.b16 %v1057
        %v2537 = vunpack.c.h.b16 %v1057
        %v2538 = vunpack.c.l.b16 %v1058
        %v2539 = vunpack.c.h.b16 %v1058
        %v2540 = vunpack.c.l.b16 %v1059
        %v2541 = vunpack.c.h.b16 %v1059
        %v2542 = vunpack.c.l.b16 %v1060
        %v2543 = vunpack.c.h.b16 %v1060
        %v2544 = vunpack.c.l.b16 %v1061
        %v2545 = vunpack.c.h.b16 %v1061
        %v2546 = vunpack.c.l.b16 %v1062
        %v2547 = vunpack.c.h.b16 %v1062
        %v2548 = vunpack.c.l.b16 %v1063
        %v2549 = vunpack.c.h.b16 %v1063
        %v2550 = vunpack.c.l.b16 %v1064
        %v2551 = vunpack.c.h.b16 %v1064
        %v2552 = vunpack.c.l.b16 %v1065
        %v2553 = vunpack.c.h.b16 %v1065
        %v2554 = vunpack.c.l.b16 %v1066
        %v2555 = vunpack.c.h.b16 %v1066
        %v2556 = vunpack.c.l.b16 %v1067
        %v2557 = vunpack.c.h.b16 %v1067
        %v2558 = vunpack.c.l.b16 %v1068
        %v2559 = vunpack.c.h.b16 %v1068
        %v2560 = vunpack.c.l.b16 %v1069
        %v2561 = vunpack.c.h.b16 %v1069
        %v2562 = vunpack.c.l.b16 %v1070
        %v2563 = vunpack.c.h.b16 %v1070
        %v2564 = vunpack.c.l.b16 %v1071
        %v2565 = vunpack.c.h.b16 %v1071
        %v2566 = vunpack.c.l.b16 %v1072
        %v2567 = vunpack.c.h.b16 %v1072
        %v2568 = vunpack.c.l.b16 %v1073
        %v2569 = vunpack.c.h.b16 %v1073
        %v2570 = vunpack.c.l.b16 %v1074
        %v2571 = vunpack.c.h.b16 %v1074
        %v2572 = vunpack.c.l.b16 %v1075
        %v2573 = vunpack.c.h.b16 %v1075
        %v2574 = vunpack.c.l.b16 %v1076
        %v2575 = vunpack.c.h.b16 %v1076
        %v2576 = vunpack.c.l.b16 %v1077
        %v2577 = vunpack.c.h.b16 %v1077
        %v2578 = vunpack.c.l.b16 %v1078
        %v2579 = vunpack.c.h.b16 %v1078
        %v2580 = vunpack.c.l.b16 %v1079
        %v2581 = vunpack.c.h.b16 %v1079
        %v2582 = vunpack.c.l.b16 %v1080
        %v2583 = vunpack.c.h.b16 %v1080
        %v2584 = vunpack.c.l.b16 %v1081
        %v2585 = vunpack.c.h.b16 %v1081
        %v2586 = vunpack.c.l.b16 %v1082
        %v2587 = vunpack.c.h.b16 %v1082
        %v2588 = vunpack.c.l.b16 %v1083
        %v2589 = vunpack.c.h.b16 %v1083
        %v2590 = vunpack.c.l.b16 %v1084
        %v2591 = vunpack.c.h.b16 %v1084
        %v2592 = vunpack.c.l.b16 %v1085
        %v2593 = vunpack.c.h.b16 %v1085
        %v2594 = vunpack.c.l.b16 %v1086
        %v2595 = vunpack.c.h.b16 %v1086
        %v2596 = vunpack.c.l.b16 %v1087
        %v2597 = vunpack.c.h.b16 %v1087
        %v2598 = vunpack.c.l.b16 %v1088
        %v2599 = vunpack.c.h.b16 %v1088
        %v2600 = vunpack.c.l.b16 %v1089
        %v2601 = vunpack.c.h.b16 %v1089
        %v2602 = vunpack.c.l.b16 %v1090
        %v2603 = vunpack.c.h.b16 %v1090
        %v2604 = vunpack.c.l.b16 %v1091
        %v2605 = vunpack.c.h.b16 %v1091
        %v2606 = vunpack.c.l.b16 %v1092
        %v2607 = vunpack.c.h.b16 %v1092
        %v2608 = vunpack.c.l.b16 %v1093
        %v2609 = vunpack.c.h.b16 %v1093
        %v2610 = vunpack.c.l.b16 %v1094
        %v2611 = vunpack.c.h.b16 %v1094
        %v2612 = vunpack.c.l.b16 %v1095
        %v2613 = vunpack.c.h.b16 %v1095
        %v2614 = vunpack.c.l.b16 %v1096
        %v2615 = vunpack.c.h.b16 %v1096
        %v2616 = vunpack.c.l.b16 %v1097
        %v2617 = vunpack.c.h.b16 %v1097
        %v2618 = vunpack.c.l.b16 %v1098
        %v2619 = vunpack.c.h.b16 %v1098
        %v2620 = vunpack.c.l.b16 %v1099
        %v2621 = vunpack.c.h.b16 %v1099
        %v2622 = vunpack.c.l.b16 %v1100
        %v2623 = vunpack.c.h.b16 %v1100
        %v2624 = vunpack.c.l.b16 %v1101
        %v2625 = vunpack.c.h.b16 %v1101
        %v2626 = vunpack.c.l.b16 %v1102
        %v2627 = vunpack.c.h.b16 %v1102
        %v2628 = vunpack.c.l.b16 %v1103
        %v2629 = vunpack.c.h.b16 %v1103
        %v2630 = vunpack.c.l.b16 %v1104
        %v2631 = vunpack.c.h.b16 %v1104
        %v2632 = vunpack.c.l.b16 %v1105
        %v2633 = vunpack.c.h.b16 %v1105
        %v2634 = vunpack.c.l.b16 %v1106
        %v2635 = vunpack.c.h.b16 %v1106
        %v2636 = vunpack.c.l.b16 %v1107
        %v2637 = vunpack.c.h.b16 %v1107
        %v2638 = vunpack.c.l.b16 %v1108
        %v2639 = vunpack.c.h.b16 %v1108
        %v2640 = vunpack.c.l.b16 %v1109
        %v2641 = vunpack.c.h.b16 %v1109
        %v2642 = vunpack.c.l.b16 %v1110
        %v2643 = vunpack.c.h.b16 %v1110
        %v2644 = vunpack.c.l.b16 %v1111
        %v2645 = vunpack.c.h.b16 %v1111
        %v2646 = vunpack.c.l.b16 %v1112
        %v2647 = vunpack.c.h.b16 %v1112
        %v2648 = vunpack.c.l.b16 %v1113
        %v2649 = vunpack.c.h.b16 %v1113
        %v2650 = vunpack.c.l.b16 %v1114
        %v2651 = vunpack.c.h.b16 %v1114
        %v2652 = vunpack.c.l.b16 %v1115
        %v2653 = vunpack.c.h.b16 %v1115
        %v2654 = vunpack.c.l.b16 %v1116
        %v2655 = vunpack.c.h.b16 %v1116
        %v2656 = vunpack.c.l.b16 %v1117
        %v2657 = vunpack.c.h.b16 %v1117
        %v2658 = vunpack.c.l.b16 %v1118
        %v2659 = vunpack.c.h.b16 %v1118
        %v2660 = vunpack.c.l.b16 %v1119
        %v2661 = vunpack.c.h.b16 %v1119
        %v2662 = vunpack.c.l.b16 %v1120
        %v2663 = vunpack.c.h.b16 %v1120
        %v2664 = vunpack.c.l.b16 %v1121
        %v2665 = vunpack.c.h.b16 %v1121
        %v2666 = vunpack.c.l.b16 %v1122
        %v2667 = vunpack.c.h.b16 %v1122
        %v2668 = vunpack.c.l.b16 %v1123
        %v2669 = vunpack.c.h.b16 %v1123
        %v2670 = vunpack.c.l.b16 %v1124
        %v2671 = vunpack.c.h.b16 %v1124
        %v2672 = vunpack.c.l.b16 %v1125
        %v2673 = vunpack.c.h.b16 %v1125
        %v2674 = vunpack.c.l.b16 %v1126
        %v2675 = vunpack.c.h.b16 %v1126
        %v2676 = vunpack.c.l.b16 %v1127
        %v2677 = vunpack.c.h.b16 %v1127
        %v2678 = vunpack.c.l.b16 %v1128
        %v2679 = vunpack.c.h.b16 %v1128
        %v2680 = vunpack.c.l.b16 %v1129
        %v2681 = vunpack.c.h.b16 %v1129
        %v2682 = vunpack.c.l.b16 %v1130
        %v2683 = vunpack.c.h.b16 %v1130
        %v2684 = vunpack.c.l.b16 %v1131
        %v2685 = vunpack.c.h.b16 %v1131
        %v2686 = vunpack.c.l.b16 %v1132
        %v2687 = vunpack.c.h.b16 %v1132
        %v2688 = vunpack.c.l.b16 %v1133
        %v2689 = vunpack.c.h.b16 %v1133
        %v2690 = vunpack.c.l.b16 %v1134
        %v2691 = vunpack.c.h.b16 %v1134
        %v2692 = vunpack.c.l.b16 %v1135
        %v2693 = vunpack.c.h.b16 %v1135
        %v2694 = vunpack.c.l.b16 %v1136
        %v2695 = vunpack.c.h.b16 %v1136
        %v2696 = vunpack.c.l.b16 %v1137
        %v2697 = vunpack.c.h.b16 %v1137
        %v2698 = vunpack.c.l.b16 %v1138
        %v2699 = vunpack.c.h.b16 %v1138
        %v2700 = vunpack.c.l.b16 %v1139
        %v2701 = vunpack.c.h.b16 %v1139
        %v2702 = vunpack.c.l.b16 %v1140
        %v2703 = vunpack.c.h.b16 %v1140
        %v2704 = vunpack.c.l.b16 %v1141
        %v2705 = vunpack.c.h.b16 %v1141
        %v2706 = vunpack.c.l.b16 %v1142
        %v2707 = vunpack.c.h.b16 %v1142
        %v2708 = vunpack.c.l.b16 %v1143
        %v2709 = vunpack.c.h.b16 %v1143
        %v2710 = vunpack.c.l.b16 %v1144
        %v2711 = vunpack.c.h.b16 %v1144
        %v2712 = vunpack.c.l.b16 %v1145
        %v2713 = vunpack.c.h.b16 %v1145
        %v2714 = vunpack.c.l.b16 %v1146
        %v2715 = vunpack.c.h.b16 %v1146
        %v2716 = vunpack.c.l.b16 %v1147
        %v2717 = vunpack.c.h.b16 %v1147
        %v2718 = vunpack.c.l.b16 %v1148
        %v2719 = vunpack.c.h.b16 %v1148
        %v2720 = vunpack.c.l.b16 %v1149
        %v2721 = vunpack.c.h.b16 %v1149
        %v2722 = vunpack.c.l.b16 %v1150
        %v2723 = vunpack.c.h.b16 %v1150
        %v2724 = vunpack.c.l.b16 %v1151
        %v2725 = vunpack.c.h.b16 %v1151
        %v2726 = vunpack.c.l.b16 %v1152
        %v2727 = vunpack.c.h.b16 %v1152
        %v2728 = vunpack.c.l.b16 %v1153
        %v2729 = vunpack.c.h.b16 %v1153
        %v2730 = vunpack.c.l.b16 %v1154
        %v2731 = vunpack.c.h.b16 %v1154
        %v2732 = vunpack.c.l.b16 %v1155
        %v2733 = vunpack.c.h.b16 %v1155
        %v2734 = vunpack.c.l.b16 %v1156
        %v2735 = vunpack.c.h.b16 %v1156
        %v2736 = vunpack.c.l.b16 %v1157
        %v2737 = vunpack.c.h.b16 %v1157
        %v2738 = vunpack.c.l.b16 %v1158
        %v2739 = vunpack.c.h.b16 %v1158
        %v2740 = vunpack.c.l.b16 %v1159
        %v2741 = vunpack.c.h.b16 %v1159
        %v2742 = vunpack.c.l.b16 %v1160
        %v2743 = vunpack.c.h.b16 %v1160
        %v2744 = vunpack.c.l.b16 %v1161
        %v2745 = vunpack.c.h.b16 %v1161
        %v2746 = vunpack.c.l.b16 %v1162
        %v2747 = vunpack.c.h.b16 %v1162
        %v2748 = vunpack.c.l.b16 %v1163
        %v2749 = vunpack.c.h.b16 %v1163
        %v2750 = vunpack.c.l.b16 %v1164
        %v2751 = vunpack.c.h.b16 %v1164
        %v2752 = vunpack.c.l.b16 %v1165
        %v2753 = vunpack.c.h.b16 %v1165
        %v2754 = vunpack.c.l.b16 %v1166
        %v2755 = vunpack.c.h.b16 %v1166
        %v2756 = vunpack.c.l.b16 %v1167
        %v2757 = vunpack.c.h.b16 %v1167
        %v2758 = vunpack.c.l.b16 %v1168
        %v2759 = vunpack.c.h.b16 %v1168
        %v2760 = vunpack.c.l.b16 %v1169
        %v2761 = vunpack.c.h.b16 %v1169
        %v2762 = vunpack.c.l.b16 %v1170
        %v2763 = vunpack.c.h.b16 %v1170
        %v2764 = vunpack.c.l.b16 %v1171
        %v2765 = vunpack.c.h.b16 %v1171
        %v2766 = vunpack.c.l.b16 %v1172
        %v2767 = vunpack.c.h.b16 %v1172
        %v2768 = vunpack.c.l.b16 %v1173
        %v2769 = vunpack.c.h.b16 %v1173
        %v2770 = vunpack.c.l.b16 %v1174
        %v2771 = vunpack.c.h.b16 %v1174
        %v2772 = vunpack.c.l.b16 %v1175
        %v2773 = vunpack.c.h.b16 %v1175
        %v2774 = vunpack.c.l.b16 %v1176
        %v2775 = vunpack.c.h.b16 %v1176
        %v2776 = vunpack.c.l.b16 %v1177
        %v2777 = vunpack.c.h.b16 %v1177
        %v2778 = vunpack.c.l.b16 %v1178
        %v2779 = vunpack.c.h.b16 %v1178
        %v2780 = vunpack.c.l.b16 %v1179
        %v2781 = vunpack.c.h.b16 %v1179
        %v2782 = vunpack.c.l.b16 %v1180
        %v2783 = vunpack.c.h.b16 %v1180
        %v2784 = vunpack.c.l.b16 %v1181
        %v2785 = vunpack.c.h.b16 %v1181
        %v2786 = vunpack.c.l.b16 %v1182
        %v2787 = vunpack.c.h.b16 %v1182
        %v2788 = vunpack.c.l.b16 %v1183
        %v2789 = vunpack.c.h.b16 %v1183
        %v2790 = vunpack.c.l.b16 %v1184
        %v2791 = vunpack.c.h.b16 %v1184
        %v2792 = vunpack.c.l.b16 %v1185
        %v2793 = vunpack.c.h.b16 %v1185
        %v2794 = vunpack.c.l.b16 %v1186
        %v2795 = vunpack.c.h.b16 %v1186
        %v2796 = vunpack.c.l.b16 %v1187
        %v2797 = vunpack.c.h.b16 %v1187
        %v2798 = vunpack.c.l.b16 %v1188
        %v2799 = vunpack.c.h.b16 %v1188
        %v2800 = vunpack.c.l.b16 %v1189
        %v2801 = vunpack.c.h.b16 %v1189
        %v2802 = vunpack.c.l.b16 %v1190
        %v2803 = vunpack.c.h.b16 %v1190
        %v2804 = vunpack.c.l.b16 %v1191
        %v2805 = vunpack.c.h.b16 %v1191
        %v2806 = vunpack.c.l.b16 %v1192
        %v2807 = vunpack.c.h.b16 %v1192
        %v2808 = vunpack.c.l.b16 %v1193
        %v2809 = vunpack.c.h.b16 %v1193
        %v2810 = vunpack.c.l.b16 %v1194
        %v2811 = vunpack.c.h.b16 %v1194
        %v2812 = vunpack.c.l.b16 %v1195
        %v2813 = vunpack.c.h.b16 %v1195
        %v2814 = vunpack.c.l.b16 %v1196
        %v2815 = vunpack.c.h.b16 %v1196
        %v2816 = vunpack.c.l.b16 %v1197
        %v2817 = vunpack.c.h.b16 %v1197
        %v2818 = vunpack.c.l.b16 %v1198
        %v2819 = vunpack.c.h.b16 %v1198
        %v2820 = vunpack.c.l.b16 %v1199
        %v2821 = vunpack.c.h.b16 %v1199
        %v2822 = vunpack.c.l.b16 %v1200
        %v2823 = vunpack.c.h.b16 %v1200
        %v2824 = vunpack.c.l.b16 %v1201
        %v2825 = vunpack.c.h.b16 %v1201
        %v2826 = vunpack.c.l.b16 %v1202
        %v2827 = vunpack.c.h.b16 %v1202
        %v2828 = vunpack.c.l.b16 %v1203
        %v2829 = vunpack.c.h.b16 %v1203
        %v2830 = vunpack.c.l.b16 %v1204
        %v2831 = vunpack.c.h.b16 %v1204
        %v2832 = vunpack.c.l.b16 %v1205
        %v2833 = vunpack.c.h.b16 %v1205
        %v2834 = vunpack.c.l.b16 %v1206
        %v2835 = vunpack.c.h.b16 %v1206
        %v2836 = vunpack.c.l.b16 %v1207
        %v2837 = vunpack.c.h.b16 %v1207
        %v2838 = vunpack.c.l.b16 %v1208
        %v2839 = vunpack.c.h.b16 %v1208
        %v2840 = vunpack.c.l.b16 %v1209
        %v2841 = vunpack.c.h.b16 %v1209
        %v2842 = vunpack.c.l.b16 %v1210
        %v2843 = vunpack.c.h.b16 %v1210
        %v2844 = vunpack.c.l.b16 %v1211
        %v2845 = vunpack.c.h.b16 %v1211
        %v2846 = vunpack.c.l.b16 %v1212
        %v2847 = vunpack.c.h.b16 %v1212
        %v2848 = vunpack.c.l.b16 %v1213
        %v2849 = vunpack.c.h.b16 %v1213
        %v2850 = vunpack.c.l.b16 %v1214
        %v2851 = vunpack.c.h.b16 %v1214
        %v2852 = vunpack.c.l.b16 %v1215
        %v2853 = vunpack.c.h.b16 %v1215
        %v2854 = vunpack.c.l.b16 %v1216
        %v2855 = vunpack.c.h.b16 %v1216
        %v2856 = vunpack.c.l.b16 %v1217
        %v2857 = vunpack.c.h.b16 %v1217
        %v2858 = vunpack.c.l.b16 %v1218
        %v2859 = vunpack.c.h.b16 %v1218
        %v2860 = vunpack.c.l.b16 %v1219
        %v2861 = vunpack.c.h.b16 %v1219
        %v2862 = vunpack.c.l.b16 %v1220
        %v2863 = vunpack.c.h.b16 %v1220
        %v2864 = vunpack.c.l.b16 %v1221
        %v2865 = vunpack.c.h.b16 %v1221
        %v2866 = vunpack.c.l.b16 %v1222
        %v2867 = vunpack.c.h.b16 %v1222
        %v2868 = vunpack.c.l.b16 %v1223
        %v2869 = vunpack.c.h.b16 %v1223
        %v2870 = vunpack.c.l.b16 %v1224
        %v2871 = vunpack.c.h.b16 %v1224
        %v2872 = vunpack.c.l.b16 %v1225
        %v2873 = vunpack.c.h.b16 %v1225
        %v2874 = vunpack.c.l.b16 %v1226
        %v2875 = vunpack.c.h.b16 %v1226
        %v2876 = vunpack.c.l.b16 %v1227
        %v2877 = vunpack.c.h.b16 %v1227
        %v2878 = vunpack.c.l.b16 %v1228
        %v2879 = vunpack.c.h.b16 %v1228
        %v2880 = vunpack.c.l.b16 %v1229
        %v2881 = vunpack.c.h.b16 %v1229
        %v2882 = vunpack.c.l.b16 %v1230
        %v2883 = vunpack.c.h.b16 %v1230
        %v2884 = vunpack.c.l.b16 %v1231
        %v2885 = vunpack.c.h.b16 %v1231
        %v2886 = vunpack.c.l.b16 %v1232
        %v2887 = vunpack.c.h.b16 %v1232
        %v2888 = vunpack.c.l.b16 %v1233
        %v2889 = vunpack.c.h.b16 %v1233
        %v2890 = vunpack.c.l.b16 %v1234
        %v2891 = vunpack.c.h.b16 %v1234
        %v2892 = vunpack.c.l.b16 %v1235
        %v2893 = vunpack.c.h.b16 %v1235
        %v2894 = vunpack.c.l.b16 %v1236
        %v2895 = vunpack.c.h.b16 %v1236
        %v2896 = vunpack.c.l.b16 %v1237
        %v2897 = vunpack.c.h.b16 %v1237
        %v2898 = vunpack.c.l.b16 %v1238
        %v2899 = vunpack.c.h.b16 %v1238
        %v2900 = vunpack.c.l.b16 %v1239
        %v2901 = vunpack.c.h.b16 %v1239
        %v2902 = vunpack.c.l.b16 %v1240
        %v2903 = vunpack.c.h.b16 %v1240
        %v2904 = vunpack.c.l.b16 %v1241
        %v2905 = vunpack.c.h.b16 %v1241
        %v2906 = vunpack.c.l.b16 %v1242
        %v2907 = vunpack.c.h.b16 %v1242
        %v2908 = vunpack.c.l.b16 %v1243
        %v2909 = vunpack.c.h.b16 %v1243
        %v2910 = vunpack.c.l.b16 %v1244
        %v2911 = vunpack.c.h.b16 %v1244
        %v2912 = vunpack.c.l.b16 %v1245
        %v2913 = vunpack.c.h.b16 %v1245
        %v2914 = vunpack.c.l.b16 %v1246
        %v2915 = vunpack.c.h.b16 %v1246
        %v2916 = vunpack.c.l.b16 %v1247
        %v2917 = vunpack.c.h.b16 %v1247
        %v2918 = vunpack.c.l.b16 %v1248
        %v2919 = vunpack.c.h.b16 %v1248
        %v2920 = vunpack.c.l.b16 %v1249
        %v2921 = vunpack.c.h.b16 %v1249
        %v2922 = vunpack.c.l.b16 %v1250
        %v2923 = vunpack.c.h.b16 %v1250
        %v2924 = vunpack.c.l.b16 %v1251
        %v2925 = vunpack.c.h.b16 %v1251
        %v2926 = vunpack.c.l.b16 %v1252
        %v2927 = vunpack.c.h.b16 %v1252
        %v2928 = vunpack.c.l.b16 %v1253
        %v2929 = vunpack.c.h.b16 %v1253
        %v2930 = vunpack.c.l.b16 %v1254
        %v2931 = vunpack.c.h.b16 %v1254
        %v2932 = vunpack.c.l.b16 %v1255
        %v2933 = vunpack.c.h.b16 %v1255
        %v2934 = vunpack.c.l.b16 %v1256
        %v2935 = vunpack.c.h.b16 %v1256
        %v2936 = vunpack.c.l.b16 %v1257
        %v2937 = vunpack.c.h.b16 %v1257
        %v2938 = vunpack.c.l.b16 %v1258
        %v2939 = vunpack.c.h.b16 %v1258
        %v2940 = vunpack.c.l.b16 %v1259
        %v2941 = vunpack.c.h.b16 %v1259
        %v2942 = vunpack.c.l.b16 %v1260
        %v2943 = vunpack.c.h.b16 %v1260
        %v2944 = vunpack.c.l.b16 %v1261
        %v2945 = vunpack.c.h.b16 %v1261
        %v2946 = vunpack.c.l.b16 %v1262
        %v2947 = vunpack.c.h.b16 %v1262
        %v2948 = vunpack.c.l.b16 %v1263
        %v2949 = vunpack.c.h.b16 %v1263
        %v2950 = vunpack.c.l.b16 %v1264
        %v2951 = vunpack.c.h.b16 %v1264
        %v2952 = vunpack.c.l.b16 %v1265
        %v2953 = vunpack.c.h.b16 %v1265
        %v2954 = vunpack.c.l.b16 %v1266
        %v2955 = vunpack.c.h.b16 %v1266
        %v2956 = vunpack.c.l.b16 %v1267
        %v2957 = vunpack.c.h.b16 %v1267
        %v2958 = vunpack.c.l.b16 %v1268
        %v2959 = vunpack.c.h.b16 %v1268
        %v2960 = vunpack.c.l.b16 %v1269
        %v2961 = vunpack.c.h.b16 %v1269
        %v2962 = vunpack.c.l.b16 %v1270
        %v2963 = vunpack.c.h.b16 %v1270
        %v2964 = vunpack.c.l.b16 %v1271
        %v2965 = vunpack.c.h.b16 %v1271
        %v2966 = vunpack.c.l.b16 %v1272
        %v2967 = vunpack.c.h.b16 %v1272
        %v2968 = vunpack.c.l.b16 %v1273
        %v2969 = vunpack.c.h.b16 %v1273
        %v2970 = vunpack.c.l.b16 %v1274
        %v2971 = vunpack.c.h.b16 %v1274
        %v2972 = vunpack.c.l.b16 %v1275
        %v2973 = vunpack.c.h.b16 %v1275
        %v2974 = vunpack.c.l.b16 %v1276
        %v2975 = vunpack.c.h.b16 %v1276
        %v2976 = vunpack.c.l.b16 %v1277
        %v2977 = vunpack.c.h.b16 %v1277
        %v2978 = vunpack.c.l.b16 %v1278
        %v2979 = vunpack.c.h.b16 %v1278
        %v2980 = vunpack.c.l.b16 %v1279
        %v2981 = vunpack.c.h.b16 %v1279
        %v2982 = vunpack.c.l.b16 %v1280
        %v2983 = vunpack.c.h.b16 %v1280
        %v2984 = vunpack.c.l.b16 %v1281
        %v2985 = vunpack.c.h.b16 %v1281
        %v2986 = vunpack.c.l.b16 %v1282
        %v2987 = vunpack.c.h.b16 %v1282
        %v2988 = vunpack.c.l.b16 %v1283
        %v2989 = vunpack.c.h.b16 %v1283
        %v2990 = vunpack.c.l.b16 %v1284
        %v2991 = vunpack.c.h.b16 %v1284
        %v2992 = vunpack.c.l.b16 %v1285
        %v2993 = vunpack.c.h.b16 %v1285
        %v2994 = vunpack.c.l.b16 %v1286
        %v2995 = vunpack.c.h.b16 %v1286
        %v2996 = vunpack.c.l.b16 %v1287
        %v2997 = vunpack.c.h.b16 %v1287
        %v2998 = vunpack.c.l.b16 %v1288
        %v2999 = vunpack.c.h.b16 %v1288
        %v3000 = vunpack.c.l.b16 %v1289
        %v3001 = vunpack.c.h.b16 %v1289
        %v3002 = vunpack.c.l.b16 %v1290
        %v3003 = vunpack.c.h.b16 %v1290
        %v3004 = vunpack.c.l.b16 %v1291
        %v3005 = vunpack.c.h.b16 %v1291
        %v3006 = vunpack.c.l.b16 %v1292
        %v3007 = vunpack.c.h.b16 %v1292
        %v3008 = vunpack.c.l.b16 %v1293
        %v3009 = vunpack.c.h.b16 %v1293
        %v3010 = vunpack.c.l.b16 %v1294
        %v3011 = vunpack.c.h.b16 %v1294
        %v3012 = vunpack.c.l.b16 %v1295
        %v3013 = vunpack.c.h.b16 %v1295
        %v3014 = vunpack.c.l.b16 %v1296
        %v3015 = vunpack.c.h.b16 %v1296
        %v3016 = vunpack.c.l.b16 %v1297
        %v3017 = vunpack.c.h.b16 %v1297
        %v3018 = vunpack.c.l.b16 %v1298
        %v3019 = vunpack.c.h.b16 %v1298
        %v3020 = vunpack.c.l.b16 %v1299
        %v3021 = vunpack.c.h.b16 %v1299
        %v3022 = vunpack.c.l.b16 %v1300
        %v3023 = vunpack.c.h.b16 %v1300
        %v3024 = vunpack.c.l.b16 %v1301
        %v3025 = vunpack.c.h.b16 %v1301
        %v3026 = vunpack.c.l.b16 %v1302
        %v3027 = vunpack.c.h.b16 %v1302
        %v3028 = vunpack.c.l.b16 %v1303
        %v3029 = vunpack.c.h.b16 %v1303
        %v3030 = vunpack.c.l.b16 %v1304
        %v3031 = vunpack.c.h.b16 %v1304
        %v3032 = vunpack.c.l.b16 %v1305
        %v3033 = vunpack.c.h.b16 %v1305
        %v3034 = vunpack.c.l.b16 %v1306
        %v3035 = vunpack.c.h.b16 %v1306
        %v3036 = vunpack.c.l.b16 %v1307
        %v3037 = vunpack.c.h.b16 %v1307
        %v3038 = vunpack.c.l.b16 %v1308
        %v3039 = vunpack.c.h.b16 %v1308
        %v3040 = vunpack.c.l.b16 %v1309
        %v3041 = vunpack.c.h.b16 %v1309
        %v3042 = vunpack.c.l.b16 %v1310
        %v3043 = vunpack.c.h.b16 %v1310
        %v3044 = vunpack.c.l.b16 %v1311
        %v3045 = vunpack.c.h.b16 %v1311
        %v3046 = vunpack.c.l.b16 %v1312
        %v3047 = vunpack.c.h.b16 %v1312
        %v3048 = vunpack.c.l.b16 %v1313
        %v3049 = vunpack.c.h.b16 %v1313
        %v3050 = vunpack.c.l.b16 %v1314
        %v3051 = vunpack.c.h.b16 %v1314
        %v3052 = vunpack.c.l.b16 %v1315
        %v3053 = vunpack.c.h.b16 %v1315
        %v3054 = vunpack.c.l.b16 %v1316
        %v3055 = vunpack.c.h.b16 %v1316
        %v3056 = vunpack.c.l.b16 %v1317
        %v3057 = vunpack.c.h.b16 %v1317
        %v3058 = vunpack.c.l.b16 %v1318
        %v3059 = vunpack.c.h.b16 %v1318
        %v3060 = vunpack.c.l.b16 %v1319
        %v3061 = vunpack.c.h.b16 %v1319
        %v3062 = vunpack.c.l.b16 %v1320
        %v3063 = vunpack.c.h.b16 %v1320
        %v3064 = vunpack.c.l.b16 %v1321
        %v3065 = vunpack.c.h.b16 %v1321
        %v3066 = vunpack.c.l.b16 %v1322
        %v3067 = vunpack.c.h.b16 %v1322
        %v3068 = vunpack.c.l.b16 %v1323
        %v3069 = vunpack.c.h.b16 %v1323
        %v3070 = vunpack.c.l.b16 %v1324
        %v3071 = vunpack.c.h.b16 %v1324
        %v3072 = vunpack.c.l.b16 %v1325
        %v3073 = vunpack.c.h.b16 %v1325
        %v3074 = vunpack.c.l.b16 %v1326
        %v3075 = vunpack.c.h.b16 %v1326
        %v3076 = vunpack.c.l.b16 %v1327
        %v3077 = vunpack.c.h.b16 %v1327
        %v3078 = vunpack.c.l.b16 %v1328
        %v3079 = vunpack.c.h.b16 %v1328
        %v3080 = vunpack.c.l.b16 %v1329
        %v3081 = vunpack.c.h.b16 %v1329
        %v3082 = vunpack.c.l.b16 %v1330
        %v3083 = vunpack.c.h.b16 %v1330
        %v3084 = vunpack.c.l.b16 %v1331
        %v3085 = vunpack.c.h.b16 %v1331
        %v3086 = vunpack.c.l.b16 %v1332
        %v3087 = vunpack.c.h.b16 %v1332
        %v3088 = vunpack.c.l.b16 %v1333
        %v3089 = vunpack.c.h.b16 %v1333
        %v3090 = vunpack.c.l.b16 %v1334
        %v3091 = vunpack.c.h.b16 %v1334
        %v3092 = vunpack.c.l.b16 %v1335
        %v3093 = vunpack.c.h.b16 %v1335
        %v3094 = vunpack.c.l.b16 %v1336
        %v3095 = vunpack.c.h.b16 %v1336
        %v3096 = vunpack.c.l.b16 %v1337
        %v3097 = vunpack.c.h.b16 %v1337
        %v3098 = vunpack.c.l.b16 %v1338
        %v3099 = vunpack.c.h.b16 %v1338
        %v3100 = vunpack.c.l.b16 %v1339
        %v3101 = vunpack.c.h.b16 %v1339
        %v3102 = vunpack.c.l.b16 %v1340
        %v3103 = vunpack.c.h.b16 %v1340
        %v3104 = vunpack.c.l.b16 %v1341
        %v3105 = vunpack.c.h.b16 %v1341
        %v3106 = vunpack.c.l.b16 %v1342
        %v3107 = vunpack.c.h.b16 %v1342
        %v3108 = vunpack.c.l.b16 %v1343
        %v3109 = vunpack.c.h.b16 %v1343
        %v3110 = vunpack.c.l.b16 %v1344
        %v3111 = vunpack.c.h.b16 %v1344
        %v3112 = vunpack.c.l.b16 %v1345
        %v3113 = vunpack.c.h.b16 %v1345
        %v3114 = vunpack.c.l.b16 %v1346
        %v3115 = vunpack.c.h.b16 %v1346
        %v3116 = vunpack.c.l.b16 %v1347
        %v3117 = vunpack.c.h.b16 %v1347
        %v3118 = vunpack.c.l.b16 %v1348
        %v3119 = vunpack.c.h.b16 %v1348
        %v3120 = vunpack.c.l.b16 %v1349
        %v3121 = vunpack.c.h.b16 %v1349
        %v3122 = vunpack.c.l.b16 %v1350
        %v3123 = vunpack.c.h.b16 %v1350
        %v3124 = vunpack.c.l.b16 %v1351
        %v3125 = vunpack.c.h.b16 %v1351
        %v3126 = vunpack.c.l.b16 %v1352
        %v3127 = vunpack.c.h.b16 %v1352
        %v3128 = vunpack.c.l.b16 %v1353
        %v3129 = vunpack.c.h.b16 %v1353
        %v3130 = vunpack.c.l.b16 %v1354
        %v3131 = vunpack.c.h.b16 %v1354
        %v3132 = vunpack.c.l.b16 %v1355
        %v3133 = vunpack.c.h.b16 %v1355
        %v3134 = vunpack.c.l.b16 %v1356
        %v3135 = vunpack.c.h.b16 %v1356
        %v3136 = vunpack.c.l.b16 %v1357
        %v3137 = vunpack.c.h.b16 %v1357
        %v3138 = vunpack.c.l.b16 %v1358
        %v3139 = vunpack.c.h.b16 %v1358
        %v3140 = vunpack.c.l.b16 %v1359
        %v3141 = vunpack.c.h.b16 %v1359
        %v3142 = vunpack.c.l.b16 %v1360
        %v3143 = vunpack.c.h.b16 %v1360
        %v3144 = vunpack.c.l.b16 %v1361
        %v3145 = vunpack.c.h.b16 %v1361
        %v3146 = vunpack.c.l.b16 %v1362
        %v3147 = vunpack.c.h.b16 %v1362
        %v3148 = vunpack.c.l.b16 %v1363
        %v3149 = vunpack.c.h.b16 %v1363
        %v3150 = vunpack.c.l.b16 %v1364
        %v3151 = vunpack.c.h.b16 %v1364
        %v3152 = vunpack.c.l.b16 %v1365
        %v3153 = vunpack.c.h.b16 %v1365
        %v3154 = vunpack.c.l.b16 %v1366
        %v3155 = vunpack.c.h.b16 %v1366
        %v3156 = vunpack.c.l.b16 %v1367
        %v3157 = vunpack.c.h.b16 %v1367
        %v3158 = vunpack.c.l.b16 %v1368
        %v3159 = vunpack.c.h.b16 %v1368
        %v3160 = vunpack.c.l.b16 %v1369
        %v3161 = vunpack.c.h.b16 %v1369
        %v3162 = vunpack.c.l.b16 %v1370
        %v3163 = vunpack.c.h.b16 %v1370
        %v3164 = vunpack.c.l.b16 %v1371
        %v3165 = vunpack.c.h.b16 %v1371
        %v3166 = vunpack.c.l.b16 %v1372
        %v3167 = vunpack.c.h.b16 %v1372
        %v3168 = vunpack.c.l.b16 %v1373
        %v3169 = vunpack.c.h.b16 %v1373
        %v3170 = vunpack.c.l.b16 %v1374
        %v3171 = vunpack.c.h.b16 %v1374
        %v3172 = vunpack.c.l.b16 %v1375
        %v3173 = vunpack.c.h.b16 %v1375
        %v3174 = vunpack.c.l.b16 %v1376
        %v3175 = vunpack.c.h.b16 %v1376
        %v3176 = vunpack.c.l.b16 %v1377
        %v3177 = vunpack.c.h.b16 %v1377
        %v3178 = vunpack.c.l.b16 %v1378
        %v3179 = vunpack.c.h.b16 %v1378
        %v3180 = vunpack.c.l.b16 %v1379
        %v3181 = vunpack.c.h.b16 %v1379
        %v3182 = vunpack.c.l.b16 %v1380
        %v3183 = vunpack.c.h.b16 %v1380
        %v3184 = vunpack.c.l.b16 %v1381
        %v3185 = vunpack.c.h.b16 %v1381
        %v3186 = vunpack.c.l.b16 %v1382
        %v3187 = vunpack.c.h.b16 %v1382
        %v3188 = vunpack.c.l.b16 %v1383
        %v3189 = vunpack.c.h.b16 %v1383
        %v3190 = vunpack.c.l.b16 %v1384
        %v3191 = vunpack.c.h.b16 %v1384
        %v3192 = vunpack.c.l.b16 %v1385
        %v3193 = vunpack.c.h.b16 %v1385
        %v3194 = vunpack.c.l.b16 %v1386
        %v3195 = vunpack.c.h.b16 %v1386
        %v3196 = vunpack.c.l.b16 %v1387
        %v3197 = vunpack.c.h.b16 %v1387
        %v3198 = vunpack.c.l.b16 %v1388
        %v3199 = vunpack.c.h.b16 %v1388
        %v3200 = vunpack.c.l.b16 %v1389
        %v3201 = vunpack.c.h.b16 %v1389
        %v3202 = vunpack.c.l.b16 %v1390
        %v3203 = vunpack.c.h.b16 %v1390
        %v3204 = vunpack.c.l.b16 %v1391
        %v3205 = vunpack.c.h.b16 %v1391
        %v3206 = vunpack.c.l.b16 %v1392
        %v3207 = vunpack.c.h.b16 %v1392
        %v3208 = vunpack.c.l.b16 %v1393
        %v3209 = vunpack.c.h.b16 %v1393
        %v3210 = vunpack.c.l.b16 %v1394
        %v3211 = vunpack.c.h.b16 %v1394
        %v3212 = vunpack.c.l.b16 %v1395
        %v3213 = vunpack.c.h.b16 %v1395
        %v3214 = vunpack.c.l.b16 %v1396
        %v3215 = vunpack.c.h.b16 %v1396
        %v3216 = vunpack.c.l.b16 %v1397
        %v3217 = vunpack.c.h.b16 %v1397
        %v3218 = vunpack.c.l.b16 %v1398
        %v3219 = vunpack.c.h.b16 %v1398
        %v3220 = vunpack.c.l.b16 %v1399
        %v3221 = vunpack.c.h.b16 %v1399
        %v3222 = vunpack.c.l.b16 %v1400
        %v3223 = vunpack.c.h.b16 %v1400
        %v3224 = vunpack.c.l.b16 %v1401
        %v3225 = vunpack.c.h.b16 %v1401
        %v3226 = vunpack.c.l.b16 %v1402
        %v3227 = vunpack.c.h.b16 %v1402
        %v3228 = vunpack.c.l.b16 %v1403
        %v3229 = vunpack.c.h.b16 %v1403
        %v3230 = vunpack.c.l.b16 %v1404
        %v3231 = vunpack.c.h.b16 %v1404
        %v3232 = vunpack.c.l.b16 %v1405
        %v3233 = vunpack.c.h.b16 %v1405
        %v3234 = vunpack.c.l.b16 %v1406
        %v3235 = vunpack.c.h.b16 %v1406
        %v3236 = vunpack.c.l.b16 %v1407
        %v3237 = vunpack.c.h.b16 %v1407
        %v3238 = vunpack.c.l.b16 %v1408
        %v3239 = vunpack.c.h.b16 %v1408
        %v3240 = vunpack.c.l.b16 %v1409
        %v3241 = vunpack.c.h.b16 %v1409
        %v3242 = vunpack.c.l.b16 %v1410
        %v3243 = vunpack.c.h.b16 %v1410
        %v3244 = vunpack.c.l.b16 %v1411
        %v3245 = vunpack.c.h.b16 %v1411
        %v3246 = vunpack.c.l.b16 %v1412
        %v3247 = vunpack.c.h.b16 %v1412
        %v3248 = vunpack.c.l.b16 %v1413
        %v3249 = vunpack.c.h.b16 %v1413
        %v3250 = vunpack.c.l.b16 %v1414
        %v3251 = vunpack.c.h.b16 %v1414
        %v3252 = vunpack.c.l.b16 %v1415
        %v3253 = vunpack.c.h.b16 %v1415
        %v3254 = vunpack.c.l.b16 %v1416
        %v3255 = vunpack.c.h.b16 %v1416
        %v3256 = vunpack.c.l.b16 %v1417
        %v3257 = vunpack.c.h.b16 %v1417
        %v3258 = vunpack.c.l.b16 %v1418
        %v3259 = vunpack.c.h.b16 %v1418
        %v3260 = vunpack.c.l.b16 %v1419
        %v3261 = vunpack.c.h.b16 %v1419
        %v3262 = vunpack.c.l.b16 %v1420
        %v3263 = vunpack.c.h.b16 %v1420
        %v3264 = vunpack.c.l.b16 %v1421
        %v3265 = vunpack.c.h.b16 %v1421
        %v3266 = vunpack.c.l.b16 %v1422
        %v3267 = vunpack.c.h.b16 %v1422
        %v3268 = vunpack.c.l.b16 %v1423
        %v3269 = vunpack.c.h.b16 %v1423
        %v3270 = vunpack.c.l.b16 %v1424
        %v3271 = vunpack.c.h.b16 %v1424
        %v3272 = vunpack.c.l.b16 %v1425
        %v3273 = vunpack.c.h.b16 %v1425
        %v3274 = vunpack.c.l.b16 %v1426
        %v3275 = vunpack.c.h.b16 %v1426
        %v3276 = vunpack.c.l.b16 %v1427
        %v3277 = vunpack.c.h.b16 %v1427
        %v3278 = vunpack.c.l.b16 %v1428
        %v3279 = vunpack.c.h.b16 %v1428
        %v3280 = vunpack.c.l.b16 %v1429
        %v3281 = vunpack.c.h.b16 %v1429
        %v3282 = vunpack.c.l.b16 %v1430
        %v3283 = vunpack.c.h.b16 %v1430
        %v3284 = vunpack.c.l.b16 %v1431
        %v3285 = vunpack.c.h.b16 %v1431
        %v3286 = vunpack.c.l.b16 %v1432
        %v3287 = vunpack.c.h.b16 %v1432
        %v3288 = vunpack.c.l.b16 %v1433
        %v3289 = vunpack.c.h.b16 %v1433
        %v3290 = vunpack.c.l.b16 %v1434
        %v3291 = vunpack.c.h.b16 %v1434
        %v3292 = vunpack.c.l.b16 %v1435
        %v3293 = vunpack.c.h.b16 %v1435
        %v3294 = vunpack.c.l.b16 %v1436
        %v3295 = vunpack.c.h.b16 %v1436
        %v3296 = vunpack.c.l.b16 %v1437
        %v3297 = vunpack.c.h.b16 %v1437
        %v3298 = vpack.c.b16 %v2244, %v2242
        %v3299 = vpack.c.b16 %v2245, %v2243
        %v3300 = vpack.c.b16 %v2248, %v2246
        %v3301 = vpack.c.b16 %v2249, %v2247
        %v3302 = vpack.c.b16 %v2252, %v2250
        %v3303 = vpack.c.b16 %v2253, %v2251
        %v3304 = vpack.c.b16 %v2256, %v2254
        %v3305 = vpack.c.b16 %v2257, %v2255
        %v3306 = vpack.c.b16 %v2260, %v2258
        %v3307 = vpack.c.b16 %v2261, %v2259
        %v3308 = vpack.c.b16 %v2264, %v2262
        %v3309 = vpack.c.b16 %v2265, %v2263
        %v3310 = vpack.c.b16 %v2268, %v2266
        %v3311 = vpack.c.b16 %v2269, %v2267
        %v3312 = vpack.c.b16 %v2272, %v2270
        %v3313 = vpack.c.b16 %v2273, %v2271
        %v3314 = vpack.c.b16 %v2276, %v2274
        %v3315 = vpack.c.b16 %v2277, %v2275
        %v3316 = vpack.c.b16 %v2280, %v2278
        %v3317 = vpack.c.b16 %v2281, %v2279
        %v3318 = vpack.c.b16 %v2284, %v2282
        %v3319 = vpack.c.b16 %v2285, %v2283
        %v3320 = vpack.c.b16 %v2288, %v2286
        %v3321 = vpack.c.b16 %v2289, %v2287
        %v3322 = vpack.c.b16 %v2292, %v2290
        %v3323 = vpack.c.b16 %v2293, %v2291
        %v3324 = vpack.c.b16 %v2296, %v2294
        %v3325 = vpack.c.b16 %v2297, %v2295
        %v3326 = vpack.c.b16 %v2300, %v2298
        %v3327 = vpack.c.b16 %v2301, %v2299
        %v3328 = vpack.c.b16 %v2304, %v2302
        %v3329 = vpack.c.b16 %v2305, %v2303
        %v3330 = vpack.c.b16 %v2308, %v2306
        %v3331 = vpack.c.b16 %v2309, %v2307
        %v3332 = vpack.c.b16 %v2312, %v2310
        %v3333 = vpack.c.b16 %v2313, %v2311
        %v3334 = vpack.c.b16 %v2316, %v2314
        %v3335 = vpack.c.b16 %v2317, %v2315
        %v3336 = vpack.c.b16 %v2320, %v2318
        %v3337 = vpack.c.b16 %v2321, %v2319
        %v3338 = vpack.c.b16 %v2324, %v2322
        %v3339 = vpack.c.b16 %v2325, %v2323
        %v3340 = vpack.c.b16 %v2328, %v2326
        %v3341 = vpack.c.b16 %v2329, %v2327
        %v3342 = vpack.c.b16 %v2332, %v2330
        %v3343 = vpack.c.b16 %v2333, %v2331
        %v3344 = vpack.c.b16 %v2336, %v2334
        %v3345 = vpack.c.b16 %v2337, %v2335
        %v3346 = vpack.c.b16 %v2340, %v2338
        %v3347 = vpack.c.b16 %v2341, %v2339
        %v3348 = vpack.c.b16 %v2344, %v2342
        %v3349 = vpack.c.b16 %v2345, %v2343
        %v3350 = vpack.c.b16 %v2348, %v2346
        %v3351 = vpack.c.b16 %v2349, %v2347
        %v3352 = vpack.c.b16 %v2352, %v2350
        %v3353 = vpack.c.b16 %v2353, %v2351
        %v3354 = vpack.c.b16 %v2356, %v2354
        %v3355 = vpack.c.b16 %v2357, %v2355
        %v3356 = vpack.c.b16 %v2360, %v2358
        %v3357 = vpack.c.b16 %v2361, %v2359
        %v3358 = vpack.c.b16 %v2364, %v2362
        %v3359 = vpack.c.b16 %v2365, %v2363
        %v3360 = vpack.c.b16 %v2368, %v2366
        %v3361 = vpack.c.b16 %v2369, %v2367
        %v3362 = vpack.c.b16 %v2372, %v2370
        %v3363 = vpack.c.b16 %v2373, %v2371
        %v3364 = vpack.c.b16 %v2376, %v2374
        %v3365 = vpack.c.b16 %v2377, %v2375
        %v3366 = vpack.c.b16 %v2380, %v2378
        %v3367 = vpack.c.b16 %v2381, %v2379
        %v3368 = vpack.c.b16 %v2384, %v2382
        %v3369 = vpack.c.b16 %v2385, %v2383
        %v3370 = vpack.c.b16 %v2388, %v2386
        %v3371 = vpack.c.b16 %v2389, %v2387
        %v3372 = vpack.c.b16 %v2392, %v2390
        %v3373 = vpack.c.b16 %v2393, %v2391
        %v3374 = vpack.c.b16 %v2396, %v2394
        %v3375 = vpack.c.b16 %v2397, %v2395
        %v3376 = vpack.c.b16 %v2400, %v2398
        %v3377 = vpack.c.b16 %v2401, %v2399
        %v3378 = vpack.c.b16 %v2404, %v2402
        %v3379 = vpack.c.b16 %v2405, %v2403
        %v3380 = vpack.c.b16 %v2408, %v2406
        %v3381 = vpack.c.b16 %v2409, %v2407
        %v3382 = vpack.c.b16 %v2412, %v2410
        %v3383 = vpack.c.b16 %v2413, %v2411
        %v3384 = vpack.c.b16 %v2416, %v2414
        %v3385 = vpack.c.b16 %v2417, %v2415
        %v3386 = vpack.c.b16 %v2420, %v2418
        %v3387 = vpack.c.b16 %v2421, %v2419
        %v3388 = vpack.c.b16 %v2424, %v2422
        %v3389 = vpack.c.b16 %v2425, %v2423
        %v3390 = vpack.c.b16 %v2428, %v2426
        %v3391 = vpack.c.b16 %v2429, %v2427
        %v3392 = vpack.c.b16 %v2432, %v2430
        %v3393 = vpack.c.b16 %v2433, %v2431
        %v3394 = vpack.c.b16 %v2436, %v2434
        %v3395 = vpack.c.b16 %v2437, %v2435
        %v3396 = vpack.c.b16 %v2440, %v2438
        %v3397 = vpack.c.b16 %v2441, %v2439
        %v3398 = vpack.c.b16 %v2444, %v2442
        %v3399 = vpack.c.b16 %v2445, %v2443
        %v3400 = vpack.c.b16 %v2448, %v2446
        %v3401 = vpack.c.b16 %v2449, %v2447
        %v3402 = vpack.c.b16 %v2452, %v2450
        %v3403 = vpack.c.b16 %v2453, %v2451
        %v3404 = vpack.c.b16 %v2456, %v2454
        %v3405 = vpack.c.b16 %v2457, %v2455
        %v3406 = vpack.c.b16 %v2460, %v2458
        %v3407 = vpack.c.b16 %v2461, %v2459
        %v3408 = vpack.c.b16 %v2464, %v2462
        %v3409 = vpack.c.b16 %v2465, %v2463
        %v3410 = vpack.c.b16 %v2468, %v2466
        %v3411 = vpack.c.b16 %v2469, %v2467
        %v3412 = vpack.c.b16 %v2472, %v2470
        %v3413 = vpack.c.b16 %v2473, %v2471
        %v3414 = vpack.c.b16 %v2476, %v2474
        %v3415 = vpack.c.b16 %v2477, %v2475
        %v3416 = vpack.c.b16 %v2480, %v2478
        %v3417 = vpack.c.b16 %v2481, %v2479
        %v3418 = vpack.c.b16 %v2484, %v2482
        %v3419 = vpack.c.b16 %v2485, %v2483
        %v3420 = vpack.c.b16 %v2488, %v2486
        %v3421 = vpack.c.b16 %v2489, %v2487
        %v3422 = vpack.c.b16 %v2492, %v2490
        %v3423 = vpack.c.b16 %v2493, %v2491
        %v3424 = vpack.c.b16 %v2496, %v2494
        %v3425 = vpack.c.b16 %v2497, %v2495
        %v3426 = vpack.c.b16 %v2500, %v2498
        %v3427 = vpack.c.b16 %v2501, %v2499
        %v3428 = vpack.c.b16 %v2504, %v2502
        %v3429 = vpack.c.b16 %v2505, %v2503
        %v3430 = vpack.c.b16 %v2508, %v2506
        %v3431 = vpack.c.b16 %v2509, %v2507
        %v3432 = vpack.c.b16 %v2512, %v2510
        %v3433 = vpack.c.b16 %v2513, %v2511
        %v3434 = vpack.c.b16 %v2516, %v2514
        %v3435 = vpack.c.b16 %v2517, %v2515
        %v3436 = vpack.c.b16 %v2520, %v2518
        %v3437 = vpack.c.b16 %v2521, %v2519
        %v3438 = vpack.c.b16 %v2524, %v2522
        %v3439 = vpack.c.b16 %v2525, %v2523
        %v3440 = vpack.c.b16 %v2528, %v2526
        %v3441 = vpack.c.b16 %v2529, %v2527
        %v3442 = vpack.c.b16 %v2532, %v2530
        %v3443 = vpack.c.b16 %v2533, %v2531
        %v3444 = vpack.c.b16 %v2536, %v2534
        %v3445 = vpack.c.b16 %v2537, %v2535
        %v3446 = vpack.c.b16 %v2540, %v2538
        %v3447 = vpack.c.b16 %v2541, %v2539
        %v3448 = vpack.c.b16 %v2544, %v2542
        %v3449 = vpack.c.b16 %v2545, %v2543
        %v3450 = vpack.c.b16 %v2548, %v2546
        %v3451 = vpack.c.b16 %v2549, %v2547
        %v3452 = vpack.c.b16 %v2552, %v2550
        %v3453 = vpack.c.b16 %v2553, %v2551
        %v3454 = vpack.c.b16 %v2556, %v2554
        %v3455 = vpack.c.b16 %v2557, %v2555
        %v3456 = vpack.c.b16 %v2560, %v2558
        %v3457 = vpack.c.b16 %v2561, %v2559
        %v3458 = vpack.c.b16 %v2564, %v2562
        %v3459 = vpack.c.b16 %v2565, %v2563
        %v3460 = vpack.c.b16 %v2568, %v2566
        %v3461 = vpack.c.b16 %v2569, %v2567
        %v3462 = vpack.c.b16 %v2572, %v2570
        %v3463 = vpack.c.b16 %v2573, %v2571
        %v3464 = vpack.c.b16 %v2576, %v2574
        %v3465 = vpack.c.b16 %v2577, %v2575
        %v3466 = vpack.c.b16 %v2580, %v2578
        %v3467 = vpack.c.b16 %v2581, %v2579
        %v3468 = vpack.c.b16 %v2584, %v2582
        %v3469 = vpack.c.b16 %v2585, %v2583
        %v3470 = vpack.c.b16 %v2588, %v2586
        %v3471 = vpack.c.b16 %v2589, %v2587
        %v3472 = vpack.c.b16 %v2592, %v2590
        %v3473 = vpack.c.b16 %v2593, %v2591
        %v3474 = vpack.c.b16 %v2596, %v2594
        %v3475 = vpack.c.b16 %v2597, %v2595
        %v3476 = vpack.c.b16 %v2600, %v2598
        %v3477 = vpack.c.b16 %v2601, %v2599
        %v3478 = vpack.c.b16 %v2604, %v2602
        %v3479 = vpack.c.b16 %v2605, %v2603
        %v3480 = vpack.c.b16 %v2608, %v2606
        %v3481 = vpack.c.b16 %v2609, %v2607
        %v3482 = vpack.c.b16 %v2612, %v2610
        %v3483 = vpack.c.b16 %v2613, %v2611
        %v3484 = vpack.c.b16 %v2616, %v2614
        %v3485 = vpack.c.b16 %v2617, %v2615
        %v3486 = vpack.c.b16 %v2620, %v2618
        %v3487 = vpack.c.b16 %v2621, %v2619
        %v3488 = vpack.c.b16 %v2624, %v2622
        %v3489 = vpack.c.b16 %v2625, %v2623
        %v3490 = vpack.c.b16 %v2628, %v2626
        %v3491 = vpack.c.b16 %v2629, %v2627
        %v3492 = vpack.c.b16 %v2632, %v2630
        %v3493 = vpack.c.b16 %v2633, %v2631
        %v3494 = vpack.c.b16 %v2636, %v2634
        %v3495 = vpack.c.b16 %v2637, %v2635
        %v3496 = vpack.c.b16 %v2640, %v2638
        %v3497 = vpack.c.b16 %v2641, %v2639
        %v3498 = vpack.c.b16 %v2644, %v2642
        %v3499 = vpack.c.b16 %v2645, %v2643
        %v3500 = vpack.c.b16 %v2648, %v2646
        %v3501 = vpack.c.b16 %v2649, %v2647
        %v3502 = vpack.c.b16 %v2652, %v2650
        %v3503 = vpack.c.b16 %v2653, %v2651
        %v3504 = vpack.c.b16 %v2656, %v2654
        %v3505 = vpack.c.b16 %v2657, %v2655
        %v3506 = vpack.c.b16 %v2660, %v2658
        %v3507 = vpack.c.b16 %v2661, %v2659
        %v3508 = vpack.c.b16 %v2664, %v2662
        %v3509 = vpack.c.b16 %v2665, %v2663
        %v3510 = vpack.c.b16 %v2668, %v2666
        %v3511 = vpack.c.b16 %v2669, %v2667
        %v3512 = vpack.c.b16 %v2672, %v2670
        %v3513 = vpack.c.b16 %v2673, %v2671
        %v3514 = vpack.c.b16 %v2676, %v2674
        %v3515 = vpack.c.b16 %v2677, %v2675
        %v3516 = vpack.c.b16 %v2680, %v2678
        %v3517 = vpack.c.b16 %v2681, %v2679
        %v3518 = vpack.c.b16 %v2684, %v2682
        %v3519 = vpack.c.b16 %v2685, %v2683
        %v3520 = vpack.c.b16 %v2688, %v2686
        %v3521 = vpack.c.b16 %v2689, %v2687
        %v3522 = vpack.c.b16 %v2692, %v2690
        %v3523 = vpack.c.b16 %v2693, %v2691
        %v3524 = vpack.c.b16 %v2696, %v2694
        %v3525 = vpack.c.b16 %v2697, %v2695
        %v3526 = vpack.c.b16 %v2700, %v2698
        %v3527 = vpack.c.b16 %v2701, %v2699
        %v3528 = vpack.c.b16 %v2704, %v2702
        %v3529 = vpack.c.b16 %v2705, %v2703
        %v3530 = vpack.c.b16 %v2708, %v2706
        %v3531 = vpack.c.b16 %v2709, %v2707
        %v3532 = vpack.c.b16 %v2712, %v2710
        %v3533 = vpack.c.b16 %v2713, %v2711
        %v3534 = vpack.c.b16 %v2716, %v2714
        %v3535 = vpack.c.b16 %v2717, %v2715
        %v3536 = vpack.c.b16 %v2720, %v2718
        %v3537 = vpack.c.b16 %v2721, %v2719
        %v3538 = vpack.c.b16 %v2724, %v2722
        %v3539 = vpack.c.b16 %v2725, %v2723
        %v3540 = vpack.c.b16 %v2728, %v2726
        %v3541 = vpack.c.b16 %v2729, %v2727
        %v3542 = vpack.c.b16 %v2732, %v2730
        %v3543 = vpack.c.b16 %v2733, %v2731
        %v3544 = vpack.c.b16 %v2736, %v2734
        %v3545 = vpack.c.b16 %v2737, %v2735
        %v3546 = vpack.c.b16 %v2740, %v2738
        %v3547 = vpack.c.b16 %v2741, %v2739
        %v3548 = vpack.c.b16 %v2744, %v2742
        %v3549 = vpack.c.b16 %v2745, %v2743
        %v3550 = vpack.c.b16 %v2748, %v2746
        %v3551 = vpack.c.b16 %v2749, %v2747
        %v3552 = vpack.c.b16 %v2752, %v2750
        %v3553 = vpack.c.b16 %v2753, %v2751
        %v3554 = vpack.c.b16 %v2756, %v2754
        %v3555 = vpack.c.b16 %v2757, %v2755
        %v3556 = vpack.c.b16 %v2760, %v2758
        %v3557 = vpack.c.b16 %v2761, %v2759
        %v3558 = vpack.c.b16 %v2764, %v2762
        %v3559 = vpack.c.b16 %v2765, %v2763
        %v3560 = vpack.c.b16 %v2768, %v2766
        %v3561 = vpack.c.b16 %v2769, %v2767
        %v3562 = vpack.c.b16 %v2772, %v2770
        %v3563 = vpack.c.b16 %v2773, %v2771
        %v3564 = vpack.c.b16 %v2776, %v2774
        %v3565 = vpack.c.b16 %v2777, %v2775
        %v3566 = vpack.c.b16 %v2780, %v2778
        %v3567 = vpack.c.b16 %v2781, %v2779
        %v3568 = vpack.c.b16 %v2784, %v2782
        %v3569 = vpack.c.b16 %v2785, %v2783
        %v3570 = vpack.c.b16 %v2788, %v2786
        %v3571 = vpack.c.b16 %v2789, %v2787
        %v3572 = vpack.c.b16 %v2792, %v2790
        %v3573 = vpack.c.b16 %v2793, %v2791
        %v3574 = vpack.c.b16 %v2796, %v2794
        %v3575 = vpack.c.b16 %v2797, %v2795
        %v3576 = vpack.c.b16 %v2800, %v2798
        %v3577 = vpack.c.b16 %v2801, %v2799
        %v3578 = vpack.c.b16 %v2804, %v2802
        %v3579 = vpack.c.b16 %v2805, %v2803
        %v3580 = vpack.c.b16 %v2808, %v2806
        %v3581 = vpack.c.b16 %v2809, %v2807
        %v3582 = vpack.c.b16 %v2812, %v2810
        %v3583 = vpack.c.b16 %v2813, %v2811
        %v3584 = vpack.c.b16 %v2816, %v2814
        %v3585 = vpack.c.b16 %v2817, %v2815
        %v3586 = vpack.c.b16 %v2820, %v2818
        %v3587 = vpack.c.b16 %v2821, %v2819
        %v3588 = vpack.c.b16 %v2824, %v2822
        %v3589 = vpack.c.b16 %v2825, %v2823
        %v3590 = vpack.c.b16 %v2828, %v2826
        %v3591 = vpack.c.b16 %v2829, %v2827
        %v3592 = vpack.c.b16 %v2832, %v2830
        %v3593 = vpack.c.b16 %v2833, %v2831
        %v3594 = vpack.c.b16 %v2836, %v2834
        %v3595 = vpack.c.b16 %v2837, %v2835
        %v3596 = vpack.c.b16 %v2840, %v2838
        %v3597 = vpack.c.b16 %v2841, %v2839
        %v3598 = vpack.c.b16 %v2844, %v2842
        %v3599 = vpack.c.b16 %v2845, %v2843
        %v3600 = vpack.c.b16 %v2848, %v2846
        %v3601 = vpack.c.b16 %v2849, %v2847
        %v3602 = vpack.c.b16 %v2852, %v2850
        %v3603 = vpack.c.b16 %v2853, %v2851
        %v3604 = vpack.c.b16 %v2856, %v2854
        %v3605 = vpack.c.b16 %v2857, %v2855
        %v3606 = vpack.c.b16 %v2860, %v2858
        %v3607 = vpack.c.b16 %v2861, %v2859
        %v3608 = vpack.c.b16 %v2864, %v2862
        %v3609 = vpack.c.b16 %v2865, %v2863
        %v3610 = vpack.c.b16 %v2868, %v2866
        %v3611 = vpack.c.b16 %v2869, %v2867
        %v3612 = vpack.c.b16 %v2872, %v2870
        %v3613 = vpack.c.b16 %v2873, %v2871
        %v3614 = vpack.c.b16 %v2876, %v2874
        %v3615 = vpack.c.b16 %v2877, %v2875
        %v3616 = vpack.c.b16 %v2880, %v2878
        %v3617 = vpack.c.b16 %v2881, %v2879
        %v3618 = vpack.c.b16 %v2884, %v2882
        %v3619 = vpack.c.b16 %v2885, %v2883
        %v3620 = vpack.c.b16 %v2888, %v2886
        %v3621 = vpack.c.b16 %v2889, %v2887
        %v3622 = vpack.c.b16 %v2892, %v2890
        %v3623 = vpack.c.b16 %v2893, %v2891
        %v3624 = vpack.c.b16 %v2896, %v2894
        %v3625 = vpack.c.b16 %v2897, %v2895
        %v3626 = vpack.c.b16 %v2900, %v2898
        %v3627 = vpack.c.b16 %v2901, %v2899
        %v3628 = vpack.c.b16 %v2904, %v2902
        %v3629 = vpack.c.b16 %v2905, %v2903
        %v3630 = vpack.c.b16 %v2908, %v2906
        %v3631 = vpack.c.b16 %v2909, %v2907
        %v3632 = vpack.c.b16 %v2912, %v2910
        %v3633 = vpack.c.b16 %v2913, %v2911
        %v3634 = vpack.c.b16 %v2916, %v2914
        %v3635 = vpack.c.b16 %v2917, %v2915
        %v3636 = vpack.c.b16 %v2920, %v2918
        %v3637 = vpack.c.b16 %v2921, %v2919
        %v3638 = vpack.c.b16 %v2924, %v2922
        %v3639 = vpack.c.b16 %v2925, %v2923
        %v3640 = vpack.c.b16 %v2928, %v2926
        %v3641 = vpack.c.b16 %v2929, %v2927
        %v3642 = vpack.c.b16 %v2932, %v2930
        %v3643 = vpack.c.b16 %v2933, %v2931
        %v3644 = vpack.c.b16 %v2936, %v2934
        %v3645 = vpack.c.b16 %v2937, %v2935
        %v3646 = vpack.c.b16 %v2940, %v2938
        %v3647 = vpack.c.b16 %v2941, %v2939
        %v3648 = vpack.c.b16 %v2944, %v2942
        %v3649 = vpack.c.b16 %v2945, %v2943
        %v3650 = vpack.c.b16 %v2948, %v2946
        %v3651 = vpack.c.b16 %v2949, %v2947
        %v3652 = vpack.c.b16 %v2952, %v2950
        %v3653 = vpack.c.b16 %v2953, %v2951
        %v3654 = vpack.c.b16 %v2956, %v2954
        %v3655 = vpack.c.b16 %v2957, %v2955
        %v3656 = vpack.c.b16 %v2960, %v2958
        %v3657 = vpack.c.b16 %v2961, %v2959
        %v3658 = vpack.c.b16 %v2964, %v2962
        %v3659 = vpack.c.b16 %v2965, %v2963
        %v3660 = vpack.c.b16 %v2968, %v2966
        %v3661 = vpack.c.b16 %v2969, %v2967
        %v3662 = vpack.c.b16 %v2972, %v2970
        %v3663 = vpack.c.b16 %v2973, %v2971
        %v3664 = vpack.c.b16 %v2976, %v2974
        %v3665 = vpack.c.b16 %v2977, %v2975
        %v3666 = vpack.c.b16 %v2980, %v2978
        %v3667 = vpack.c.b16 %v2981, %v2979
        %v3668 = vpack.c.b16 %v2984, %v2982
        %v3669 = vpack.c.b16 %v2985, %v2983
        %v3670 = vpack.c.b16 %v2988, %v2986
        %v3671 = vpack.c.b16 %v2989, %v2987
        %v3672 = vpack.c.b16 %v2992, %v2990
        %v3673 = vpack.c.b16 %v2993, %v2991
        %v3674 = vpack.c.b16 %v2996, %v2994
        %v3675 = vpack.c.b16 %v2997, %v2995
        %v3676 = vpack.c.b16 %v3000, %v2998
        %v3677 = vpack.c.b16 %v3001, %v2999
        %v3678 = vpack.c.b16 %v3004, %v3002
        %v3679 = vpack.c.b16 %v3005, %v3003
        %v3680 = vpack.c.b16 %v3008, %v3006
        %v3681 = vpack.c.b16 %v3009, %v3007
        %v3682 = vpack.c.b16 %v3012, %v3010
        %v3683 = vpack.c.b16 %v3013, %v3011
        %v3684 = vpack.c.b16 %v3016, %v3014
        %v3685 = vpack.c.b16 %v3017, %v3015
        %v3686 = vpack.c.b16 %v3020, %v3018
        %v3687 = vpack.c.b16 %v3021, %v3019
        %v3688 = vpack.c.b16 %v3024, %v3022
        %v3689 = vpack.c.b16 %v3025, %v3023
        %v3690 = vpack.c.b16 %v3028, %v3026
        %v3691 = vpack.c.b16 %v3029, %v3027
        %v3692 = vpack.c.b16 %v3032, %v3030
        %v3693 = vpack.c.b16 %v3033, %v3031
        %v3694 = vpack.c.b16 %v3036, %v3034
        %v3695 = vpack.c.b16 %v3037, %v3035
        %v3696 = vpack.c.b16 %v3040, %v3038
        %v3697 = vpack.c.b16 %v3041, %v3039
        %v3698 = vpack.c.b16 %v3044, %v3042
        %v3699 = vpack.c.b16 %v3045, %v3043
        %v3700 = vpack.c.b16 %v3048, %v3046
        %v3701 = vpack.c.b16 %v3049, %v3047
        %v3702 = vpack.c.b16 %v3052, %v3050
        %v3703 = vpack.c.b16 %v3053, %v3051
        %v3704 = vpack.c.b16 %v3056, %v3054
        %v3705 = vpack.c.b16 %v3057, %v3055
        %v3706 = vpack.c.b16 %v3060, %v3058
        %v3707 = vpack.c.b16 %v3061, %v3059
        %v3708 = vpack.c.b16 %v3064, %v3062
        %v3709 = vpack.c.b16 %v3065, %v3063
        %v3710 = vpack.c.b16 %v3068, %v3066
        %v3711 = vpack.c.b16 %v3069, %v3067
        %v3712 = vpack.c.b16 %v3072, %v3070
        %v3713 = vpack.c.b16 %v3073, %v3071
        %v3714 = vpack.c.b16 %v3076, %v3074
        %v3715 = vpack.c.b16 %v3077, %v3075
        %v3716 = vpack.c.b16 %v3080, %v3078
        %v3717 = vpack.c.b16 %v3081, %v3079
        %v3718 = vpack.c.b16 %v3084, %v3082
        %v3719 = vpack.c.b16 %v3085, %v3083
        %v3720 = vpack.c.b16 %v3088, %v3086
        %v3721 = vpack.c.b16 %v3089, %v3087
        %v3722 = vpack.c.b16 %v3092, %v3090
        %v3723 = vpack.c.b16 %v3093, %v3091
        %v3724 = vpack.c.b16 %v3096, %v3094
        %v3725 = vpack.c.b16 %v3097, %v3095
        %v3726 = vpack.c.b16 %v3100, %v3098
        %v3727 = vpack.c.b16 %v3101, %v3099
        %v3728 = vpack.c.b16 %v3104, %v3102
        %v3729 = vpack.c.b16 %v3105, %v3103
        %v3730 = vpack.c.b16 %v3108, %v3106
        %v3731 = vpack.c.b16 %v3109, %v3107
        %v3732 = vpack.c.b16 %v3112, %v3110
        %v3733 = vpack.c.b16 %v3113, %v3111
        %v3734 = vpack.c.b16 %v3116, %v3114
        %v3735 = vpack.c.b16 %v3117, %v3115
        %v3736 = vpack.c.b16 %v3120, %v3118
        %v3737 = vpack.c.b16 %v3121, %v3119
        %v3738 = vpack.c.b16 %v3124, %v3122
        %v3739 = vpack.c.b16 %v3125, %v3123
        %v3740 = vpack.c.b16 %v3128, %v3126
        %v3741 = vpack.c.b16 %v3129, %v3127
        %v3742 = vpack.c.b16 %v3132, %v3130
        %v3743 = vpack.c.b16 %v3133, %v3131
        %v3744 = vpack.c.b16 %v3136, %v3134
        %v3745 = vpack.c.b16 %v3137, %v3135
        %v3746 = vpack.c.b16 %v3140, %v3138
        %v3747 = vpack.c.b16 %v3141, %v3139
        %v3748 = vpack.c.b16 %v3144, %v3142
        %v3749 = vpack.c.b16 %v3145, %v3143
        %v3750 = vpack.c.b16 %v3148, %v3146
        %v3751 = vpack.c.b16 %v3149, %v3147
        %v3752 = vpack.c.b16 %v3152, %v3150
        %v3753 = vpack.c.b16 %v3153, %v3151
        %v3754 = vpack.c.b16 %v3156, %v3154
        %v3755 = vpack.c.b16 %v3157, %v3155
        %v3756 = vpack.c.b16 %v3160, %v3158
        %v3757 = vpack.c.b16 %v3161, %v3159
        %v3758 = vpack.c.b16 %v3164, %v3162
        %v3759 = vpack.c.b16 %v3165, %v3163
        %v3760 = vpack.c.b16 %v3168, %v3166
        %v3761 = vpack.c.b16 %v3169, %v3167
        %v3762 = vpack.c.b16 %v3172, %v3170
        %v3763 = vpack.c.b16 %v3173, %v3171
        %v3764 = vpack.c.b16 %v3176, %v3174
        %v3765 = vpack.c.b16 %v3177, %v3175
        %v3766 = vpack.c.b16 %v3180, %v3178
        %v3767 = vpack.c.b16 %v3181, %v3179
        %v3768 = vpack.c.b16 %v3184, %v3182
        %v3769 = vpack.c.b16 %v3185, %v3183
        %v3770 = vpack.c.b16 %v3188, %v3186
        %v3771 = vpack.c.b16 %v3189, %v3187
        %v3772 = vpack.c.b16 %v3192, %v3190
        %v3773 = vpack.c.b16 %v3193, %v3191
        %v3774 = vpack.c.b16 %v3196, %v3194
        %v3775 = vpack.c.b16 %v3197, %v3195
        %v3776 = vpack.c.b16 %v3200, %v3198
        %v3777 = vpack.c.b16 %v3201, %v3199
        %v3778 = vpack.c.b16 %v3204, %v3202
        %v3779 = vpack.c.b16 %v3205, %v3203
        %v3780 = vpack.c.b16 %v3208, %v3206
        %v3781 = vpack.c.b16 %v3209, %v3207
        %v3782 = vpack.c.b16 %v3212, %v3210
        %v3783 = vpack.c.b16 %v3213, %v3211
        %v3784 = vpack.c.b16 %v3216, %v3214
        %v3785 = vpack.c.b16 %v3217, %v3215
        %v3786 = vpack.c.b16 %v3220, %v3218
        %v3787 = vpack.c.b16 %v3221, %v3219
        %v3788 = vpack.c.b16 %v3224, %v3222
        %v3789 = vpack.c.b16 %v3225, %v3223
        %v3790 = vpack.c.b16 %v3228, %v3226
        %v3791 = vpack.c.b16 %v3229, %v3227
        %v3792 = vpack.c.b16 %v3232, %v3230
        %v3793 = vpack.c.b16 %v3233, %v3231
        %v3794 = vpack.c.b16 %v3236, %v3234
        %v3795 = vpack.c.b16 %v3237, %v3235
        %v3796 = vpack.c.b16 %v3240, %v3238
        %v3797 = vpack.c.b16 %v3241, %v3239
        %v3798 = vpack.c.b16 %v3244, %v3242
        %v3799 = vpack.c.b16 %v3245, %v3243
        %v3800 = vpack.c.b16 %v3248, %v3246
        %v3801 = vpack.c.b16 %v3249, %v3247
        %v3802 = vpack.c.b16 %v3252, %v3250
        %v3803 = vpack.c.b16 %v3253, %v3251
        %v3804 = vpack.c.b16 %v3256, %v3254
        %v3805 = vpack.c.b16 %v3257, %v3255
        %v3806 = vpack.c.b16 %v3260, %v3258
        %v3807 = vpack.c.b16 %v3261, %v3259
        %v3808 = vpack.c.b16 %v3264, %v3262
        %v3809 = vpack.c.b16 %v3265, %v3263
        %v3810 = vpack.c.b16 %v3268, %v3266
        %v3811 = vpack.c.b16 %v3269, %v3267
        %v3812 = vpack.c.b16 %v3272, %v3270
        %v3813 = vpack.c.b16 %v3273, %v3271
        %v3814 = vpack.c.b16 %v3276, %v3274
        %v3815 = vpack.c.b16 %v3277, %v3275
        %v3816 = vpack.c.b16 %v3280, %v3278
        %v3817 = vpack.c.b16 %v3281, %v3279
        %v3818 = vpack.c.b16 %v3284, %v3282
        %v3819 = vpack.c.b16 %v3285, %v3283
        %v3820 = vpack.c.b16 %v3288, %v3286
        %v3821 = vpack.c.b16 %v3289, %v3287
        %v3822 = vpack.c.b16 %v3292, %v3290
        %v3823 = vpack.c.b16 %v3293, %v3291
        %v3824 = vpack.c.b16 %v3296, %v3294
        %v3825 = vpack.c.b16 %v3297, %v3295
        %4354 = vmatprep.subr.bf16.mxu0 %v3299
        %4355 = vmatpush1.bf16.msra.mxu0 %v3298
        %4356 = vmatprep.subr.bf16.mxu0 %v3301
        %4357 = vmatpush1.bf16.msra.mxu0 %v3300
        %4358 = vmatprep.subr.bf16.mxu0 %v3303
        %4359 = vmatpush1.bf16.msra.mxu0 %v3302
        %4360 = vmatprep.subr.bf16.mxu0 %v3305
        %4361 = vmatpush1.bf16.msra.mxu0 %v3304
        %4362 = vmatprep.subr.bf16.mxu0 %v3307
        %4363 = vmatpush1.bf16.msra.mxu0 %v3306
        %4364 = vmatprep.subr.bf16.mxu0 %v3309
        %4365 = vmatpush1.bf16.msra.mxu0 %v3308
        %4366 = vmatprep.subr.bf16.mxu0 %v3311
        %4367 = vmatpush1.bf16.msra.mxu0 %v3310
        %4368 = vmatprep.subr.bf16.mxu0 %v3313
        %4369 = vmatpush1.bf16.msra.mxu0 %v3312
        %4370 = vmatprep.subr.bf16.mxu0 %v3315
        %4371 = vmatpush1.bf16.msra.mxu0 %v3314
        %4372 = vmatprep.subr.bf16.mxu0 %v3317
        %4373 = vmatpush1.bf16.msra.mxu0 %v3316
        %4374 = vmatprep.subr.bf16.mxu0 %v3319
        %4375 = vmatpush1.bf16.msra.mxu0 %v3318
        %4376 = vmatprep.subr.bf16.mxu0 %v3321
        %4377 = vmatpush1.bf16.msra.mxu0 %v3320
        %4378 = vmatprep.subr.bf16.mxu0 %v3323
        %4379 = vmatpush1.bf16.msra.mxu0 %v3322
        %4380 = vmatprep.subr.bf16.mxu0 %v3325
        %4381 = vmatpush1.bf16.msra.mxu0 %v3324
        %4382 = vmatprep.subr.bf16.mxu0 %v3327
        %4383 = vmatpush1.bf16.msra.mxu0 %v3326
        %4384 = vmatprep.subr.bf16.mxu0 %v3329
        %4385 = vmatpush1.bf16.msra.mxu0 %v3328
        %4386 = vmatprep.mubr.bf16.mxu0 %v1440
        %4387 = vmatmul.mubr.bf16.gmra.mrb[0].mxu0 %v1439
        %v4388 = vpop.f32.mrb[0].mxu0
        %v4389 = vadd.f32 %v1707, %v4388
        %v4390 = vpop.f32.mrb[0].mxu0
        %v4391 = vadd.f32 %v1711, %v4390
        %v4392 = vpop.f32.mrb[0].mxu0
        %v4393 = vadd.f32 %v1707, %v4392
        %v4394 = vpop.f32.mrb[0].mxu0
        %v4395 = vadd.f32 %v1711, %v4394
        %4396 = vmatprep.mubr.bf16.mxu0 %v1473
        %4397 = vmatmul.mubr.bf16.gmra.mrb[0].mxu0 %v1472
        %v4398 = vpop.f32.mrb[0].mxu0
        %v4399 = vadd.f32 %v1707, %v4398
        %v4400 = vpop.f32.mrb[0].mxu0
        %v4401 = vadd.f32 %v1711, %v4400
        %v4402 = vpop.f32.mrb[0].mxu0
        %v4403 = vadd.f32 %v1707, %v4402
        %v4404 = vpop.f32.mrb[0].mxu0
        %v4405 = vadd.f32 %v1711, %v4404
        %4406 = vmatprep.mubr.bf16.mxu0 %v1506
        %4407 = vmatmul.mubr.bf16.gmra.mrb[0].mxu0 %v1505
        %v4408 = vpop.f32.mrb[0].mxu0
        %v4409 = vadd.f32 %v1707, %v4408
        %v4410 = vpop.f32.mrb[0].mxu0
        %v4411 = vadd.f32 %v1711, %v4410
        %v4412 = vpop.f32.mrb[0].mxu0
        %v4413 = vadd.f32 %v1707, %v4412
        %v4414 = vpop.f32.mrb[0].mxu0
        %v4415 = vadd.f32 %v1711, %v4414
        %4416 = vmatprep.mubr.bf16.mxu0 %v1539
        %4417 = vmatmul.mubr.bf16.gmra.mrb[0].mxu0 %v1538
        %v4418 = vpop.f32.mrb[0].mxu0
        %v4419 = vadd.f32 %v1707, %v4418
        %v4420 = vpop.f32.mrb[0].mxu0
        %v4421 = vadd.f32 %v1711, %v4420
        %v4422 = vpop.f32.mrb[0].mxu0
        %v4423 = vadd.f32 %v1707, %v4422
        %v4424 = vpop.f32.mrb[0].mxu0
        %v4425 = vadd.f32 %v1711, %v4424
        %4426 = vmatprep.mubr.bf16.mxu0 %v1572
        %4427 = vmatmul.mubr.bf16.gmra.mrb[0].mxu0 %v1571
        %v4428 = vpop.f32.mrb[0].mxu0
        %v4429 = vadd.f32 %v1707, %v4428
        %v4430 = vpop.f32.mrb[0].mxu0
        %v4431 = vadd.f32 %v1711, %v4430
        %v4432 = vpop.f32.mrb[0].mxu0
        %v4433 = vadd.f32 %v1707, %v4432
        %v4434 = vpop.f32.mrb[0].mxu0
        %v4435 = vadd.f32 %v1711, %v4434
        %4436 = vmatprep.mubr.bf16.mxu0 %v1605
        %4437 = vmatmul.mubr.bf16.gmra.mrb[0].mxu0 %v1604
        %v4438 = vpop.f32.mrb[0].mxu0
        %v4439 = vadd.f32 %v1707, %v4438
        %v4440 = vpop.f32.mrb[0].mxu0
        %v4441 = vadd.f32 %v1711, %v4440
        %v4442 = vpop.f32.mrb[0].mxu0
        %v4443 = vadd.f32 %v1707, %v4442
        %v4444 = vpop.f32.mrb[0].mxu0
        %v4445 = vadd.f32 %v1711, %v4444
        %4446 = vmatprep.mubr.bf16.mxu0 %v1638
        %4447 = vmatmul.mubr.bf16.gmra.mrb[0].mxu0 %v1637
        %v4448 = vpop.f32.mrb[0].mxu0
        %v4449 = vadd.f32 %v1707, %v4448
        %v4450 = vpop.f32.mrb[0].mxu0
        %v4451 = vadd.f32 %v1711, %v4450
        %v4452 = vpop.f32.mrb[0].mxu0
        %v4453 = vadd.f32 %v1707, %v4452
        %v4454 = vpop.f32.mrb[0].mxu0
        %v4455 = vadd.f32 %v1711, %v4454
        %4456 = vmatprep.mubr.bf16.mxu0 %v1671
        %4457 = vmatmul.mubr.bf16.gmra.mrb[0].mxu0 %v1670
        %v4458 = vpop.f32.mrb[0].mxu0
        %v4459 = vadd.f32 %v1707, %v4458
        %v4460 = vpop.f32.mrb[0].mxu0
        %v4461 = vadd.f32 %v1711, %v4460
        %v4462 = vpop.f32.mrb[0].mxu0
        %v4463 = vadd.f32 %v1707, %v4462
        %v4464 = vpop.f32.mrb[0].mxu0
        %v4465 = vadd.f32 %v1711, %v4464
        %4466 = vdwg.mxu0
        %4467 = vmatprep.subr.bf16.mxu0 %v3331
        %4468 = vmatpush1.bf16.msra.mxu0 %v3330
        %4469 = vmatprep.subr.bf16.mxu0 %v3333
        %4470 = vmatpush1.bf16.msra.mxu0 %v3332
        %4471 = vmatprep.subr.bf16.mxu0 %v3335
        %4472 = vmatpush1.bf16.msra.mxu0 %v3334
        %4473 = vmatprep.subr.bf16.mxu0 %v3337
        %4474 = vmatpush1.bf16.msra.mxu0 %v3336
        %4475 = vmatprep.subr.bf16.mxu0 %v3339
        %4476 = vmatpush1.bf16.msra.mxu0 %v3338
        %4477 = vmatprep.subr.bf16.mxu0 %v3341
        %4478 = vmatpush1.bf16.msra.mxu0 %v3340
        %4479 = vmatprep.subr.bf16.mxu0 %v3343
        %4480 = vmatpush1.bf16.msra.mxu0 %v3342
        %4481 = vmatprep.subr.bf16.mxu0 %v3345
        %4482 = vmatpush1.bf16.msra.mxu0 %v3344
        %4483 = vmatprep.subr.bf16.mxu0 %v3347
        %4484 = vmatpush1.bf16.msra.mxu0 %v3346
        %4485 = vmatprep.subr.bf16.mxu0 %v3349
        %4486 = vmatpush1.bf16.msra.mxu0 %v3348
        %4487 = vmatprep.subr.bf16.mxu0 %v3351
        %4488 = vmatpush1.bf16.msra.mxu0 %v3350
        %4489 = vmatprep.subr.bf16.mxu0 %v3353
        %4490 = vmatpush1.bf16.msra.mxu0 %v3352
        %4491 = vmatprep.subr.bf16.mxu0 %v3355
        %4492 = vmatpush1.bf16.msra.mxu0 %v3354
        %4493 = vmatprep.subr.bf16.mxu0 %v3357
        %4494 = vmatpush1.bf16.msra.mxu0 %v3356
        %4495 = vmatprep.subr.bf16.mxu0 %v3359
        %4496 = vmatpush1.bf16.msra.mxu0 %v3358
        %4497 = vmatprep.subr.bf16.mxu0 %v3361
        %4498 = vmatpush1.bf16.msra.mxu0 %v3360
        %4499 = vmatprep.mubr.bf16.mxu0 %v1442
        %4500 = vmatmul.mubr.bf16.gmra.mrb[0].mxu0 %v1441
        %v4501 = vpop.f32.mrb[0].mxu0
        %v4502 = vadd.f32 %v4389, %v4501
        %v4503 = vpop.f32.mrb[0].mxu0
        %v4504 = vadd.f32 %v4391, %v4503
        %v4505 = vpop.f32.mrb[0].mxu0
        %v4506 = vadd.f32 %v4393, %v4505
        %v4507 = vpop.f32.mrb[0].mxu0
        %v4508 = vadd.f32 %v4395, %v4507
        %4509 = vmatprep.mubr.bf16.mxu0 %v1475
        %4510 = vmatmul.mubr.bf16.gmra.mrb[0].mxu0 %v1474
        %v4511 = vpop.f32.mrb[0].mxu0
        %v4512 = vadd.f32 %v4399, %v4511
        %v4513 = vpop.f32.mrb[0].mxu0
        %v4514 = vadd.f32 %v4401, %v4513
        %v4515 = vpop.f32.mrb[0].mxu0
        %v4516 = vadd.f32 %v4403, %v4515
        %v4517 = vpop.f32.mrb[0].mxu0
        %v4518 = vadd.f32 %v4405, %v4517
        %4519 = vmatprep.mubr.bf16.mxu0 %v1508
        %4520 = vmatmul.mubr.bf16.gmra.mrb[0].mxu0 %v1507
        %v4521 = vpop.f32.mrb[0].mxu0
        %v4522 = vadd.f32 %v4409, %v4521
        %v4523 = vpop.f32.mrb[0].mxu0
        %v4524 = vadd.f32 %v4411, %v4523
        %v4525 = vpop.f32.mrb[0].mxu0
        %v4526 = vadd.f32 %v4413, %v4525
        %v4527 = vpop.f32.mrb[0].mxu0
        %v4528 = vadd.f32 %v4415, %v4527
        %4529 = vmatprep.mubr.bf16.mxu0 %v1541
        %4530 = vmatmul.mubr.bf16.gmra.mrb[0].mxu0 %v1540
        %v4531 = vpop.f32.mrb[0].mxu0
        %v4532 = vadd.f32 %v4419, %v4531
        %v4533 = vpop.f32.mrb[0].mxu0
        %v4534 = vadd.f32 %v4421, %v4533
        %v4535 = vpop.f32.mrb[0].mxu0
        %v4536 = vadd.f32 %v4423, %v4535
        %v4537 = vpop.f32.mrb[0].mxu0
        %v4538 = vadd.f32 %v4425, %v4537
        %4539 = vmatprep.mubr.bf16.mxu0 %v1574
        %4540 = vmatmul.mubr.bf16.gmra.mrb[0].mxu0 %v1573
        %v4541 = vpop.f32.mrb[0].mxu0
        %v4542 = vadd.f32 %v4429, %v4541
        %v4543 = vpop.f32.mrb[0].mxu0
        %v4544 = vadd.f32 %v4431, %v4543
        %v4545 = vpop.f32.mrb[0].mxu0
        %v4546 = vadd.f32 %v4433, %v4545
        %v4547 = vpop.f32.mrb[0].mxu0
        %v4548 = vadd.f32 %v4435, %v4547
        %4549 = vmatprep.mubr.bf16.mxu0 %v1607
        %4550 = vmatmul.mubr.bf16.gmra.mrb[0].mxu0 %v1606
        %v4551 = vpop.f32.mrb[0].mxu0
        %v4552 = vadd.f32 %v4439, %v4551
        %v4553 = vpop.f32.mrb[0].mxu0
        %v4554 = vadd.f32 %v4441, %v4553
        %v4555 = vpop.f32.mrb[0].mxu0
        %v4556 = vadd.f32 %v4443, %v4555
        %v4557 = vpop.f32.mrb[0].mxu0
        %v4558 = vadd.f32 %v4445, %v4557
        %4559 = vmatprep.mubr.bf16.mxu0 %v1640
        %4560 = vmatmul.mubr.bf16.gmra.mrb[0].mxu0 %v1639
        %v4561 = vpop.f32.mrb[0].mxu0
        %v4562 = vadd.f32 %v4449, %v4561
        %v4563 = vpop.f32.mrb[0].mxu0
        %v4564 = vadd.f32 %v4451, %v4563
        %v4565 = vpop.f32.mrb[0].mxu0
        %v4566 = vadd.f32 %v4453, %v4565
        %v4567 = vpop.f32.mrb[0].mxu0
        %v4568 = vadd.f32 %v4455, %v4567
        %4569 = vmatprep.mubr.bf16.mxu0 %v1673
        %4570 = vmatmul.mubr.bf16.gmra.mrb[0].mxu0 %v1672
        %v4571 = vpop.f32.mrb[0].mxu0
        %v4572 = vadd.f32 %v4459, %v4571
        %v4573 = vpop.f32.mrb[0].mxu0
        %v4574 = vadd.f32 %v4461, %v4573
        %v4575 = vpop.f32.mrb[0].mxu0
        %v4576 = vadd.f32 %v4463, %v4575
        %v4577 = vpop.f32.mrb[0].mxu0
        %v4578 = vadd.f32 %v4465, %v4577
        %4579 = vdwg.mxu0
        %4580 = vmatprep.subr.bf16.mxu0 %v3363
        %4581 = vmatpush1.bf16.msra.mxu0 %v3362
        %4582 = vmatprep.subr.bf16.mxu0 %v3365
        %4583 = vmatpush1.bf16.msra.mxu0 %v3364
        %4584 = vmatprep.subr.bf16.mxu0 %v3367
        %4585 = vmatpush1.bf16.msra.mxu0 %v3366
        %4586 = vmatprep.subr.bf16.mxu0 %v3369
        %4587 = vmatpush1.bf16.msra.mxu0 %v3368
        %4588 = vmatprep.subr.bf16.mxu0 %v3371
        %4589 = vmatpush1.bf16.msra.mxu0 %v3370
        %4590 = vmatprep.subr.bf16.mxu0 %v3373
        %4591 = vmatpush1.bf16.msra.mxu0 %v3372
        %4592 = vmatprep.subr.bf16.mxu0 %v3375
        %4593 = vmatpush1.bf16.msra.mxu0 %v3374
        %4594 = vmatprep.subr.bf16.mxu0 %v3377
        %4595 = vmatpush1.bf16.msra.mxu0 %v3376
        %4596 = vmatprep.subr.bf16.mxu0 %v3379
        %4597 = vmatpush1.bf16.msra.mxu0 %v3378
        %4598 = vmatprep.subr.bf16.mxu0 %v3381
        %4599 = vmatpush1.bf16.msra.mxu0 %v3380
        %4600 = vmatprep.subr.bf16.mxu0 %v3383
        %4601 = vmatpush1.bf16.msra.mxu0 %v3382
        %4602 = vmatprep.subr.bf16.mxu0 %v3385
        %4603 = vmatpush1.bf16.msra.mxu0 %v3384
        %4604 = vmatprep.subr.bf16.mxu0 %v3387
        %4605 = vmatpush1.bf16.msra.mxu0 %v3386
        %4606 = vmatprep.subr.bf16.mxu0 %v3389
        %4607 = vmatpush1.bf16.msra.mxu0 %v3388
        %4608 = vmatprep.subr.bf16.mxu0 %v3391
        %4609 = vmatpush1.bf16.msra.mxu0 %v3390
        %4610 = vmatprep.subr.bf16.mxu0 %v3393
        %4611 = vmatpush1.bf16.msra.mxu0 %v3392
        %4612 = vmatprep.mubr.bf16.mxu0 %v1444
        %4613 = vmatmul.mubr.bf16.gmra.mrb[0].mxu0 %v1443
        %v4614 = vpop.f32.mrb[0].mxu0
        %v4615 = vadd.f32 %v4502, %v4614
        %v4616 = vpop.f32.mrb[0].mxu0
        %v4617 = vadd.f32 %v4504, %v4616
        %v4618 = vpop.f32.mrb[0].mxu0
        %v4619 = vadd.f32 %v4506, %v4618
        %v4620 = vpop.f32.mrb[0].mxu0
        %v4621 = vadd.f32 %v4508, %v4620
        %4622 = vmatprep.mubr.bf16.mxu0 %v1477
        %4623 = vmatmul.mubr.bf16.gmra.mrb[0].mxu0 %v1476
        %v4624 = vpop.f32.mrb[0].mxu0
        %v4625 = vadd.f32 %v4512, %v4624
        %v4626 = vpop.f32.mrb[0].mxu0
        %v4627 = vadd.f32 %v4514, %v4626
        %v4628 = vpop.f32.mrb[0].mxu0
        %v4629 = vadd.f32 %v4516, %v4628
        %v4630 = vpop.f32.mrb[0].mxu0
        %v4631 = vadd.f32 %v4518, %v4630
        %4632 = vmatprep.mubr.bf16.mxu0 %v1510
        %4633 = vmatmul.mubr.bf16.gmra.mrb[0].mxu0 %v1509
        %v4634 = vpop.f32.mrb[0].mxu0
        %v4635 = vadd.f32 %v4522, %v4634
        %v4636 = vpop.f32.mrb[0].mxu0
        %v4637 = vadd.f32 %v4524, %v4636
        %v4638 = vpop.f32.mrb[0].mxu0
        %v4639 = vadd.f32 %v4526, %v4638
        %v4640 = vpop.f32.mrb[0].mxu0
        %v4641 = vadd.f32 %v4528, %v4640
        %4642 = vmatprep.mubr.bf16.mxu0 %v1543
        %4643 = vmatmul.mubr.bf16.gmra.mrb[0].mxu0 %v1542
        %v4644 = vpop.f32.mrb[0].mxu0
        %v4645 = vadd.f32 %v4532, %v4644
        %v4646 = vpop.f32.mrb[0].mxu0
        %v4647 = vadd.f32 %v4534, %v4646
        %v4648 = vpop.f32.mrb[0].mxu0
        %v4649 = vadd.f32 %v4536, %v4648
        %v4650 = vpop.f32.mrb[0].mxu0
        %v4651 = vadd.f32 %v4538, %v4650
        %4652 = vmatprep.mubr.bf16.mxu0 %v1576
        %4653 = vmatmul.mubr.bf16.gmra.mrb[0].mxu0 %v1575
        %v4654 = vpop.f32.mrb[0].mxu0
        %v4655 = vadd.f32 %v4542, %v4654
        %v4656 = vpop.f32.mrb[0].mxu0
        %v4657 = vadd.f32 %v4544, %v4656
        %v4658 = vpop.f32.mrb[0].mxu0
        %v4659 = vadd.f32 %v4546, %v4658
        %v4660 = vpop.f32.mrb[0].mxu0
        %v4661 = vadd.f32 %v4548, %v4660
        %4662 = vmatprep.mubr.bf16.mxu0 %v1609
        %4663 = vmatmul.mubr.bf16.gmra.mrb[0].mxu0 %v1608
        %v4664 = vpop.f32.mrb[0].mxu0
        %v4665 = vadd.f32 %v4552, %v4664
        %v4666 = vpop.f32.mrb[0].mxu0
        %v4667 = vadd.f32 %v4554, %v4666
        %v4668 = vpop.f32.mrb[0].mxu0
        %v4669 = vadd.f32 %v4556, %v4668
        %v4670 = vpop.f32.mrb[0].mxu0
        %v4671 = vadd.f32 %v4558, %v4670
        %4672 = vmatprep.mubr.bf16.mxu0 %v1642
        %4673 = vmatmul.mubr.bf16.gmra.mrb[0].mxu0 %v1641
        %v4674 = vpop.f32.mrb[0].mxu0
        %v4675 = vadd.f32 %v4562, %v4674
        %v4676 = vpop.f32.mrb[0].mxu0
        %v4677 = vadd.f32 %v4564, %v4676
        %v4678 = vpop.f32.mrb[0].mxu0
        %v4679 = vadd.f32 %v4566, %v4678
        %v4680 = vpop.f32.mrb[0].mxu0
        %v4681 = vadd.f32 %v4568, %v4680
        %4682 = vmatprep.mubr.bf16.mxu0 %v1675
        %4683 = vmatmul.mubr.bf16.gmra.mrb[0].mxu0 %v1674
        %v4684 = vpop.f32.mrb[0].mxu0
        %v4685 = vadd.f32 %v4572, %v4684
        %v4686 = vpop.f32.mrb[0].mxu0
        %v4687 = vadd.f32 %v4574, %v4686
        %v4688 = vpop.f32.mrb[0].mxu0
        %v4689 = vadd.f32 %v4576, %v4688
        %v4690 = vpop.f32.mrb[0].mxu0
        %v4691 = vadd.f32 %v4578, %v4690
        %4692 = vdwg.mxu0
        %4693 = vmatprep.subr.bf16.mxu0 %v3395
        %4694 = vmatpush1.bf16.msra.mxu0 %v3394
        %4695 = vmatprep.subr.bf16.mxu0 %v3397
        %4696 = vmatpush1.bf16.msra.mxu0 %v3396
        %4697 = vmatprep.subr.bf16.mxu0 %v3399
        %4698 = vmatpush1.bf16.msra.mxu0 %v3398
        %4699 = vmatprep.subr.bf16.mxu0 %v3401
        %4700 = vmatpush1.bf16.msra.mxu0 %v3400
        %4701 = vmatprep.subr.bf16.mxu0 %v3403
        %4702 = vmatpush1.bf16.msra.mxu0 %v3402
        %4703 = vmatprep.subr.bf16.mxu0 %v3405
        %4704 = vmatpush1.bf16.msra.mxu0 %v3404
        %4705 = vmatprep.subr.bf16.mxu0 %v3407
        %4706 = vmatpush1.bf16.msra.mxu0 %v3406
        %4707 = vmatprep.subr.bf16.mxu0 %v3409
        %4708 = vmatpush1.bf16.msra.mxu0 %v3408
        %4709 = vmatprep.subr.bf16.mxu0 %v3411
        %4710 = vmatpush1.bf16.msra.mxu0 %v3410
        %4711 = vmatprep.subr.bf16.mxu0 %v3413
        %4712 = vmatpush1.bf16.msra.mxu0 %v3412
        %4713 = vmatprep.subr.bf16.mxu0 %v3415
        %4714 = vmatpush1.bf16.msra.mxu0 %v3414
        %4715 = vmatprep.subr.bf16.mxu0 %v3417
        %4716 = vmatpush1.bf16.msra.mxu0 %v3416
        %4717 = vmatprep.subr.bf16.mxu0 %v3419
        %4718 = vmatpush1.bf16.msra.mxu0 %v3418
        %4719 = vmatprep.subr.bf16.mxu0 %v3421
        %4720 = vmatpush1.bf16.msra.mxu0 %v3420
        %4721 = vmatprep.subr.bf16.mxu0 %v3423
        %4722 = vmatpush1.bf16.msra.mxu0 %v3422
        %4723 = vmatprep.subr.bf16.mxu0 %v3425
        %4724 = vmatpush1.bf16.msra.mxu0 %v3424
        %4725 = vmatprep.mubr.bf16.mxu0 %v1446
        %4726 = vmatmul.mubr.bf16.gmra.mrb[0].mxu0 %v1445
        %v4727 = vpop.f32.mrb[0].mxu0
        %v4728 = vadd.f32 %v4615, %v4727
        %v4729 = vpop.f32.mrb[0].mxu0
        %v4730 = vadd.f32 %v4617, %v4729
        %v4731 = vpop.f32.mrb[0].mxu0
        %v4732 = vadd.f32 %v4619, %v4731
        %v4733 = vpop.f32.mrb[0].mxu0
        %v4734 = vadd.f32 %v4621, %v4733
        %4735 = vmatprep.mubr.bf16.mxu0 %v1479
        %4736 = vmatmul.mubr.bf16.gmra.mrb[0].mxu0 %v1478
        %v4737 = vpop.f32.mrb[0].mxu0
        %v4738 = vadd.f32 %v4625, %v4737
        %v4739 = vpop.f32.mrb[0].mxu0
        %v4740 = vadd.f32 %v4627, %v4739
        %v4741 = vpop.f32.mrb[0].mxu0
        %v4742 = vadd.f32 %v4629, %v4741
        %v4743 = vpop.f32.mrb[0].mxu0
        %v4744 = vadd.f32 %v4631, %v4743
        %4745 = vmatprep.mubr.bf16.mxu0 %v1512
        %4746 = vmatmul.mubr.bf16.gmra.mrb[0].mxu0 %v1511
        %v4747 = vpop.f32.mrb[0].mxu0
        %v4748 = vadd.f32 %v4635, %v4747
        %v4749 = vpop.f32.mrb[0].mxu0
        %v4750 = vadd.f32 %v4637, %v4749
        %v4751 = vpop.f32.mrb[0].mxu0
        %v4752 = vadd.f32 %v4639, %v4751
        %v4753 = vpop.f32.mrb[0].mxu0
        %v4754 = vadd.f32 %v4641, %v4753
        %4755 = vmatprep.mubr.bf16.mxu0 %v1545
        %4756 = vmatmul.mubr.bf16.gmra.mrb[0].mxu0 %v1544
        %v4757 = vpop.f32.mrb[0].mxu0
        %v4758 = vadd.f32 %v4645, %v4757
        %v4759 = vpop.f32.mrb[0].mxu0
        %v4760 = vadd.f32 %v4647, %v4759
        %v4761 = vpop.f32.mrb[0].mxu0
        %v4762 = vadd.f32 %v4649, %v4761
        %v4763 = vpop.f32.mrb[0].mxu0
        %v4764 = vadd.f32 %v4651, %v4763
        %4765 = vmatprep.mubr.bf16.mxu0 %v1578
        %4766 = vmatmul.mubr.bf16.gmra.mrb[0].mxu0 %v1577
        %v4767 = vpop.f32.mrb[0].mxu0
        %v4768 = vadd.f32 %v4655, %v4767
        %v4769 = vpop.f32.mrb[0].mxu0
        %v4770 = vadd.f32 %v4657, %v4769
        %v4771 = vpop.f32.mrb[0].mxu0
        %v4772 = vadd.f32 %v4659, %v4771
        %v4773 = vpop.f32.mrb[0].mxu0
        %v4774 = vadd.f32 %v4661, %v4773
        %4775 = vmatprep.mubr.bf16.mxu0 %v1611
        %4776 = vmatmul.mubr.bf16.gmra.mrb[0].mxu0 %v1610
        %v4777 = vpop.f32.mrb[0].mxu0
        %v4778 = vadd.f32 %v4665, %v4777
        %v4779 = vpop.f32.mrb[0].mxu0
        %v4780 = vadd.f32 %v4667, %v4779
        %v4781 = vpop.f32.mrb[0].mxu0
        %v4782 = vadd.f32 %v4669, %v4781
        %v4783 = vpop.f32.mrb[0].mxu0
        %v4784 = vadd.f32 %v4671, %v4783
        %4785 = vmatprep.mubr.bf16.mxu0 %v1644
        %4786 = vmatmul.mubr.bf16.gmra.mrb[0].mxu0 %v1643
        %v4787 = vpop.f32.mrb[0].mxu0
        %v4788 = vadd.f32 %v4675, %v4787
        %v4789 = vpop.f32.mrb[0].mxu0
        %v4790 = vadd.f32 %v4677, %v4789
        %v4791 = vpop.f32.mrb[0].mxu0
        %v4792 = vadd.f32 %v4679, %v4791
        %v4793 = vpop.f32.mrb[0].mxu0
        %v4794 = vadd.f32 %v4681, %v4793
        %4795 = vmatprep.mubr.bf16.mxu0 %v1677
        %4796 = vmatmul.mubr.bf16.gmra.mrb[0].mxu0 %v1676
        %v4797 = vpop.f32.mrb[0].mxu0
        %v4798 = vadd.f32 %v4685, %v4797
        %v4799 = vpop.f32.mrb[0].mxu0
        %v4800 = vadd.f32 %v4687, %v4799
        %v4801 = vpop.f32.mrb[0].mxu0
        %v4802 = vadd.f32 %v4689, %v4801
        %v4803 = vpop.f32.mrb[0].mxu0
        %v4804 = vadd.f32 %v4691, %v4803
        %4805 = vdwg.mxu0
        %4806 = vmatprep.subr.bf16.mxu0 %v3427
        %4807 = vmatpush1.bf16.msra.mxu0 %v3426
        %4808 = vmatprep.subr.bf16.mxu0 %v3429
        %4809 = vmatpush1.bf16.msra.mxu0 %v3428
        %4810 = vmatprep.subr.bf16.mxu0 %v3431
        %4811 = vmatpush1.bf16.msra.mxu0 %v3430
        %4812 = vmatprep.subr.bf16.mxu0 %v3433
        %4813 = vmatpush1.bf16.msra.mxu0 %v3432
        %4814 = vmatprep.subr.bf16.mxu0 %v3435
        %4815 = vmatpush1.bf16.msra.mxu0 %v3434
        %4816 = vmatprep.subr.bf16.mxu0 %v3437
        %4817 = vmatpush1.bf16.msra.mxu0 %v3436
        %4818 = vmatprep.subr.bf16.mxu0 %v3439
        %4819 = vmatpush1.bf16.msra.mxu0 %v3438
        %4820 = vmatprep.subr.bf16.mxu0 %v3441
        %4821 = vmatpush1.bf16.msra.mxu0 %v3440
        %4822 = vmatprep.subr.bf16.mxu0 %v3443
        %4823 = vmatpush1.bf16.msra.mxu0 %v3442
        %4824 = vmatprep.subr.bf16.mxu0 %v3445
        %4825 = vmatpush1.bf16.msra.mxu0 %v3444
        %4826 = vmatprep.subr.bf16.mxu0 %v3447
        %4827 = vmatpush1.bf16.msra.mxu0 %v3446
        %4828 = vmatprep.subr.bf16.mxu0 %v3449
        %4829 = vmatpush1.bf16.msra.mxu0 %v3448
        %4830 = vmatprep.subr.bf16.mxu0 %v3451
        %4831 = vmatpush1.bf16.msra.mxu0 %v3450
        %4832 = vmatprep.subr.bf16.mxu0 %v3453
        %4833 = vmatpush1.bf16.msra.mxu0 %v3452
        %4834 = vmatprep.subr.bf16.mxu0 %v3455
        %4835 = vmatpush1.bf16.msra.mxu0 %v3454
        %4836 = vmatprep.subr.bf16.mxu0 %v3457
        %4837 = vmatpush1.bf16.msra.mxu0 %v3456
        %4838 = vmatprep.mubr.bf16.mxu0 %v1448
        %4839 = vmatmul.mubr.bf16.gmra.mrb[0].mxu0 %v1447
        %v4840 = vpop.f32.mrb[0].mxu0
        %v4841 = vadd.f32 %v4728, %v4840
        %v4842 = vpop.f32.mrb[0].mxu0
        %v4843 = vadd.f32 %v4730, %v4842
        %v4844 = vpop.f32.mrb[0].mxu0
        %v4845 = vadd.f32 %v4732, %v4844
        %v4846 = vpop.f32.mrb[0].mxu0
        %v4847 = vadd.f32 %v4734, %v4846
        %4848 = vmatprep.mubr.bf16.mxu0 %v1481
        %4849 = vmatmul.mubr.bf16.gmra.mrb[0].mxu0 %v1480
        %v4850 = vpop.f32.mrb[0].mxu0
        %v4851 = vadd.f32 %v4738, %v4850
        %v4852 = vpop.f32.mrb[0].mxu0
        %v4853 = vadd.f32 %v4740, %v4852
        %v4854 = vpop.f32.mrb[0].mxu0
        %v4855 = vadd.f32 %v4742, %v4854
        %v4856 = vpop.f32.mrb[0].mxu0
        %v4857 = vadd.f32 %v4744, %v4856
        %4858 = vmatprep.mubr.bf16.mxu0 %v1514
        %4859 = vmatmul.mubr.bf16.gmra.mrb[0].mxu0 %v1513
        %v4860 = vpop.f32.mrb[0].mxu0
        %v4861 = vadd.f32 %v4748, %v4860
        %v4862 = vpop.f32.mrb[0].mxu0
        %v4863 = vadd.f32 %v4750, %v4862
        %v4864 = vpop.f32.mrb[0].mxu0
        %v4865 = vadd.f32 %v4752, %v4864
        %v4866 = vpop.f32.mrb[0].mxu0
        %v4867 = vadd.f32 %v4754, %v4866
        %4868 = vmatprep.mubr.bf16.mxu0 %v1547
        %4869 = vmatmul.mubr.bf16.gmra.mrb[0].mxu0 %v1546
        %v4870 = vpop.f32.mrb[0].mxu0
        %v4871 = vadd.f32 %v4758, %v4870
        %v4872 = vpop.f32.mrb[0].mxu0
        %v4873 = vadd.f32 %v4760, %v4872
        %v4874 = vpop.f32.mrb[0].mxu0
        %v4875 = vadd.f32 %v4762, %v4874
        %v4876 = vpop.f32.mrb[0].mxu0
        %v4877 = vadd.f32 %v4764, %v4876
        %4878 = vmatprep.mubr.bf16.mxu0 %v1580
        %4879 = vmatmul.mubr.bf16.gmra.mrb[0].mxu0 %v1579
        %v4880 = vpop.f32.mrb[0].mxu0
        %v4881 = vadd.f32 %v4768, %v4880
        %v4882 = vpop.f32.mrb[0].mxu0
        %v4883 = vadd.f32 %v4770, %v4882
        %v4884 = vpop.f32.mrb[0].mxu0
        %v4885 = vadd.f32 %v4772, %v4884
        %v4886 = vpop.f32.mrb[0].mxu0
        %v4887 = vadd.f32 %v4774, %v4886
        %4888 = vmatprep.mubr.bf16.mxu0 %v1613
        %4889 = vmatmul.mubr.bf16.gmra.mrb[0].mxu0 %v1612
        %v4890 = vpop.f32.mrb[0].mxu0
        %v4891 = vadd.f32 %v4778, %v4890
        %v4892 = vpop.f32.mrb[0].mxu0
        %v4893 = vadd.f32 %v4780, %v4892
        %v4894 = vpop.f32.mrb[0].mxu0
        %v4895 = vadd.f32 %v4782, %v4894
        %v4896 = vpop.f32.mrb[0].mxu0
        %v4897 = vadd.f32 %v4784, %v4896
        %4898 = vmatprep.mubr.bf16.mxu0 %v1646
        %4899 = vmatmul.mubr.bf16.gmra.mrb[0].mxu0 %v1645
        %v4900 = vpop.f32.mrb[0].mxu0
        %v4901 = vadd.f32 %v4788, %v4900
        %v4902 = vpop.f32.mrb[0].mxu0
        %v4903 = vadd.f32 %v4790, %v4902
        %v4904 = vpop.f32.mrb[0].mxu0
        %v4905 = vadd.f32 %v4792, %v4904
        %v4906 = vpop.f32.mrb[0].mxu0
        %v4907 = vadd.f32 %v4794, %v4906
        %4908 = vmatprep.mubr.bf16.mxu0 %v1679
        %4909 = vmatmul.mubr.bf16.gmra.mrb[0].mxu0 %v1678
        %v4910 = vpop.f32.mrb[0].mxu0
        %v4911 = vadd.f32 %v4798, %v4910
        %v4912 = vpop.f32.mrb[0].mxu0
        %v4913 = vadd.f32 %v4800, %v4912
        %v4914 = vpop.f32.mrb[0].mxu0
        %v4915 = vadd.f32 %v4802, %v4914
        %v4916 = vpop.f32.mrb[0].mxu0
        %v4917 = vadd.f32 %v4804, %v4916
        %4918 = vdwg.mxu0
        %4919 = vmatprep.subr.bf16.mxu0 %v3459
        %4920 = vmatpush1.bf16.msra.mxu0 %v3458
        %4921 = vmatprep.subr.bf16.mxu0 %v3461
        %4922 = vmatpush1.bf16.msra.mxu0 %v3460
        %4923 = vmatprep.subr.bf16.mxu0 %v3463
        %4924 = vmatpush1.bf16.msra.mxu0 %v3462
        %4925 = vmatprep.subr.bf16.mxu0 %v3465
        %4926 = vmatpush1.bf16.msra.mxu0 %v3464
        %4927 = vmatprep.subr.bf16.mxu0 %v3467
        %4928 = vmatpush1.bf16.msra.mxu0 %v3466
        %4929 = vmatprep.subr.bf16.mxu0 %v3469
        %4930 = vmatpush1.bf16.msra.mxu0 %v3468
        %4931 = vmatprep.subr.bf16.mxu0 %v3471
        %4932 = vmatpush1.bf16.msra.mxu0 %v3470
        %4933 = vmatprep.subr.bf16.mxu0 %v3473
        %4934 = vmatpush1.bf16.msra.mxu0 %v3472
        %4935 = vmatprep.subr.bf16.mxu0 %v3475
        %4936 = vmatpush1.bf16.msra.mxu0 %v3474
        %4937 = vmatprep.subr.bf16.mxu0 %v3477
        %4938 = vmatpush1.bf16.msra.mxu0 %v3476
        %4939 = vmatprep.subr.bf16.mxu0 %v3479
        %4940 = vmatpush1.bf16.msra.mxu0 %v3478
        %4941 = vmatprep.subr.bf16.mxu0 %v3481
        %4942 = vmatpush1.bf16.msra.mxu0 %v3480
        %4943 = vmatprep.subr.bf16.mxu0 %v3483
        %4944 = vmatpush1.bf16.msra.mxu0 %v3482
        %4945 = vmatprep.subr.bf16.mxu0 %v3485
        %4946 = vmatpush1.bf16.msra.mxu0 %v3484
        %4947 = vmatprep.subr.bf16.mxu0 %v3487
        %4948 = vmatpush1.bf16.msra.mxu0 %v3486
        %4949 = vmatprep.subr.bf16.mxu0 %v3489
        %4950 = vmatpush1.bf16.msra.mxu0 %v3488
        %4951 = vmatprep.mubr.bf16.mxu0 %v1450
        %4952 = vmatmul.mubr.bf16.gmra.mrb[0].mxu0 %v1449
        %v4953 = vpop.f32.mrb[0].mxu0
        %v4954 = vadd.f32 %v4841, %v4953
        %v4955 = vpop.f32.mrb[0].mxu0
        %v4956 = vadd.f32 %v4843, %v4955
        %v4957 = vpop.f32.mrb[0].mxu0
        %v4958 = vadd.f32 %v4845, %v4957
        %v4959 = vpop.f32.mrb[0].mxu0
        %v4960 = vadd.f32 %v4847, %v4959
        %4961 = vmatprep.mubr.bf16.mxu0 %v1483
        %4962 = vmatmul.mubr.bf16.gmra.mrb[0].mxu0 %v1482
        %v4963 = vpop.f32.mrb[0].mxu0
        %v4964 = vadd.f32 %v4851, %v4963
        %v4965 = vpop.f32.mrb[0].mxu0
        %v4966 = vadd.f32 %v4853, %v4965
        %v4967 = vpop.f32.mrb[0].mxu0
        %v4968 = vadd.f32 %v4855, %v4967
        %v4969 = vpop.f32.mrb[0].mxu0
        %v4970 = vadd.f32 %v4857, %v4969
        %4971 = vmatprep.mubr.bf16.mxu0 %v1516
        %4972 = vmatmul.mubr.bf16.gmra.mrb[0].mxu0 %v1515
        %v4973 = vpop.f32.mrb[0].mxu0
        %v4974 = vadd.f32 %v4861, %v4973
        %v4975 = vpop.f32.mrb[0].mxu0
        %v4976 = vadd.f32 %v4863, %v4975
        %v4977 = vpop.f32.mrb[0].mxu0
        %v4978 = vadd.f32 %v4865, %v4977
        %v4979 = vpop.f32.mrb[0].mxu0
        %v4980 = vadd.f32 %v4867, %v4979
        %4981 = vmatprep.mubr.bf16.mxu0 %v1549
        %4982 = vmatmul.mubr.bf16.gmra.mrb[0].mxu0 %v1548
        %v4983 = vpop.f32.mrb[0].mxu0
        %v4984 = vadd.f32 %v4871, %v4983
        %v4985 = vpop.f32.mrb[0].mxu0
        %v4986 = vadd.f32 %v4873, %v4985
        %v4987 = vpop.f32.mrb[0].mxu0
        %v4988 = vadd.f32 %v4875, %v4987
        %v4989 = vpop.f32.mrb[0].mxu0
        %v4990 = vadd.f32 %v4877, %v4989
        %4991 = vmatprep.mubr.bf16.mxu0 %v1582
        %4992 = vmatmul.mubr.bf16.gmra.mrb[0].mxu0 %v1581
        %v4993 = vpop.f32.mrb[0].mxu0
        %v4994 = vadd.f32 %v4881, %v4993
        %v4995 = vpop.f32.mrb[0].mxu0
        %v4996 = vadd.f32 %v4883, %v4995
        %v4997 = vpop.f32.mrb[0].mxu0
        %v4998 = vadd.f32 %v4885, %v4997
        %v4999 = vpop.f32.mrb[0].mxu0
        %v5000 = vadd.f32 %v4887, %v4999
        %5001 = vmatprep.mubr.bf16.mxu0 %v1615
        %5002 = vmatmul.mubr.bf16.gmra.mrb[0].mxu0 %v1614
        %v5003 = vpop.f32.mrb[0].mxu0
        %v5004 = vadd.f32 %v4891, %v5003
        %v5005 = vpop.f32.mrb[0].mxu0
        %v5006 = vadd.f32 %v4893, %v5005
        %v5007 = vpop.f32.mrb[0].mxu0
        %v5008 = vadd.f32 %v4895, %v5007
        %v5009 = vpop.f32.mrb[0].mxu0
        %v5010 = vadd.f32 %v4897, %v5009
        %5011 = vmatprep.mubr.bf16.mxu0 %v1648
        %5012 = vmatmul.mubr.bf16.gmra.mrb[0].mxu0 %v1647
        %v5013 = vpop.f32.mrb[0].mxu0
        %v5014 = vadd.f32 %v4901, %v5013
        %v5015 = vpop.f32.mrb[0].mxu0
        %v5016 = vadd.f32 %v4903, %v5015
        %v5017 = vpop.f32.mrb[0].mxu0
        %v5018 = vadd.f32 %v4905, %v5017
        %v5019 = vpop.f32.mrb[0].mxu0
        %v5020 = vadd.f32 %v4907, %v5019
        %5021 = vmatprep.mubr.bf16.mxu0 %v1681
        %5022 = vmatmul.mubr.bf16.gmra.mrb[0].mxu0 %v1680
        %v5023 = vpop.f32.mrb[0].mxu0
        %v5024 = vadd.f32 %v4911, %v5023
        %v5025 = vpop.f32.mrb[0].mxu0
        %v5026 = vadd.f32 %v4913, %v5025
        %v5027 = vpop.f32.mrb[0].mxu0
        %v5028 = vadd.f32 %v4915, %v5027
        %v5029 = vpop.f32.mrb[0].mxu0
        %v5030 = vadd.f32 %v4917, %v5029
        %5031 = vdwg.mxu0
        %5032 = vmatprep.subr.bf16.mxu0 %v3491
        %5033 = vmatpush1.bf16.msra.mxu0 %v3490
        %5034 = vmatprep.subr.bf16.mxu0 %v3493
        %5035 = vmatpush1.bf16.msra.mxu0 %v3492
        %5036 = vmatprep.subr.bf16.mxu0 %v3495
        %5037 = vmatpush1.bf16.msra.mxu0 %v3494
        %5038 = vmatprep.subr.bf16.mxu0 %v3497
        %5039 = vmatpush1.bf16.msra.mxu0 %v3496
        %5040 = vmatprep.subr.bf16.mxu0 %v3499
        %5041 = vmatpush1.bf16.msra.mxu0 %v3498
        %5042 = vmatprep.subr.bf16.mxu0 %v3501
        %5043 = vmatpush1.bf16.msra.mxu0 %v3500
        %5044 = vmatprep.subr.bf16.mxu0 %v3503
        %5045 = vmatpush1.bf16.msra.mxu0 %v3502
        %5046 = vmatprep.subr.bf16.mxu0 %v3505
        %5047 = vmatpush1.bf16.msra.mxu0 %v3504
        %5048 = vmatprep.subr.bf16.mxu0 %v3507
        %5049 = vmatpush1.bf16.msra.mxu0 %v3506
        %5050 = vmatprep.subr.bf16.mxu0 %v3509
        %5051 = vmatpush1.bf16.msra.mxu0 %v3508
        %5052 = vmatprep.subr.bf16.mxu0 %v3511
        %5053 = vmatpush1.bf16.msra.mxu0 %v3510
        %5054 = vmatprep.subr.bf16.mxu0 %v3513
        %5055 = vmatpush1.bf16.msra.mxu0 %v3512
        %5056 = vmatprep.subr.bf16.mxu0 %v3515
        %5057 = vmatpush1.bf16.msra.mxu0 %v3514
        %5058 = vmatprep.subr.bf16.mxu0 %v3517
        %5059 = vmatpush1.bf16.msra.mxu0 %v3516
        %5060 = vmatprep.subr.bf16.mxu0 %v3519
        %5061 = vmatpush1.bf16.msra.mxu0 %v3518
        %5062 = vmatprep.subr.bf16.mxu0 %v3521
        %5063 = vmatpush1.bf16.msra.mxu0 %v3520
        %5064 = vmatprep.mubr.bf16.mxu0 %v1452
        %5065 = vmatmul.mubr.bf16.gmra.mrb[0].mxu0 %v1451
        %v5066 = vpop.f32.mrb[0].mxu0
        %v5067 = vadd.f32 %v4954, %v5066
        %v5068 = vpop.f32.mrb[0].mxu0
        %v5069 = vadd.f32 %v4956, %v5068
        %v5070 = vpop.f32.mrb[0].mxu0
        %v5071 = vadd.f32 %v4958, %v5070
        %v5072 = vpop.f32.mrb[0].mxu0
        %v5073 = vadd.f32 %v4960, %v5072
        %5074 = vmatprep.mubr.bf16.mxu0 %v1485
        %5075 = vmatmul.mubr.bf16.gmra.mrb[0].mxu0 %v1484
        %v5076 = vpop.f32.mrb[0].mxu0
        %v5077 = vadd.f32 %v4964, %v5076
        %v5078 = vpop.f32.mrb[0].mxu0
        %v5079 = vadd.f32 %v4966, %v5078
        %v5080 = vpop.f32.mrb[0].mxu0
        %v5081 = vadd.f32 %v4968, %v5080
        %v5082 = vpop.f32.mrb[0].mxu0
        %v5083 = vadd.f32 %v4970, %v5082
        %5084 = vmatprep.mubr.bf16.mxu0 %v1518
        %5085 = vmatmul.mubr.bf16.gmra.mrb[0].mxu0 %v1517
        %v5086 = vpop.f32.mrb[0].mxu0
        %v5087 = vadd.f32 %v4974, %v5086
        %v5088 = vpop.f32.mrb[0].mxu0
        %v5089 = vadd.f32 %v4976, %v5088
        %v5090 = vpop.f32.mrb[0].mxu0
        %v5091 = vadd.f32 %v4978, %v5090
        %v5092 = vpop.f32.mrb[0].mxu0
        %v5093 = vadd.f32 %v4980, %v5092
        %5094 = vmatprep.mubr.bf16.mxu0 %v1551
        %5095 = vmatmul.mubr.bf16.gmra.mrb[0].mxu0 %v1550
        %v5096 = vpop.f32.mrb[0].mxu0
        %v5097 = vadd.f32 %v4984, %v5096
        %v5098 = vpop.f32.mrb[0].mxu0
        %v5099 = vadd.f32 %v4986, %v5098
        %v5100 = vpop.f32.mrb[0].mxu0
        %v5101 = vadd.f32 %v4988, %v5100
        %v5102 = vpop.f32.mrb[0].mxu0
        %v5103 = vadd.f32 %v4990, %v5102
        %5104 = vmatprep.mubr.bf16.mxu0 %v1584
        %5105 = vmatmul.mubr.bf16.gmra.mrb[0].mxu0 %v1583
        %v5106 = vpop.f32.mrb[0].mxu0
        %v5107 = vadd.f32 %v4994, %v5106
        %v5108 = vpop.f32.mrb[0].mxu0
        %v5109 = vadd.f32 %v4996, %v5108
        %v5110 = vpop.f32.mrb[0].mxu0
        %v5111 = vadd.f32 %v4998, %v5110
        %v5112 = vpop.f32.mrb[0].mxu0
        %v5113 = vadd.f32 %v5000, %v5112
        %5114 = vmatprep.mubr.bf16.mxu0 %v1617
        %5115 = vmatmul.mubr.bf16.gmra.mrb[0].mxu0 %v1616
        %v5116 = vpop.f32.mrb[0].mxu0
        %v5117 = vadd.f32 %v5004, %v5116
        %v5118 = vpop.f32.mrb[0].mxu0
        %v5119 = vadd.f32 %v5006, %v5118
        %v5120 = vpop.f32.mrb[0].mxu0
        %v5121 = vadd.f32 %v5008, %v5120
        %v5122 = vpop.f32.mrb[0].mxu0
        %v5123 = vadd.f32 %v5010, %v5122
        %5124 = vmatprep.mubr.bf16.mxu0 %v1650
        %5125 = vmatmul.mubr.bf16.gmra.mrb[0].mxu0 %v1649
        %v5126 = vpop.f32.mrb[0].mxu0
        %v5127 = vadd.f32 %v5014, %v5126
        %v5128 = vpop.f32.mrb[0].mxu0
        %v5129 = vadd.f32 %v5016, %v5128
        %v5130 = vpop.f32.mrb[0].mxu0
        %v5131 = vadd.f32 %v5018, %v5130
        %v5132 = vpop.f32.mrb[0].mxu0
        %v5133 = vadd.f32 %v5020, %v5132
        %5134 = vmatprep.mubr.bf16.mxu0 %v1683
        %5135 = vmatmul.mubr.bf16.gmra.mrb[0].mxu0 %v1682
        %v5136 = vpop.f32.mrb[0].mxu0
        %v5137 = vadd.f32 %v5024, %v5136
        %v5138 = vpop.f32.mrb[0].mxu0
        %v5139 = vadd.f32 %v5026, %v5138
        %v5140 = vpop.f32.mrb[0].mxu0
        %v5141 = vadd.f32 %v5028, %v5140
        %v5142 = vpop.f32.mrb[0].mxu0
        %v5143 = vadd.f32 %v5030, %v5142
        %5144 = vdwg.mxu0
        %5145 = vmatprep.subr.bf16.mxu0 %v3523
        %5146 = vmatpush1.bf16.msra.mxu0 %v3522
        %5147 = vmatprep.subr.bf16.mxu0 %v3525
        %5148 = vmatpush1.bf16.msra.mxu0 %v3524
        %5149 = vmatprep.subr.bf16.mxu0 %v3527
        %5150 = vmatpush1.bf16.msra.mxu0 %v3526
        %5151 = vmatprep.subr.bf16.mxu0 %v3529
        %5152 = vmatpush1.bf16.msra.mxu0 %v3528
        %5153 = vmatprep.subr.bf16.mxu0 %v3531
        %5154 = vmatpush1.bf16.msra.mxu0 %v3530
        %5155 = vmatprep.subr.bf16.mxu0 %v3533
        %5156 = vmatpush1.bf16.msra.mxu0 %v3532
        %5157 = vmatprep.subr.bf16.mxu0 %v3535
        %5158 = vmatpush1.bf16.msra.mxu0 %v3534
        %5159 = vmatprep.subr.bf16.mxu0 %v3537
        %5160 = vmatpush1.bf16.msra.mxu0 %v3536
        %5161 = vmatprep.subr.bf16.mxu0 %v3539
        %5162 = vmatpush1.bf16.msra.mxu0 %v3538
        %5163 = vmatprep.subr.bf16.mxu0 %v3541
        %5164 = vmatpush1.bf16.msra.mxu0 %v3540
        %5165 = vmatprep.subr.bf16.mxu0 %v3543
        %5166 = vmatpush1.bf16.msra.mxu0 %v3542
        %5167 = vmatprep.subr.bf16.mxu0 %v3545
        %5168 = vmatpush1.bf16.msra.mxu0 %v3544
        %5169 = vmatprep.subr.bf16.mxu0 %v3547
        %5170 = vmatpush1.bf16.msra.mxu0 %v3546
        %5171 = vmatprep.subr.bf16.mxu0 %v3549
        %5172 = vmatpush1.bf16.msra.mxu0 %v3548
        %5173 = vmatprep.subr.bf16.mxu0 %v3551
        %5174 = vmatpush1.bf16.msra.mxu0 %v3550
        %5175 = vmatprep.subr.bf16.mxu0 %v3553
        %5176 = vmatpush1.bf16.msra.mxu0 %v3552
        %5177 = vmatprep.mubr.bf16.mxu0 %v1454
        %5178 = vmatmul.mubr.bf16.gmra.mrb[0].mxu0 %v1453
        %v5179 = vpop.f32.mrb[0].mxu0
        %v5180 = vadd.f32 %v5067, %v5179
        %v5181 = vpop.f32.mrb[0].mxu0
        %v5182 = vadd.f32 %v5069, %v5181
        %v5183 = vpop.f32.mrb[0].mxu0
        %v5184 = vadd.f32 %v5071, %v5183
        %v5185 = vpop.f32.mrb[0].mxu0
        %v5186 = vadd.f32 %v5073, %v5185
        %5187 = vmatprep.mubr.bf16.mxu0 %v1487
        %5188 = vmatmul.mubr.bf16.gmra.mrb[0].mxu0 %v1486
        %v5189 = vpop.f32.mrb[0].mxu0
        %v5190 = vadd.f32 %v5077, %v5189
        %v5191 = vpop.f32.mrb[0].mxu0
        %v5192 = vadd.f32 %v5079, %v5191
        %v5193 = vpop.f32.mrb[0].mxu0
        %v5194 = vadd.f32 %v5081, %v5193
        %v5195 = vpop.f32.mrb[0].mxu0
        %v5196 = vadd.f32 %v5083, %v5195
        %5197 = vmatprep.mubr.bf16.mxu0 %v1520
        %5198 = vmatmul.mubr.bf16.gmra.mrb[0].mxu0 %v1519
        %v5199 = vpop.f32.mrb[0].mxu0
        %v5200 = vadd.f32 %v5087, %v5199
        %v5201 = vpop.f32.mrb[0].mxu0
        %v5202 = vadd.f32 %v5089, %v5201
        %v5203 = vpop.f32.mrb[0].mxu0
        %v5204 = vadd.f32 %v5091, %v5203
        %v5205 = vpop.f32.mrb[0].mxu0
        %v5206 = vadd.f32 %v5093, %v5205
        %5207 = vmatprep.mubr.bf16.mxu0 %v1553
        %5208 = vmatmul.mubr.bf16.gmra.mrb[0].mxu0 %v1552
        %v5209 = vpop.f32.mrb[0].mxu0
        %v5210 = vadd.f32 %v5097, %v5209
        %v5211 = vpop.f32.mrb[0].mxu0
        %v5212 = vadd.f32 %v5099, %v5211
        %v5213 = vpop.f32.mrb[0].mxu0
        %v5214 = vadd.f32 %v5101, %v5213
        %v5215 = vpop.f32.mrb[0].mxu0
        %v5216 = vadd.f32 %v5103, %v5215
        %5217 = vmatprep.mubr.bf16.mxu0 %v1586
        %5218 = vmatmul.mubr.bf16.gmra.mrb[0].mxu0 %v1585
        %v5219 = vpop.f32.mrb[0].mxu0
        %v5220 = vadd.f32 %v5107, %v5219
        %v5221 = vpop.f32.mrb[0].mxu0
        %v5222 = vadd.f32 %v5109, %v5221
        %v5223 = vpop.f32.mrb[0].mxu0
        %v5224 = vadd.f32 %v5111, %v5223
        %v5225 = vpop.f32.mrb[0].mxu0
        %v5226 = vadd.f32 %v5113, %v5225
        %5227 = vmatprep.mubr.bf16.mxu0 %v1619
        %5228 = vmatmul.mubr.bf16.gmra.mrb[0].mxu0 %v1618
        %v5229 = vpop.f32.mrb[0].mxu0
        %v5230 = vadd.f32 %v5117, %v5229
        %v5231 = vpop.f32.mrb[0].mxu0
        %v5232 = vadd.f32 %v5119, %v5231
        %v5233 = vpop.f32.mrb[0].mxu0
        %v5234 = vadd.f32 %v5121, %v5233
        %v5235 = vpop.f32.mrb[0].mxu0
        %v5236 = vadd.f32 %v5123, %v5235
        %5237 = vmatprep.mubr.bf16.mxu0 %v1652
        %5238 = vmatmul.mubr.bf16.gmra.mrb[0].mxu0 %v1651
        %v5239 = vpop.f32.mrb[0].mxu0
        %v5240 = vadd.f32 %v5127, %v5239
        %v5241 = vpop.f32.mrb[0].mxu0
        %v5242 = vadd.f32 %v5129, %v5241
        %v5243 = vpop.f32.mrb[0].mxu0
        %v5244 = vadd.f32 %v5131, %v5243
        %v5245 = vpop.f32.mrb[0].mxu0
        %v5246 = vadd.f32 %v5133, %v5245
        %5247 = vmatprep.mubr.bf16.mxu0 %v1685
        %5248 = vmatmul.mubr.bf16.gmra.mrb[0].mxu0 %v1684
        %v5249 = vpop.f32.mrb[0].mxu0
        %v5250 = vadd.f32 %v5137, %v5249
        %v5251 = vpop.f32.mrb[0].mxu0
        %v5252 = vadd.f32 %v5139, %v5251
        %v5253 = vpop.f32.mrb[0].mxu0
        %v5254 = vadd.f32 %v5141, %v5253
        %v5255 = vpop.f32.mrb[0].mxu0
        %v5256 = vadd.f32 %v5143, %v5255
        %5257 = vdwg.mxu0
        %5258 = vmatprep.subr.bf16.mxu0 %v3555
        %5259 = vmatpush1.bf16.msra.mxu0 %v3554
        %5260 = vmatprep.subr.bf16.mxu0 %v3557
        %5261 = vmatpush1.bf16.msra.mxu0 %v3556
        %5262 = vmatprep.subr.bf16.mxu0 %v3559
        %5263 = vmatpush1.bf16.msra.mxu0 %v3558
        %5264 = vmatprep.subr.bf16.mxu0 %v3561
        %5265 = vmatpush1.bf16.msra.mxu0 %v3560
        %5266 = vmatprep.subr.bf16.mxu0 %v3563
        %5267 = vmatpush1.bf16.msra.mxu0 %v3562
        %5268 = vmatprep.subr.bf16.mxu0 %v3565
        %5269 = vmatpush1.bf16.msra.mxu0 %v3564
        %5270 = vmatprep.subr.bf16.mxu0 %v3567
        %5271 = vmatpush1.bf16.msra.mxu0 %v3566
        %5272 = vmatprep.subr.bf16.mxu0 %v3569
        %5273 = vmatpush1.bf16.msra.mxu0 %v3568
        %5274 = vmatprep.subr.bf16.mxu0 %v3571
        %5275 = vmatpush1.bf16.msra.mxu0 %v3570
        %5276 = vmatprep.subr.bf16.mxu0 %v3573
        %5277 = vmatpush1.bf16.msra.mxu0 %v3572
        %5278 = vmatprep.subr.bf16.mxu0 %v3575
        %5279 = vmatpush1.bf16.msra.mxu0 %v3574
        %5280 = vmatprep.subr.bf16.mxu0 %v3577
        %5281 = vmatpush1.bf16.msra.mxu0 %v3576
        %5282 = vmatprep.subr.bf16.mxu0 %v3579
        %5283 = vmatpush1.bf16.msra.mxu0 %v3578
        %5284 = vmatprep.subr.bf16.mxu0 %v3581
        %5285 = vmatpush1.bf16.msra.mxu0 %v3580
        %5286 = vmatprep.subr.bf16.mxu0 %v3583
        %5287 = vmatpush1.bf16.msra.mxu0 %v3582
        %5288 = vmatprep.subr.bf16.mxu0 %v3585
        %5289 = vmatpush1.bf16.msra.mxu0 %v3584
        %5290 = vmatprep.mubr.bf16.mxu0 %v1456
        %5291 = vmatmul.mubr.bf16.gmra.mrb[0].mxu0 %v1455
        %v5292 = vpop.f32.mrb[0].mxu0
        %v5293 = vadd.f32 %v5180, %v5292
        %v5294 = vpop.f32.mrb[0].mxu0
        %v5295 = vadd.f32 %v5182, %v5294
        %v5296 = vpop.f32.mrb[0].mxu0
        %v5297 = vadd.f32 %v5184, %v5296
        %v5298 = vpop.f32.mrb[0].mxu0
        %v5299 = vadd.f32 %v5186, %v5298
        %5300 = vmatprep.mubr.bf16.mxu0 %v1489
        %5301 = vmatmul.mubr.bf16.gmra.mrb[0].mxu0 %v1488
        %v5302 = vpop.f32.mrb[0].mxu0
        %v5303 = vadd.f32 %v5190, %v5302
        %v5304 = vpop.f32.mrb[0].mxu0
        %v5305 = vadd.f32 %v5192, %v5304
        %v5306 = vpop.f32.mrb[0].mxu0
        %v5307 = vadd.f32 %v5194, %v5306
        %v5308 = vpop.f32.mrb[0].mxu0
        %v5309 = vadd.f32 %v5196, %v5308
        %5310 = vmatprep.mubr.bf16.mxu0 %v1522
        %5311 = vmatmul.mubr.bf16.gmra.mrb[0].mxu0 %v1521
        %v5312 = vpop.f32.mrb[0].mxu0
        %v5313 = vadd.f32 %v5200, %v5312
        %v5314 = vpop.f32.mrb[0].mxu0
        %v5315 = vadd.f32 %v5202, %v5314
        %v5316 = vpop.f32.mrb[0].mxu0
        %v5317 = vadd.f32 %v5204, %v5316
        %v5318 = vpop.f32.mrb[0].mxu0
        %v5319 = vadd.f32 %v5206, %v5318
        %5320 = vmatprep.mubr.bf16.mxu0 %v1555
        %5321 = vmatmul.mubr.bf16.gmra.mrb[0].mxu0 %v1554
        %v5322 = vpop.f32.mrb[0].mxu0
        %v5323 = vadd.f32 %v5210, %v5322
        %v5324 = vpop.f32.mrb[0].mxu0
        %v5325 = vadd.f32 %v5212, %v5324
        %v5326 = vpop.f32.mrb[0].mxu0
        %v5327 = vadd.f32 %v5214, %v5326
        %v5328 = vpop.f32.mrb[0].mxu0
        %v5329 = vadd.f32 %v5216, %v5328
        %5330 = vmatprep.mubr.bf16.mxu0 %v1588
        %5331 = vmatmul.mubr.bf16.gmra.mrb[0].mxu0 %v1587
        %v5332 = vpop.f32.mrb[0].mxu0
        %v5333 = vadd.f32 %v5220, %v5332
        %v5334 = vpop.f32.mrb[0].mxu0
        %v5335 = vadd.f32 %v5222, %v5334
        %v5336 = vpop.f32.mrb[0].mxu0
        %v5337 = vadd.f32 %v5224, %v5336
        %v5338 = vpop.f32.mrb[0].mxu0
        %v5339 = vadd.f32 %v5226, %v5338
        %5340 = vmatprep.mubr.bf16.mxu0 %v1621
        %5341 = vmatmul.mubr.bf16.gmra.mrb[0].mxu0 %v1620
        %v5342 = vpop.f32.mrb[0].mxu0
        %v5343 = vadd.f32 %v5230, %v5342
        %v5344 = vpop.f32.mrb[0].mxu0
        %v5345 = vadd.f32 %v5232, %v5344
        %v5346 = vpop.f32.mrb[0].mxu0
        %v5347 = vadd.f32 %v5234, %v5346
        %v5348 = vpop.f32.mrb[0].mxu0
        %v5349 = vadd.f32 %v5236, %v5348
        %5350 = vmatprep.mubr.bf16.mxu0 %v1654
        %5351 = vmatmul.mubr.bf16.gmra.mrb[0].mxu0 %v1653
        %v5352 = vpop.f32.mrb[0].mxu0
        %v5353 = vadd.f32 %v5240, %v5352
        %v5354 = vpop.f32.mrb[0].mxu0
        %v5355 = vadd.f32 %v5242, %v5354
        %v5356 = vpop.f32.mrb[0].mxu0
        %v5357 = vadd.f32 %v5244, %v5356
        %v5358 = vpop.f32.mrb[0].mxu0
        %v5359 = vadd.f32 %v5246, %v5358
        %5360 = vmatprep.mubr.bf16.mxu0 %v1687
        %5361 = vmatmul.mubr.bf16.gmra.mrb[0].mxu0 %v1686
        %v5362 = vpop.f32.mrb[0].mxu0
        %v5363 = vadd.f32 %v5250, %v5362
        %v5364 = vpop.f32.mrb[0].mxu0
        %v5365 = vadd.f32 %v5252, %v5364
        %v5366 = vpop.f32.mrb[0].mxu0
        %v5367 = vadd.f32 %v5254, %v5366
        %v5368 = vpop.f32.mrb[0].mxu0
        %v5369 = vadd.f32 %v5256, %v5368
        %5370 = vdwg.mxu0
        %5371 = vmatprep.subr.bf16.mxu0 %v3587
        %5372 = vmatpush1.bf16.msra.mxu0 %v3586
        %5373 = vmatprep.subr.bf16.mxu0 %v3589
        %5374 = vmatpush1.bf16.msra.mxu0 %v3588
        %5375 = vmatprep.subr.bf16.mxu0 %v3591
        %5376 = vmatpush1.bf16.msra.mxu0 %v3590
        %5377 = vmatprep.subr.bf16.mxu0 %v3593
        %5378 = vmatpush1.bf16.msra.mxu0 %v3592
        %5379 = vmatprep.subr.bf16.mxu0 %v3595
        %5380 = vmatpush1.bf16.msra.mxu0 %v3594
        %5381 = vmatprep.subr.bf16.mxu0 %v3597
        %5382 = vmatpush1.bf16.msra.mxu0 %v3596
        %5383 = vmatprep.subr.bf16.mxu0 %v3599
        %5384 = vmatpush1.bf16.msra.mxu0 %v3598
        %5385 = vmatprep.subr.bf16.mxu0 %v3601
        %5386 = vmatpush1.bf16.msra.mxu0 %v3600
        %5387 = vmatprep.subr.bf16.mxu0 %v3603
        %5388 = vmatpush1.bf16.msra.mxu0 %v3602
        %5389 = vmatprep.subr.bf16.mxu0 %v3605
        %5390 = vmatpush1.bf16.msra.mxu0 %v3604
        %5391 = vmatprep.subr.bf16.mxu0 %v3607
        %5392 = vmatpush1.bf16.msra.mxu0 %v3606
        %5393 = vmatprep.subr.bf16.mxu0 %v3609
        %5394 = vmatpush1.bf16.msra.mxu0 %v3608
        %5395 = vmatprep.subr.bf16.mxu0 %v3611
        %5396 = vmatpush1.bf16.msra.mxu0 %v3610
        %5397 = vmatprep.subr.bf16.mxu0 %v3613
        %5398 = vmatpush1.bf16.msra.mxu0 %v3612
        %5399 = vmatprep.subr.bf16.mxu0 %v3615
        %5400 = vmatpush1.bf16.msra.mxu0 %v3614
        %5401 = vmatprep.subr.bf16.mxu0 %v3617
        %5402 = vmatpush1.bf16.msra.mxu0 %v3616
        %5403 = vmatprep.mubr.bf16.mxu0 %v1458
        %5404 = vmatmul.mubr.bf16.gmra.mrb[0].mxu0 %v1457
        %v5405 = vpop.f32.mrb[0].mxu0
        %v5406 = vadd.f32 %v5293, %v5405
        %v5407 = vpop.f32.mrb[0].mxu0
        %v5408 = vadd.f32 %v5295, %v5407
        %v5409 = vpop.f32.mrb[0].mxu0
        %v5410 = vadd.f32 %v5297, %v5409
        %v5411 = vpop.f32.mrb[0].mxu0
        %v5412 = vadd.f32 %v5299, %v5411
        %5413 = vmatprep.mubr.bf16.mxu0 %v1491
        %5414 = vmatmul.mubr.bf16.gmra.mrb[0].mxu0 %v1490
        %v5415 = vpop.f32.mrb[0].mxu0
        %v5416 = vadd.f32 %v5303, %v5415
        %v5417 = vpop.f32.mrb[0].mxu0
        %v5418 = vadd.f32 %v5305, %v5417
        %v5419 = vpop.f32.mrb[0].mxu0
        %v5420 = vadd.f32 %v5307, %v5419
        %v5421 = vpop.f32.mrb[0].mxu0
        %v5422 = vadd.f32 %v5309, %v5421
        %5423 = vmatprep.mubr.bf16.mxu0 %v1524
        %5424 = vmatmul.mubr.bf16.gmra.mrb[0].mxu0 %v1523
        %v5425 = vpop.f32.mrb[0].mxu0
        %v5426 = vadd.f32 %v5313, %v5425
        %v5427 = vpop.f32.mrb[0].mxu0
        %v5428 = vadd.f32 %v5315, %v5427
        %v5429 = vpop.f32.mrb[0].mxu0
        %v5430 = vadd.f32 %v5317, %v5429
        %v5431 = vpop.f32.mrb[0].mxu0
        %v5432 = vadd.f32 %v5319, %v5431
        %5433 = vmatprep.mubr.bf16.mxu0 %v1557
        %5434 = vmatmul.mubr.bf16.gmra.mrb[0].mxu0 %v1556
        %v5435 = vpop.f32.mrb[0].mxu0
        %v5436 = vadd.f32 %v5323, %v5435
        %v5437 = vpop.f32.mrb[0].mxu0
        %v5438 = vadd.f32 %v5325, %v5437
        %v5439 = vpop.f32.mrb[0].mxu0
        %v5440 = vadd.f32 %v5327, %v5439
        %v5441 = vpop.f32.mrb[0].mxu0
        %v5442 = vadd.f32 %v5329, %v5441
        %5443 = vmatprep.mubr.bf16.mxu0 %v1590
        %5444 = vmatmul.mubr.bf16.gmra.mrb[0].mxu0 %v1589
        %v5445 = vpop.f32.mrb[0].mxu0
        %v5446 = vadd.f32 %v5333, %v5445
        %v5447 = vpop.f32.mrb[0].mxu0
        %v5448 = vadd.f32 %v5335, %v5447
        %v5449 = vpop.f32.mrb[0].mxu0
        %v5450 = vadd.f32 %v5337, %v5449
        %v5451 = vpop.f32.mrb[0].mxu0
        %v5452 = vadd.f32 %v5339, %v5451
        %5453 = vmatprep.mubr.bf16.mxu0 %v1623
        %5454 = vmatmul.mubr.bf16.gmra.mrb[0].mxu0 %v1622
        %v5455 = vpop.f32.mrb[0].mxu0
        %v5456 = vadd.f32 %v5343, %v5455
        %v5457 = vpop.f32.mrb[0].mxu0
        %v5458 = vadd.f32 %v5345, %v5457
        %v5459 = vpop.f32.mrb[0].mxu0
        %v5460 = vadd.f32 %v5347, %v5459
        %v5461 = vpop.f32.mrb[0].mxu0
        %v5462 = vadd.f32 %v5349, %v5461
        %5463 = vmatprep.mubr.bf16.mxu0 %v1656
        %5464 = vmatmul.mubr.bf16.gmra.mrb[0].mxu0 %v1655
        %v5465 = vpop.f32.mrb[0].mxu0
        %v5466 = vadd.f32 %v5353, %v5465
        %v5467 = vpop.f32.mrb[0].mxu0
        %v5468 = vadd.f32 %v5355, %v5467
        %v5469 = vpop.f32.mrb[0].mxu0
        %v5470 = vadd.f32 %v5357, %v5469
        %v5471 = vpop.f32.mrb[0].mxu0
        %v5472 = vadd.f32 %v5359, %v5471
        %5473 = vmatprep.mubr.bf16.mxu0 %v1689
        %5474 = vmatmul.mubr.bf16.gmra.mrb[0].mxu0 %v1688
        %v5475 = vpop.f32.mrb[0].mxu0
        %v5476 = vadd.f32 %v5363, %v5475
        %v5477 = vpop.f32.mrb[0].mxu0
        %v5478 = vadd.f32 %v5365, %v5477
        %v5479 = vpop.f32.mrb[0].mxu0
        %v5480 = vadd.f32 %v5367, %v5479
        %v5481 = vpop.f32.mrb[0].mxu0
        %v5482 = vadd.f32 %v5369, %v5481
        %5483 = vdwg.mxu0
        %5484 = vmatprep.subr.bf16.mxu0 %v3619
        %5485 = vmatpush1.bf16.msra.mxu0 %v3618
        %5486 = vmatprep.subr.bf16.mxu0 %v3621
        %5487 = vmatpush1.bf16.msra.mxu0 %v3620
        %5488 = vmatprep.subr.bf16.mxu0 %v3623
        %5489 = vmatpush1.bf16.msra.mxu0 %v3622
        %5490 = vmatprep.subr.bf16.mxu0 %v3625
        %5491 = vmatpush1.bf16.msra.mxu0 %v3624
        %5492 = vmatprep.subr.bf16.mxu0 %v3627
        %5493 = vmatpush1.bf16.msra.mxu0 %v3626
        %5494 = vmatprep.subr.bf16.mxu0 %v3629
        %5495 = vmatpush1.bf16.msra.mxu0 %v3628
        %5496 = vmatprep.subr.bf16.mxu0 %v3631
        %5497 = vmatpush1.bf16.msra.mxu0 %v3630
        %5498 = vmatprep.subr.bf16.mxu0 %v3633
        %5499 = vmatpush1.bf16.msra.mxu0 %v3632
        %5500 = vmatprep.subr.bf16.mxu0 %v3635
        %5501 = vmatpush1.bf16.msra.mxu0 %v3634
        %5502 = vmatprep.subr.bf16.mxu0 %v3637
        %5503 = vmatpush1.bf16.msra.mxu0 %v3636
        %5504 = vmatprep.subr.bf16.mxu0 %v3639
        %5505 = vmatpush1.bf16.msra.mxu0 %v3638
        %5506 = vmatprep.subr.bf16.mxu0 %v3641
        %5507 = vmatpush1.bf16.msra.mxu0 %v3640
        %5508 = vmatprep.subr.bf16.mxu0 %v3643
        %5509 = vmatpush1.bf16.msra.mxu0 %v3642
        %5510 = vmatprep.subr.bf16.mxu0 %v3645
        %5511 = vmatpush1.bf16.msra.mxu0 %v3644
        %5512 = vmatprep.subr.bf16.mxu0 %v3647
        %5513 = vmatpush1.bf16.msra.mxu0 %v3646
        %5514 = vmatprep.subr.bf16.mxu0 %v3649
        %5515 = vmatpush1.bf16.msra.mxu0 %v3648
        %5516 = vmatprep.mubr.bf16.mxu0 %v1460
        %5517 = vmatmul.mubr.bf16.gmra.mrb[0].mxu0 %v1459
        %v5518 = vpop.f32.mrb[0].mxu0
        %v5519 = vadd.f32 %v5406, %v5518
        %v5520 = vpop.f32.mrb[0].mxu0
        %v5521 = vadd.f32 %v5408, %v5520
        %v5522 = vpop.f32.mrb[0].mxu0
        %v5523 = vadd.f32 %v5410, %v5522
        %v5524 = vpop.f32.mrb[0].mxu0
        %v5525 = vadd.f32 %v5412, %v5524
        %5526 = vmatprep.mubr.bf16.mxu0 %v1493
        %5527 = vmatmul.mubr.bf16.gmra.mrb[0].mxu0 %v1492
        %v5528 = vpop.f32.mrb[0].mxu0
        %v5529 = vadd.f32 %v5416, %v5528
        %v5530 = vpop.f32.mrb[0].mxu0
        %v5531 = vadd.f32 %v5418, %v5530
        %v5532 = vpop.f32.mrb[0].mxu0
        %v5533 = vadd.f32 %v5420, %v5532
        %v5534 = vpop.f32.mrb[0].mxu0
        %v5535 = vadd.f32 %v5422, %v5534
        %5536 = vmatprep.mubr.bf16.mxu0 %v1526
        %5537 = vmatmul.mubr.bf16.gmra.mrb[0].mxu0 %v1525
        %v5538 = vpop.f32.mrb[0].mxu0
        %v5539 = vadd.f32 %v5426, %v5538
        %v5540 = vpop.f32.mrb[0].mxu0
        %v5541 = vadd.f32 %v5428, %v5540
        %v5542 = vpop.f32.mrb[0].mxu0
        %v5543 = vadd.f32 %v5430, %v5542
        %v5544 = vpop.f32.mrb[0].mxu0
        %v5545 = vadd.f32 %v5432, %v5544
        %5546 = vmatprep.mubr.bf16.mxu0 %v1559
        %5547 = vmatmul.mubr.bf16.gmra.mrb[0].mxu0 %v1558
        %v5548 = vpop.f32.mrb[0].mxu0
        %v5549 = vadd.f32 %v5436, %v5548
        %v5550 = vpop.f32.mrb[0].mxu0
        %v5551 = vadd.f32 %v5438, %v5550
        %v5552 = vpop.f32.mrb[0].mxu0
        %v5553 = vadd.f32 %v5440, %v5552
        %v5554 = vpop.f32.mrb[0].mxu0
        %v5555 = vadd.f32 %v5442, %v5554
        %5556 = vmatprep.mubr.bf16.mxu0 %v1592
        %5557 = vmatmul.mubr.bf16.gmra.mrb[0].mxu0 %v1591
        %v5558 = vpop.f32.mrb[0].mxu0
        %v5559 = vadd.f32 %v5446, %v5558
        %v5560 = vpop.f32.mrb[0].mxu0
        %v5561 = vadd.f32 %v5448, %v5560
        %v5562 = vpop.f32.mrb[0].mxu0
        %v5563 = vadd.f32 %v5450, %v5562
        %v5564 = vpop.f32.mrb[0].mxu0
        %v5565 = vadd.f32 %v5452, %v5564
        %5566 = vmatprep.mubr.bf16.mxu0 %v1625
        %5567 = vmatmul.mubr.bf16.gmra.mrb[0].mxu0 %v1624
        %v5568 = vpop.f32.mrb[0].mxu0
        %v5569 = vadd.f32 %v5456, %v5568
        %v5570 = vpop.f32.mrb[0].mxu0
        %v5571 = vadd.f32 %v5458, %v5570
        %v5572 = vpop.f32.mrb[0].mxu0
        %v5573 = vadd.f32 %v5460, %v5572
        %v5574 = vpop.f32.mrb[0].mxu0
        %v5575 = vadd.f32 %v5462, %v5574
        %5576 = vmatprep.mubr.bf16.mxu0 %v1658
        %5577 = vmatmul.mubr.bf16.gmra.mrb[0].mxu0 %v1657
        %v5578 = vpop.f32.mrb[0].mxu0
        %v5579 = vadd.f32 %v5466, %v5578
        %v5580 = vpop.f32.mrb[0].mxu0
        %v5581 = vadd.f32 %v5468, %v5580
        %v5582 = vpop.f32.mrb[0].mxu0
        %v5583 = vadd.f32 %v5470, %v5582
        %v5584 = vpop.f32.mrb[0].mxu0
        %v5585 = vadd.f32 %v5472, %v5584
        %5586 = vmatprep.mubr.bf16.mxu0 %v1691
        %5587 = vmatmul.mubr.bf16.gmra.mrb[0].mxu0 %v1690
        %v5588 = vpop.f32.mrb[0].mxu0
        %v5589 = vadd.f32 %v5476, %v5588
        %v5590 = vpop.f32.mrb[0].mxu0
        %v5591 = vadd.f32 %v5478, %v5590
        %v5592 = vpop.f32.mrb[0].mxu0
        %v5593 = vadd.f32 %v5480, %v5592
        %v5594 = vpop.f32.mrb[0].mxu0
        %v5595 = vadd.f32 %v5482, %v5594
        %5596 = vdwg.mxu0
        %5597 = vmatprep.subr.bf16.mxu0 %v3651
        %5598 = vmatpush1.bf16.msra.mxu0 %v3650
        %5599 = vmatprep.subr.bf16.mxu0 %v3653
        %5600 = vmatpush1.bf16.msra.mxu0 %v3652
        %5601 = vmatprep.subr.bf16.mxu0 %v3655
        %5602 = vmatpush1.bf16.msra.mxu0 %v3654
        %5603 = vmatprep.subr.bf16.mxu0 %v3657
        %5604 = vmatpush1.bf16.msra.mxu0 %v3656
        %5605 = vmatprep.subr.bf16.mxu0 %v3659
        %5606 = vmatpush1.bf16.msra.mxu0 %v3658
        %5607 = vmatprep.subr.bf16.mxu0 %v3661
        %5608 = vmatpush1.bf16.msra.mxu0 %v3660
        %5609 = vmatprep.subr.bf16.mxu0 %v3663
        %5610 = vmatpush1.bf16.msra.mxu0 %v3662
        %5611 = vmatprep.subr.bf16.mxu0 %v3665
        %5612 = vmatpush1.bf16.msra.mxu0 %v3664
        %5613 = vmatprep.subr.bf16.mxu0 %v3667
        %5614 = vmatpush1.bf16.msra.mxu0 %v3666
        %5615 = vmatprep.subr.bf16.mxu0 %v3669
        %5616 = vmatpush1.bf16.msra.mxu0 %v3668
        %5617 = vmatprep.subr.bf16.mxu0 %v3671
        %5618 = vmatpush1.bf16.msra.mxu0 %v3670
        %5619 = vmatprep.subr.bf16.mxu0 %v3673
        %5620 = vmatpush1.bf16.msra.mxu0 %v3672
        %5621 = vmatprep.subr.bf16.mxu0 %v3675
        %5622 = vmatpush1.bf16.msra.mxu0 %v3674
        %5623 = vmatprep.subr.bf16.mxu0 %v3677
        %5624 = vmatpush1.bf16.msra.mxu0 %v3676
        %5625 = vmatprep.subr.bf16.mxu0 %v3679
        %5626 = vmatpush1.bf16.msra.mxu0 %v3678
        %5627 = vmatprep.subr.bf16.mxu0 %v3681
        %5628 = vmatpush1.bf16.msra.mxu0 %v3680
        %5629 = vmatprep.mubr.bf16.mxu0 %v1462
        %5630 = vmatmul.mubr.bf16.gmra.mrb[0].mxu0 %v1461
        %v5631 = vpop.f32.mrb[0].mxu0
        %v5632 = vadd.f32 %v5519, %v5631
        %v5633 = vpop.f32.mrb[0].mxu0
        %v5634 = vadd.f32 %v5521, %v5633
        %v5635 = vpop.f32.mrb[0].mxu0
        %v5636 = vadd.f32 %v5523, %v5635
        %v5637 = vpop.f32.mrb[0].mxu0
        %v5638 = vadd.f32 %v5525, %v5637
        %5639 = vmatprep.mubr.bf16.mxu0 %v1495
        %5640 = vmatmul.mubr.bf16.gmra.mrb[0].mxu0 %v1494
        %v5641 = vpop.f32.mrb[0].mxu0
        %v5642 = vadd.f32 %v5529, %v5641
        %v5643 = vpop.f32.mrb[0].mxu0
        %v5644 = vadd.f32 %v5531, %v5643
        %v5645 = vpop.f32.mrb[0].mxu0
        %v5646 = vadd.f32 %v5533, %v5645
        %v5647 = vpop.f32.mrb[0].mxu0
        %v5648 = vadd.f32 %v5535, %v5647
        %5649 = vmatprep.mubr.bf16.mxu0 %v1528
        %5650 = vmatmul.mubr.bf16.gmra.mrb[0].mxu0 %v1527
        %v5651 = vpop.f32.mrb[0].mxu0
        %v5652 = vadd.f32 %v5539, %v5651
        %v5653 = vpop.f32.mrb[0].mxu0
        %v5654 = vadd.f32 %v5541, %v5653
        %v5655 = vpop.f32.mrb[0].mxu0
        %v5656 = vadd.f32 %v5543, %v5655
        %v5657 = vpop.f32.mrb[0].mxu0
        %v5658 = vadd.f32 %v5545, %v5657
        %5659 = vmatprep.mubr.bf16.mxu0 %v1561
        %5660 = vmatmul.mubr.bf16.gmra.mrb[0].mxu0 %v1560
        %v5661 = vpop.f32.mrb[0].mxu0
        %v5662 = vadd.f32 %v5549, %v5661
        %v5663 = vpop.f32.mrb[0].mxu0
        %v5664 = vadd.f32 %v5551, %v5663
        %v5665 = vpop.f32.mrb[0].mxu0
        %v5666 = vadd.f32 %v5553, %v5665
        %v5667 = vpop.f32.mrb[0].mxu0
        %v5668 = vadd.f32 %v5555, %v5667
        %5669 = vmatprep.mubr.bf16.mxu0 %v1594
        %5670 = vmatmul.mubr.bf16.gmra.mrb[0].mxu0 %v1593
        %v5671 = vpop.f32.mrb[0].mxu0
        %v5672 = vadd.f32 %v5559, %v5671
        %v5673 = vpop.f32.mrb[0].mxu0
        %v5674 = vadd.f32 %v5561, %v5673
        %v5675 = vpop.f32.mrb[0].mxu0
        %v5676 = vadd.f32 %v5563, %v5675
        %v5677 = vpop.f32.mrb[0].mxu0
        %v5678 = vadd.f32 %v5565, %v5677
        %5679 = vmatprep.mubr.bf16.mxu0 %v1627
        %5680 = vmatmul.mubr.bf16.gmra.mrb[0].mxu0 %v1626
        %v5681 = vpop.f32.mrb[0].mxu0
        %v5682 = vadd.f32 %v5569, %v5681
        %v5683 = vpop.f32.mrb[0].mxu0
        %v5684 = vadd.f32 %v5571, %v5683
        %v5685 = vpop.f32.mrb[0].mxu0
        %v5686 = vadd.f32 %v5573, %v5685
        %v5687 = vpop.f32.mrb[0].mxu0
        %v5688 = vadd.f32 %v5575, %v5687
        %5689 = vmatprep.mubr.bf16.mxu0 %v1660
        %5690 = vmatmul.mubr.bf16.gmra.mrb[0].mxu0 %v1659
        %v5691 = vpop.f32.mrb[0].mxu0
        %v5692 = vadd.f32 %v5579, %v5691
        %v5693 = vpop.f32.mrb[0].mxu0
        %v5694 = vadd.f32 %v5581, %v5693
        %v5695 = vpop.f32.mrb[0].mxu0
        %v5696 = vadd.f32 %v5583, %v5695
        %v5697 = vpop.f32.mrb[0].mxu0
        %v5698 = vadd.f32 %v5585, %v5697
        %5699 = vmatprep.mubr.bf16.mxu0 %v1693
        %5700 = vmatmul.mubr.bf16.gmra.mrb[0].mxu0 %v1692
        %v5701 = vpop.f32.mrb[0].mxu0
        %v5702 = vadd.f32 %v5589, %v5701
        %v5703 = vpop.f32.mrb[0].mxu0
        %v5704 = vadd.f32 %v5591, %v5703
        %v5705 = vpop.f32.mrb[0].mxu0
        %v5706 = vadd.f32 %v5593, %v5705
        %v5707 = vpop.f32.mrb[0].mxu0
        %v5708 = vadd.f32 %v5595, %v5707
        %5709 = vdwg.mxu0
        %5710 = vmatprep.subr.bf16.mxu0 %v3683
        %5711 = vmatpush1.bf16.msra.mxu0 %v3682
        %5712 = vmatprep.subr.bf16.mxu0 %v3685
        %5713 = vmatpush1.bf16.msra.mxu0 %v3684
        %5714 = vmatprep.subr.bf16.mxu0 %v3687
        %5715 = vmatpush1.bf16.msra.mxu0 %v3686
        %5716 = vmatprep.subr.bf16.mxu0 %v3689
        %5717 = vmatpush1.bf16.msra.mxu0 %v3688
        %5718 = vmatprep.subr.bf16.mxu0 %v3691
        %5719 = vmatpush1.bf16.msra.mxu0 %v3690
        %5720 = vmatprep.subr.bf16.mxu0 %v3693
        %5721 = vmatpush1.bf16.msra.mxu0 %v3692
        %5722 = vmatprep.subr.bf16.mxu0 %v3695
        %5723 = vmatpush1.bf16.msra.mxu0 %v3694
        %5724 = vmatprep.subr.bf16.mxu0 %v3697
        %5725 = vmatpush1.bf16.msra.mxu0 %v3696
        %5726 = vmatprep.subr.bf16.mxu0 %v3699
        %5727 = vmatpush1.bf16.msra.mxu0 %v3698
        %5728 = vmatprep.subr.bf16.mxu0 %v3701
        %5729 = vmatpush1.bf16.msra.mxu0 %v3700
        %5730 = vmatprep.subr.bf16.mxu0 %v3703
        %5731 = vmatpush1.bf16.msra.mxu0 %v3702
        %5732 = vmatprep.subr.bf16.mxu0 %v3705
        %5733 = vmatpush1.bf16.msra.mxu0 %v3704
        %5734 = vmatprep.subr.bf16.mxu0 %v3707
        %5735 = vmatpush1.bf16.msra.mxu0 %v3706
        %5736 = vmatprep.subr.bf16.mxu0 %v3709
        %5737 = vmatpush1.bf16.msra.mxu0 %v3708
        %5738 = vmatprep.subr.bf16.mxu0 %v3711
        %5739 = vmatpush1.bf16.msra.mxu0 %v3710
        %5740 = vmatprep.subr.bf16.mxu0 %v3713
        %5741 = vmatpush1.bf16.msra.mxu0 %v3712
        %5742 = vmatprep.mubr.bf16.mxu0 %v1464
        %5743 = vmatmul.mubr.bf16.gmra.mrb[0].mxu0 %v1463
        %v5744 = vpop.f32.mrb[0].mxu0
        %v5745 = vadd.f32 %v5632, %v5744
        %v5746 = vpop.f32.mrb[0].mxu0
        %v5747 = vadd.f32 %v5634, %v5746
        %v5748 = vpop.f32.mrb[0].mxu0
        %v5749 = vadd.f32 %v5636, %v5748
        %v5750 = vpop.f32.mrb[0].mxu0
        %v5751 = vadd.f32 %v5638, %v5750
        %5752 = vmatprep.mubr.bf16.mxu0 %v1497
        %5753 = vmatmul.mubr.bf16.gmra.mrb[0].mxu0 %v1496
        %v5754 = vpop.f32.mrb[0].mxu0
        %v5755 = vadd.f32 %v5642, %v5754
        %v5756 = vpop.f32.mrb[0].mxu0
        %v5757 = vadd.f32 %v5644, %v5756
        %v5758 = vpop.f32.mrb[0].mxu0
        %v5759 = vadd.f32 %v5646, %v5758
        %v5760 = vpop.f32.mrb[0].mxu0
        %v5761 = vadd.f32 %v5648, %v5760
        %5762 = vmatprep.mubr.bf16.mxu0 %v1530
        %5763 = vmatmul.mubr.bf16.gmra.mrb[0].mxu0 %v1529
        %v5764 = vpop.f32.mrb[0].mxu0
        %v5765 = vadd.f32 %v5652, %v5764
        %v5766 = vpop.f32.mrb[0].mxu0
        %v5767 = vadd.f32 %v5654, %v5766
        %v5768 = vpop.f32.mrb[0].mxu0
        %v5769 = vadd.f32 %v5656, %v5768
        %v5770 = vpop.f32.mrb[0].mxu0
        %v5771 = vadd.f32 %v5658, %v5770
        %5772 = vmatprep.mubr.bf16.mxu0 %v1563
        %5773 = vmatmul.mubr.bf16.gmra.mrb[0].mxu0 %v1562
        %v5774 = vpop.f32.mrb[0].mxu0
        %v5775 = vadd.f32 %v5662, %v5774
        %v5776 = vpop.f32.mrb[0].mxu0
        %v5777 = vadd.f32 %v5664, %v5776
        %v5778 = vpop.f32.mrb[0].mxu0
        %v5779 = vadd.f32 %v5666, %v5778
        %v5780 = vpop.f32.mrb[0].mxu0
        %v5781 = vadd.f32 %v5668, %v5780
        %5782 = vmatprep.mubr.bf16.mxu0 %v1596
        %5783 = vmatmul.mubr.bf16.gmra.mrb[0].mxu0 %v1595
        %v5784 = vpop.f32.mrb[0].mxu0
        %v5785 = vadd.f32 %v5672, %v5784
        %v5786 = vpop.f32.mrb[0].mxu0
        %v5787 = vadd.f32 %v5674, %v5786
        %v5788 = vpop.f32.mrb[0].mxu0
        %v5789 = vadd.f32 %v5676, %v5788
        %v5790 = vpop.f32.mrb[0].mxu0
        %v5791 = vadd.f32 %v5678, %v5790
        %5792 = vmatprep.mubr.bf16.mxu0 %v1629
        %5793 = vmatmul.mubr.bf16.gmra.mrb[0].mxu0 %v1628
        %v5794 = vpop.f32.mrb[0].mxu0
        %v5795 = vadd.f32 %v5682, %v5794
        %v5796 = vpop.f32.mrb[0].mxu0
        %v5797 = vadd.f32 %v5684, %v5796
        %v5798 = vpop.f32.mrb[0].mxu0
        %v5799 = vadd.f32 %v5686, %v5798
        %v5800 = vpop.f32.mrb[0].mxu0
        %v5801 = vadd.f32 %v5688, %v5800
        %5802 = vmatprep.mubr.bf16.mxu0 %v1662
        %5803 = vmatmul.mubr.bf16.gmra.mrb[0].mxu0 %v1661
        %v5804 = vpop.f32.mrb[0].mxu0
        %v5805 = vadd.f32 %v5692, %v5804
        %v5806 = vpop.f32.mrb[0].mxu0
        %v5807 = vadd.f32 %v5694, %v5806
        %v5808 = vpop.f32.mrb[0].mxu0
        %v5809 = vadd.f32 %v5696, %v5808
        %v5810 = vpop.f32.mrb[0].mxu0
        %v5811 = vadd.f32 %v5698, %v5810
        %5812 = vmatprep.mubr.bf16.mxu0 %v1695
        %5813 = vmatmul.mubr.bf16.gmra.mrb[0].mxu0 %v1694
        %v5814 = vpop.f32.mrb[0].mxu0
        %v5815 = vadd.f32 %v5702, %v5814
        %v5816 = vpop.f32.mrb[0].mxu0
        %v5817 = vadd.f32 %v5704, %v5816
        %v5818 = vpop.f32.mrb[0].mxu0
        %v5819 = vadd.f32 %v5706, %v5818
        %v5820 = vpop.f32.mrb[0].mxu0
        %v5821 = vadd.f32 %v5708, %v5820
        %5822 = vdwg.mxu0
        %5823 = vmatprep.subr.bf16.mxu0 %v3715
        %5824 = vmatpush1.bf16.msra.mxu0 %v3714
        %5825 = vmatprep.subr.bf16.mxu0 %v3717
        %5826 = vmatpush1.bf16.msra.mxu0 %v3716
        %5827 = vmatprep.subr.bf16.mxu0 %v3719
        %5828 = vmatpush1.bf16.msra.mxu0 %v3718
        %5829 = vmatprep.subr.bf16.mxu0 %v3721
        %5830 = vmatpush1.bf16.msra.mxu0 %v3720
        %5831 = vmatprep.subr.bf16.mxu0 %v3723
        %5832 = vmatpush1.bf16.msra.mxu0 %v3722
        %5833 = vmatprep.subr.bf16.mxu0 %v3725
        %5834 = vmatpush1.bf16.msra.mxu0 %v3724
        %5835 = vmatprep.subr.bf16.mxu0 %v3727
        %5836 = vmatpush1.bf16.msra.mxu0 %v3726
        %5837 = vmatprep.subr.bf16.mxu0 %v3729
        %5838 = vmatpush1.bf16.msra.mxu0 %v3728
        %5839 = vmatprep.subr.bf16.mxu0 %v3731
        %5840 = vmatpush1.bf16.msra.mxu0 %v3730
        %5841 = vmatprep.subr.bf16.mxu0 %v3733
        %5842 = vmatpush1.bf16.msra.mxu0 %v3732
        %5843 = vmatprep.subr.bf16.mxu0 %v3735
        %5844 = vmatpush1.bf16.msra.mxu0 %v3734
        %5845 = vmatprep.subr.bf16.mxu0 %v3737
        %5846 = vmatpush1.bf16.msra.mxu0 %v3736
        %5847 = vmatprep.subr.bf16.mxu0 %v3739
        %5848 = vmatpush1.bf16.msra.mxu0 %v3738
        %5849 = vmatprep.subr.bf16.mxu0 %v3741
        %5850 = vmatpush1.bf16.msra.mxu0 %v3740
        %5851 = vmatprep.subr.bf16.mxu0 %v3743
        %5852 = vmatpush1.bf16.msra.mxu0 %v3742
        %5853 = vmatprep.subr.bf16.mxu0 %v3745
        %5854 = vmatpush1.bf16.msra.mxu0 %v3744
        %5855 = vmatprep.mubr.bf16.mxu0 %v1466
        %5856 = vmatmul.mubr.bf16.gmra.mrb[0].mxu0 %v1465
        %v5857 = vpop.f32.mrb[0].mxu0
        %v5858 = vadd.f32 %v5745, %v5857
        %v5859 = vpop.f32.mrb[0].mxu0
        %v5860 = vadd.f32 %v5747, %v5859
        %v5861 = vpop.f32.mrb[0].mxu0
        %v5862 = vadd.f32 %v5749, %v5861
        %v5863 = vpop.f32.mrb[0].mxu0
        %v5864 = vadd.f32 %v5751, %v5863
        %5865 = vmatprep.mubr.bf16.mxu0 %v1499
        %5866 = vmatmul.mubr.bf16.gmra.mrb[0].mxu0 %v1498
        %v5867 = vpop.f32.mrb[0].mxu0
        %v5868 = vadd.f32 %v5755, %v5867
        %v5869 = vpop.f32.mrb[0].mxu0
        %v5870 = vadd.f32 %v5757, %v5869
        %v5871 = vpop.f32.mrb[0].mxu0
        %v5872 = vadd.f32 %v5759, %v5871
        %v5873 = vpop.f32.mrb[0].mxu0
        %v5874 = vadd.f32 %v5761, %v5873
        %5875 = vmatprep.mubr.bf16.mxu0 %v1532
        %5876 = vmatmul.mubr.bf16.gmra.mrb[0].mxu0 %v1531
        %v5877 = vpop.f32.mrb[0].mxu0
        %v5878 = vadd.f32 %v5765, %v5877
        %v5879 = vpop.f32.mrb[0].mxu0
        %v5880 = vadd.f32 %v5767, %v5879
        %v5881 = vpop.f32.mrb[0].mxu0
        %v5882 = vadd.f32 %v5769, %v5881
        %v5883 = vpop.f32.mrb[0].mxu0
        %v5884 = vadd.f32 %v5771, %v5883
        %5885 = vmatprep.mubr.bf16.mxu0 %v1565
        %5886 = vmatmul.mubr.bf16.gmra.mrb[0].mxu0 %v1564
        %v5887 = vpop.f32.mrb[0].mxu0
        %v5888 = vadd.f32 %v5775, %v5887
        %v5889 = vpop.f32.mrb[0].mxu0
        %v5890 = vadd.f32 %v5777, %v5889
        %v5891 = vpop.f32.mrb[0].mxu0
        %v5892 = vadd.f32 %v5779, %v5891
        %v5893 = vpop.f32.mrb[0].mxu0
        %v5894 = vadd.f32 %v5781, %v5893
        %5895 = vmatprep.mubr.bf16.mxu0 %v1598
        %5896 = vmatmul.mubr.bf16.gmra.mrb[0].mxu0 %v1597
        %v5897 = vpop.f32.mrb[0].mxu0
        %v5898 = vadd.f32 %v5785, %v5897
        %v5899 = vpop.f32.mrb[0].mxu0
        %v5900 = vadd.f32 %v5787, %v5899
        %v5901 = vpop.f32.mrb[0].mxu0
        %v5902 = vadd.f32 %v5789, %v5901
        %v5903 = vpop.f32.mrb[0].mxu0
        %v5904 = vadd.f32 %v5791, %v5903
        %5905 = vmatprep.mubr.bf16.mxu0 %v1631
        %5906 = vmatmul.mubr.bf16.gmra.mrb[0].mxu0 %v1630
        %v5907 = vpop.f32.mrb[0].mxu0
        %v5908 = vadd.f32 %v5795, %v5907
        %v5909 = vpop.f32.mrb[0].mxu0
        %v5910 = vadd.f32 %v5797, %v5909
        %v5911 = vpop.f32.mrb[0].mxu0
        %v5912 = vadd.f32 %v5799, %v5911
        %v5913 = vpop.f32.mrb[0].mxu0
        %v5914 = vadd.f32 %v5801, %v5913
        %5915 = vmatprep.mubr.bf16.mxu0 %v1664
        %5916 = vmatmul.mubr.bf16.gmra.mrb[0].mxu0 %v1663
        %v5917 = vpop.f32.mrb[0].mxu0
        %v5918 = vadd.f32 %v5805, %v5917
        %v5919 = vpop.f32.mrb[0].mxu0
        %v5920 = vadd.f32 %v5807, %v5919
        %v5921 = vpop.f32.mrb[0].mxu0
        %v5922 = vadd.f32 %v5809, %v5921
        %v5923 = vpop.f32.mrb[0].mxu0
        %v5924 = vadd.f32 %v5811, %v5923
        %5925 = vmatprep.mubr.bf16.mxu0 %v1697
        %5926 = vmatmul.mubr.bf16.gmra.mrb[0].mxu0 %v1696
        %v5927 = vpop.f32.mrb[0].mxu0
        %v5928 = vadd.f32 %v5815, %v5927
        %v5929 = vpop.f32.mrb[0].mxu0
        %v5930 = vadd.f32 %v5817, %v5929
        %v5931 = vpop.f32.mrb[0].mxu0
        %v5932 = vadd.f32 %v5819, %v5931
        %v5933 = vpop.f32.mrb[0].mxu0
        %v5934 = vadd.f32 %v5821, %v5933
        %5935 = vdwg.mxu0
        %5936 = vmatprep.subr.bf16.mxu0 %v3747
        %5937 = vmatpush1.bf16.msra.mxu0 %v3746
        %5938 = vmatprep.subr.bf16.mxu0 %v3749
        %5939 = vmatpush1.bf16.msra.mxu0 %v3748
        %5940 = vmatprep.subr.bf16.mxu0 %v3751
        %5941 = vmatpush1.bf16.msra.mxu0 %v3750
        %5942 = vmatprep.subr.bf16.mxu0 %v3753
        %5943 = vmatpush1.bf16.msra.mxu0 %v3752
        %5944 = vmatprep.subr.bf16.mxu0 %v3755
        %5945 = vmatpush1.bf16.msra.mxu0 %v3754
        %5946 = vmatprep.subr.bf16.mxu0 %v3757
        %5947 = vmatpush1.bf16.msra.mxu0 %v3756
        %5948 = vmatprep.subr.bf16.mxu0 %v3759
        %5949 = vmatpush1.bf16.msra.mxu0 %v3758
        %5950 = vmatprep.subr.bf16.mxu0 %v3761
        %5951 = vmatpush1.bf16.msra.mxu0 %v3760
        %5952 = vmatprep.subr.bf16.mxu0 %v3763
        %5953 = vmatpush1.bf16.msra.mxu0 %v3762
        %5954 = vmatprep.subr.bf16.mxu0 %v3765
        %5955 = vmatpush1.bf16.msra.mxu0 %v3764
        %5956 = vmatprep.subr.bf16.mxu0 %v3767
        %5957 = vmatpush1.bf16.msra.mxu0 %v3766
        %5958 = vmatprep.subr.bf16.mxu0 %v3769
        %5959 = vmatpush1.bf16.msra.mxu0 %v3768
        %5960 = vmatprep.subr.bf16.mxu0 %v3771
        %5961 = vmatpush1.bf16.msra.mxu0 %v3770
        %5962 = vmatprep.subr.bf16.mxu0 %v3773
        %5963 = vmatpush1.bf16.msra.mxu0 %v3772
        %5964 = vmatprep.subr.bf16.mxu0 %v3775
        %5965 = vmatpush1.bf16.msra.mxu0 %v3774
        %5966 = vmatprep.subr.bf16.mxu0 %v3777
        %5967 = vmatpush1.bf16.msra.mxu0 %v3776
        %5968 = vmatprep.mubr.bf16.mxu0 %v1468
        %5969 = vmatmul.mubr.bf16.gmra.mrb[0].mxu0 %v1467
        %v5970 = vpop.f32.mrb[0].mxu0
        %v5971 = vadd.f32 %v5858, %v5970
        %v5972 = vpop.f32.mrb[0].mxu0
        %v5973 = vadd.f32 %v5860, %v5972
        %v5974 = vpop.f32.mrb[0].mxu0
        %v5975 = vadd.f32 %v5862, %v5974
        %v5976 = vpop.f32.mrb[0].mxu0
        %v5977 = vadd.f32 %v5864, %v5976
        %5978 = vmatprep.mubr.bf16.mxu0 %v1501
        %5979 = vmatmul.mubr.bf16.gmra.mrb[0].mxu0 %v1500
        %v5980 = vpop.f32.mrb[0].mxu0
        %v5981 = vadd.f32 %v5868, %v5980
        %v5982 = vpop.f32.mrb[0].mxu0
        %v5983 = vadd.f32 %v5870, %v5982
        %v5984 = vpop.f32.mrb[0].mxu0
        %v5985 = vadd.f32 %v5872, %v5984
        %v5986 = vpop.f32.mrb[0].mxu0
        %v5987 = vadd.f32 %v5874, %v5986
        %5988 = vmatprep.mubr.bf16.mxu0 %v1534
        %5989 = vmatmul.mubr.bf16.gmra.mrb[0].mxu0 %v1533
        %v5990 = vpop.f32.mrb[0].mxu0
        %v5991 = vadd.f32 %v5878, %v5990
        %v5992 = vpop.f32.mrb[0].mxu0
        %v5993 = vadd.f32 %v5880, %v5992
        %v5994 = vpop.f32.mrb[0].mxu0
        %v5995 = vadd.f32 %v5882, %v5994
        %v5996 = vpop.f32.mrb[0].mxu0
        %v5997 = vadd.f32 %v5884, %v5996
        %5998 = vmatprep.mubr.bf16.mxu0 %v1567
        %5999 = vmatmul.mubr.bf16.gmra.mrb[0].mxu0 %v1566
        %v6000 = vpop.f32.mrb[0].mxu0
        %v6001 = vadd.f32 %v5888, %v6000
        %v6002 = vpop.f32.mrb[0].mxu0
        %v6003 = vadd.f32 %v5890, %v6002
        %v6004 = vpop.f32.mrb[0].mxu0
        %v6005 = vadd.f32 %v5892, %v6004
        %v6006 = vpop.f32.mrb[0].mxu0
        %v6007 = vadd.f32 %v5894, %v6006
        %6008 = vmatprep.mubr.bf16.mxu0 %v1600
        %6009 = vmatmul.mubr.bf16.gmra.mrb[0].mxu0 %v1599
        %v6010 = vpop.f32.mrb[0].mxu0
        %v6011 = vadd.f32 %v5898, %v6010
        %v6012 = vpop.f32.mrb[0].mxu0
        %v6013 = vadd.f32 %v5900, %v6012
        %v6014 = vpop.f32.mrb[0].mxu0
        %v6015 = vadd.f32 %v5902, %v6014
        %v6016 = vpop.f32.mrb[0].mxu0
        %v6017 = vadd.f32 %v5904, %v6016
        %6018 = vmatprep.mubr.bf16.mxu0 %v1633
        %6019 = vmatmul.mubr.bf16.gmra.mrb[0].mxu0 %v1632
        %v6020 = vpop.f32.mrb[0].mxu0
        %v6021 = vadd.f32 %v5908, %v6020
        %v6022 = vpop.f32.mrb[0].mxu0
        %v6023 = vadd.f32 %v5910, %v6022
        %v6024 = vpop.f32.mrb[0].mxu0
        %v6025 = vadd.f32 %v5912, %v6024
        %v6026 = vpop.f32.mrb[0].mxu0
        %v6027 = vadd.f32 %v5914, %v6026
        %6028 = vmatprep.mubr.bf16.mxu0 %v1666
        %6029 = vmatmul.mubr.bf16.gmra.mrb[0].mxu0 %v1665
        %v6030 = vpop.f32.mrb[0].mxu0
        %v6031 = vadd.f32 %v5918, %v6030
        %v6032 = vpop.f32.mrb[0].mxu0
        %v6033 = vadd.f32 %v5920, %v6032
        %v6034 = vpop.f32.mrb[0].mxu0
        %v6035 = vadd.f32 %v5922, %v6034
        %v6036 = vpop.f32.mrb[0].mxu0
        %v6037 = vadd.f32 %v5924, %v6036
        %6038 = vmatprep.mubr.bf16.mxu0 %v1699
        %6039 = vmatmul.mubr.bf16.gmra.mrb[0].mxu0 %v1698
        %v6040 = vpop.f32.mrb[0].mxu0
        %v6041 = vadd.f32 %v5928, %v6040
        %v6042 = vpop.f32.mrb[0].mxu0
        %v6043 = vadd.f32 %v5930, %v6042
        %v6044 = vpop.f32.mrb[0].mxu0
        %v6045 = vadd.f32 %v5932, %v6044
        %v6046 = vpop.f32.mrb[0].mxu0
        %v6047 = vadd.f32 %v5934, %v6046
        %6048 = vdwg.mxu0
        %6049 = vmatprep.subr.bf16.mxu0 %v3779
        %6050 = vmatpush1.bf16.msra.mxu0 %v3778
        %6051 = vmatprep.subr.bf16.mxu0 %v3781
        %6052 = vmatpush1.bf16.msra.mxu0 %v3780
        %6053 = vmatprep.subr.bf16.mxu0 %v3783
        %6054 = vmatpush1.bf16.msra.mxu0 %v3782
        %6055 = vmatprep.subr.bf16.mxu0 %v3785
        %6056 = vmatpush1.bf16.msra.mxu0 %v3784
        %6057 = vmatprep.subr.bf16.mxu0 %v3787
        %6058 = vmatpush1.bf16.msra.mxu0 %v3786
        %6059 = vmatprep.subr.bf16.mxu0 %v3789
        %6060 = vmatpush1.bf16.msra.mxu0 %v3788
        %6061 = vmatprep.subr.bf16.mxu0 %v3791
        %6062 = vmatpush1.bf16.msra.mxu0 %v3790
        %6063 = vmatprep.subr.bf16.mxu0 %v3793
        %6064 = vmatpush1.bf16.msra.mxu0 %v3792
        %6065 = vmatprep.subr.bf16.mxu0 %v3795
        %6066 = vmatpush1.bf16.msra.mxu0 %v3794
        %6067 = vmatprep.subr.bf16.mxu0 %v3797
        %6068 = vmatpush1.bf16.msra.mxu0 %v3796
        %6069 = vmatprep.subr.bf16.mxu0 %v3799
        %6070 = vmatpush1.bf16.msra.mxu0 %v3798
        %6071 = vmatprep.subr.bf16.mxu0 %v3801
        %6072 = vmatpush1.bf16.msra.mxu0 %v3800
        %6073 = vmatprep.subr.bf16.mxu0 %v3803
        %6074 = vmatpush1.bf16.msra.mxu0 %v3802
        %6075 = vmatprep.subr.bf16.mxu0 %v3805
        %6076 = vmatpush1.bf16.msra.mxu0 %v3804
        %6077 = vmatprep.subr.bf16.mxu0 %v3807
        %6078 = vmatpush1.bf16.msra.mxu0 %v3806
        %6079 = vmatprep.subr.bf16.mxu0 %v3809
        %6080 = vmatpush1.bf16.msra.mxu0 %v3808
        %6081 = vmatprep.mubr.bf16.mxu0 %v1470
        %6082 = vmatmul.mubr.bf16.gmra.mrb[0].mxu0 %v1469
        %v6083 = vpop.f32.mrb[0].mxu0
        %v6084 = vadd.f32 %v5971, %v6083
        %v6085 = vpop.f32.mrb[0].mxu0
        %v6086 = vadd.f32 %v5973, %v6085
        %v6087 = vpop.f32.mrb[0].mxu0
        %v6088 = vadd.f32 %v5975, %v6087
        %v6089 = vpop.f32.mrb[0].mxu0
        %v6090 = vadd.f32 %v5977, %v6089
        %6091 = vmatprep.mubr.bf16.mxu0 %v1503
        %6092 = vmatmul.mubr.bf16.gmra.mrb[0].mxu0 %v1502
        %v6093 = vpop.f32.mrb[0].mxu0
        %v6094 = vadd.f32 %v5981, %v6093
        %v6095 = vpop.f32.mrb[0].mxu0
        %v6096 = vadd.f32 %v5983, %v6095
        %v6097 = vpop.f32.mrb[0].mxu0
        %v6098 = vadd.f32 %v5985, %v6097
        %v6099 = vpop.f32.mrb[0].mxu0
        %v6100 = vadd.f32 %v5987, %v6099
        %6101 = vmatprep.mubr.bf16.mxu0 %v1536
        %6102 = vmatmul.mubr.bf16.gmra.mrb[0].mxu0 %v1535
        %v6103 = vpop.f32.mrb[0].mxu0
        %v6104 = vadd.f32 %v5991, %v6103
        %v6105 = vpop.f32.mrb[0].mxu0
        %v6106 = vadd.f32 %v5993, %v6105
        %v6107 = vpop.f32.mrb[0].mxu0
        %v6108 = vadd.f32 %v5995, %v6107
        %v6109 = vpop.f32.mrb[0].mxu0
        %v6110 = vadd.f32 %v5997, %v6109
        %6111 = vmatprep.mubr.bf16.mxu0 %v1569
        %6112 = vmatmul.mubr.bf16.gmra.mrb[0].mxu0 %v1568
        %v6113 = vpop.f32.mrb[0].mxu0
        %v6114 = vadd.f32 %v6001, %v6113
        %v6115 = vpop.f32.mrb[0].mxu0
        %v6116 = vadd.f32 %v6003, %v6115
        %v6117 = vpop.f32.mrb[0].mxu0
        %v6118 = vadd.f32 %v6005, %v6117
        %v6119 = vpop.f32.mrb[0].mxu0
        %v6120 = vadd.f32 %v6007, %v6119
        %6121 = vmatprep.mubr.bf16.mxu0 %v1602
        %6122 = vmatmul.mubr.bf16.gmra.mrb[0].mxu0 %v1601
        %v6123 = vpop.f32.mrb[0].mxu0
        %v6124 = vadd.f32 %v6011, %v6123
        %v6125 = vpop.f32.mrb[0].mxu0
        %v6126 = vadd.f32 %v6013, %v6125
        %v6127 = vpop.f32.mrb[0].mxu0
        %v6128 = vadd.f32 %v6015, %v6127
        %v6129 = vpop.f32.mrb[0].mxu0
        %v6130 = vadd.f32 %v6017, %v6129
        %6131 = vmatprep.mubr.bf16.mxu0 %v1635
        %6132 = vmatmul.mubr.bf16.gmra.mrb[0].mxu0 %v1634
        %v6133 = vpop.f32.mrb[0].mxu0
        %v6134 = vadd.f32 %v6021, %v6133
        %v6135 = vpop.f32.mrb[0].mxu0
        %v6136 = vadd.f32 %v6023, %v6135
        %v6137 = vpop.f32.mrb[0].mxu0
        %v6138 = vadd.f32 %v6025, %v6137
        %v6139 = vpop.f32.mrb[0].mxu0
        %v6140 = vadd.f32 %v6027, %v6139
        %6141 = vmatprep.mubr.bf16.mxu0 %v1668
        %6142 = vmatmul.mubr.bf16.gmra.mrb[0].mxu0 %v1667
        %v6143 = vpop.f32.mrb[0].mxu0
        %v6144 = vadd.f32 %v6031, %v6143
        %v6145 = vpop.f32.mrb[0].mxu0
        %v6146 = vadd.f32 %v6033, %v6145
        %v6147 = vpop.f32.mrb[0].mxu0
        %v6148 = vadd.f32 %v6035, %v6147
        %v6149 = vpop.f32.mrb[0].mxu0
        %v6150 = vadd.f32 %v6037, %v6149
        %6151 = vmatprep.mubr.bf16.mxu0 %v1701
        %6152 = vmatmul.mubr.bf16.gmra.mrb[0].mxu0 %v1700
        %v6153 = vpop.f32.mrb[0].mxu0
        %v6154 = vadd.f32 %v6041, %v6153
        %v6155 = vpop.f32.mrb[0].mxu0
        %v6156 = vadd.f32 %v6043, %v6155
        %v6157 = vpop.f32.mrb[0].mxu0
        %v6158 = vadd.f32 %v6045, %v6157
        %v6159 = vpop.f32.mrb[0].mxu0
        %v6160 = vadd.f32 %v6047, %v6159
        %6161 = vdwg.mxu0
        %6162 = vmatprep.subr.bf16.mxu0 %v3811
        %6163 = vmatpush1.bf16.msra.mxu0 %v3810
        %6164 = vmatprep.subr.bf16.mxu0 %v3813
        %6165 = vmatpush1.bf16.msra.mxu0 %v3812
        %6166 = vmatprep.subr.bf16.mxu0 %v3815
        %6167 = vmatpush1.bf16.msra.mxu0 %v3814
        %6168 = vmatprep.subr.bf16.mxu0 %v3817
        %6169 = vmatpush1.bf16.msra.mxu0 %v3816
        %6170 = vmatprep.subr.bf16.mxu0 %v3819
        %6171 = vmatpush1.bf16.msra.mxu0 %v3818
        %6172 = vmatprep.subr.bf16.mxu0 %v3821
        %6173 = vmatpush1.bf16.msra.mxu0 %v3820
        %6174 = vmatprep.subr.bf16.mxu0 %v3823
        %6175 = vmatpush1.bf16.msra.mxu0 %v3822
        %6176 = vmatprep.subr.bf16.mxu0 %v3825
        %6177 = vmatpush1.bf16.msra.mxu0 %v3824
        %6178 = vmatprep.subr.bf16.mxu0 0
        %6179 = vmatpush1.bf16.msra.mxu0 0
        %6180 = vmatprep.subr.bf16.mxu0 0
        %6181 = vmatpush1.bf16.msra.mxu0 0
        %6182 = vmatprep.subr.bf16.mxu0 0
        %6183 = vmatpush1.bf16.msra.mxu0 0
        %6184 = vmatprep.subr.bf16.mxu0 0
        %6185 = vmatpush1.bf16.msra.mxu0 0
        %6186 = vmatprep.subr.bf16.mxu0 0
        %6187 = vmatpush1.bf16.msra.mxu0 0
        %6188 = vmatprep.subr.bf16.mxu0 0
        %6189 = vmatpush1.bf16.msra.mxu0 0
        %6190 = vmatprep.subr.bf16.mxu0 0
        %6191 = vmatpush1.bf16.msra.mxu0 0
        %6192 = vmatprep.subr.bf16.mxu0 0
        %6193 = vmatpush1.bf16.msra.mxu0 0
        %6194 = vmatprep.mubr.bf16.mxu0 0
        %6195 = vmatmul.mubr.bf16.gmra.mrb[0].mxu0 %v1471
        %v6196 = vpop.f32.mrb[0].mxu0
        %v6197 = vadd.f32 %v6084, %v6196
        %v6198 = vpop.f32.mrb[0].mxu0
        %v6199 = vadd.f32 %v6086, %v6198
        %v6200 = vpop.f32.mrb[0].mxu0
        %v6201 = vadd.f32 %v6088, %v6200
        %v6202 = vpop.f32.mrb[0].mxu0
        %v6203 = vadd.f32 %v6090, %v6202
        %6204 = vmatprep.mubr.bf16.mxu0 0
        %6205 = vmatmul.mubr.bf16.gmra.mrb[0].mxu0 %v1504
        %v6206 = vpop.f32.mrb[0].mxu0
        %v6207 = vadd.f32 %v6094, %v6206
        %v6208 = vpop.f32.mrb[0].mxu0
        %v6209 = vadd.f32 %v6096, %v6208
        %v6210 = vpop.f32.mrb[0].mxu0
        %v6211 = vadd.f32 %v6098, %v6210
        %v6212 = vpop.f32.mrb[0].mxu0
        %v6213 = vadd.f32 %v6100, %v6212
        %6214 = vmatprep.mubr.bf16.mxu0 0
        %6215 = vmatmul.mubr.bf16.gmra.mrb[0].mxu0 %v1537
        %v6216 = vpop.f32.mrb[0].mxu0
        %v6217 = vadd.f32 %v6104, %v6216
        %v6218 = vpop.f32.mrb[0].mxu0
        %v6219 = vadd.f32 %v6106, %v6218
        %v6220 = vpop.f32.mrb[0].mxu0
        %v6221 = vadd.f32 %v6108, %v6220
        %v6222 = vpop.f32.mrb[0].mxu0
        %v6223 = vadd.f32 %v6110, %v6222
        %6224 = vmatprep.mubr.bf16.mxu0 0
        %6225 = vmatmul.mubr.bf16.gmra.mrb[0].mxu0 %v1570
        %v6226 = vpop.f32.mrb[0].mxu0
        %v6227 = vadd.f32 %v6114, %v6226
        %v6228 = vpop.f32.mrb[0].mxu0
        %v6229 = vadd.f32 %v6116, %v6228
        %v6230 = vpop.f32.mrb[0].mxu0
        %v6231 = vadd.f32 %v6118, %v6230
        %v6232 = vpop.f32.mrb[0].mxu0
        %v6233 = vadd.f32 %v6120, %v6232
        %6234 = vmatprep.mubr.bf16.mxu0 0
        %6235 = vmatmul.mubr.bf16.gmra.mrb[0].mxu0 %v1603
        %v6236 = vpop.f32.mrb[0].mxu0
        %v6237 = vadd.f32 %v6124, %v6236
        %v6238 = vpop.f32.mrb[0].mxu0
        %v6239 = vadd.f32 %v6126, %v6238
        %v6240 = vpop.f32.mrb[0].mxu0
        %v6241 = vadd.f32 %v6128, %v6240
        %v6242 = vpop.f32.mrb[0].mxu0
        %v6243 = vadd.f32 %v6130, %v6242
        %6244 = vmatprep.mubr.bf16.mxu0 0
        %6245 = vmatmul.mubr.bf16.gmra.mrb[0].mxu0 %v1636
        %v6246 = vpop.f32.mrb[0].mxu0
        %v6247 = vadd.f32 %v6134, %v6246
        %v6248 = vpop.f32.mrb[0].mxu0
        %v6249 = vadd.f32 %v6136, %v6248
        %v6250 = vpop.f32.mrb[0].mxu0
        %v6251 = vadd.f32 %v6138, %v6250
        %v6252 = vpop.f32.mrb[0].mxu0
        %v6253 = vadd.f32 %v6140, %v6252
        %6254 = vmatprep.mubr.bf16.mxu0 0
        %6255 = vmatmul.mubr.bf16.gmra.mrb[0].mxu0 %v1669
        %v6256 = vpop.f32.mrb[0].mxu0
        %v6257 = vadd.f32 %v6144, %v6256
        %v6258 = vpop.f32.mrb[0].mxu0
        %v6259 = vadd.f32 %v6146, %v6258
        %v6260 = vpop.f32.mrb[0].mxu0
        %v6261 = vadd.f32 %v6148, %v6260
        %v6262 = vpop.f32.mrb[0].mxu0
        %v6263 = vadd.f32 %v6150, %v6262
        %6264 = vmatprep.mubr.bf16.mxu0 0
        %6265 = vmatmul.mubr.bf16.gmra.mrb[0].mxu0 %v1702
        %v6266 = vpop.f32.mrb[0].mxu0
        %v6267 = vadd.f32 %v6154, %v6266
        %v6268 = vpop.f32.mrb[0].mxu0
        %v6269 = vadd.f32 %v6156, %v6268
        %v6270 = vpop.f32.mrb[0].mxu0
        %v6271 = vadd.f32 %v6158, %v6270
        %v6272 = vpop.f32.mrb[0].mxu0
        %v6273 = vadd.f32 %v6160, %v6272
        %6274 = vdwg.mxu0
        %v6275 = vmax.f32 %v6197, 0.0
        %v6276 = vmax.f32 %v6199, 0.0
        %v6277 = vmax.f32 %v6201, 0.0
        %v6278 = vmax.f32 %v6203, 0.0
        %v6279 = vmax.f32 %v6207, 0.0
        %v6280 = vmax.f32 %v6209, 0.0
        %v6281 = vmax.f32 %v6211, 0.0
        %v6282 = vmax.f32 %v6213, 0.0
        %v6283 = vmax.f32 %v6217, 0.0
        %v6284 = vmax.f32 %v6219, 0.0
        %v6285 = vmax.f32 %v6221, 0.0
        %v6286 = vmax.f32 %v6223, 0.0
        %v6287 = vmax.f32 %v6227, 0.0
        %v6288 = vmax.f32 %v6229, 0.0
        %v6289 = vmax.f32 %v6231, 0.0
        %v6290 = vmax.f32 %v6233, 0.0
        %v6291 = vmax.f32 %v6237, 0.0
        %v6292 = vmax.f32 %v6239, 0.0
        %v6293 = vmax.f32 %v6241, 0.0
        %v6294 = vmax.f32 %v6243, 0.0
        %v6295 = vmax.f32 %v6247, 0.0
        %v6296 = vmax.f32 %v6249, 0.0
        %v6297 = vmax.f32 %v6251, 0.0
        %v6298 = vmax.f32 %v6253, 0.0
        %v6299 = vmax.f32 %v6257, 0.0
        %v6300 = vmax.f32 %v6259, 0.0
        %v6301 = vmax.f32 %v6261, 0.0
        %v6302 = vmax.f32 %v6263, 0.0
        %v6303 = vmax.f32 %v6267, 0.0
        %v6304 = vmax.f32 %v6269, 0.0
        %v6305 = vmax.f32 %v6271, 0.0
        %v6306 = vmax.f32 %v6273, 0.0
        %v6307 = vld [vmem:[#allocation8] sm:$0xf]
        %v6308 = vld [vmem:[#allocation8 + $0x4] sm:$0xf]
        %v6309 = vld [vmem:[#allocation8 + $0x8] sm:$0xf]
        %v6310 = vld [vmem:[#allocation8 + $0xc] sm:$0xf]
        %v6311 = vld [vmem:[#allocation8 + $0x10] sm:$0xf]
        %v6312 = vld [vmem:[#allocation8 + $0x14] sm:$0xf]
        %v6313 = vld [vmem:[#allocation8 + $0x18] sm:$0xf]
        %v6314 = vld [vmem:[#allocation8 + $0x1c] sm:$0xf]
        %v6315 = vld [vmem:[#allocation8 + $0x20] sm:$0xf]
        %v6316 = vld [vmem:[#allocation8 + $0x24] sm:$0xf]
        %v6317 = vld [vmem:[#allocation8 + $0x28] sm:$0xf]
        %v6318 = vld [vmem:[#allocation8 + $0x2c] sm:$0xf]
        %v6319 = vld [vmem:[#allocation8 + $0x30] sm:$0xf]
        %v6320 = vld [vmem:[#allocation8 + $0x34] sm:$0xf]
        %v6321 = vld [vmem:[#allocation8 + $0x38] sm:$0xf]
        %v6322 = vld [vmem:[#allocation8 + $0x3c] sm:$0xf]
        %v6323 = vld [vmem:[#allocation8 + $0x40] sm:$0xf]
        %v6324 = vld [vmem:[#allocation8 + $0x44] sm:$0xf]
        %v6325 = vld [vmem:[#allocation8 + $0x48] sm:$0xf]
        %v6326 = vld [vmem:[#allocation8 + $0x4c] sm:$0xf]
        %v6327 = vld [vmem:[#allocation8 + $0x50] sm:$0xf]
        %v6328 = vld [vmem:[#allocation8 + $0x54] sm:$0xf]
        %v6329 = vld [vmem:[#allocation8 + $0x58] sm:$0xf]
        %v6330 = vld [vmem:[#allocation8 + $0x5c] sm:$0xf]
        %v6331 = vld [vmem:[#allocation8 + $0x60] sm:$0xf]
        %v6332 = vld [vmem:[#allocation8 + $0x64] sm:$0xf]
        %v6333 = vld [vmem:[#allocation8 + $0x68] sm:$0xf]
        %v6334 = vld [vmem:[#allocation8 + $0x6c] sm:$0xf]
        %v6335 = vld [vmem:[#allocation8 + $0x70] sm:$0xf]
        %v6336 = vld [vmem:[#allocation8 + $0x74] sm:$0xf]
        %v6337 = vld [vmem:[#allocation8 + $0x78] sm:$0xf]
        %v6338 = vld [vmem:[#allocation8 + $0x7c] sm:$0xf]
        %v6339 = vld [vmem:[#allocation10] sm:$0x1]
        %v6340 = vpack.c.bf16 %v6277, %v6275
        %v6341 = vpack.c.bf16 %v6278, %v6276
        %v6342 = vpack.c.bf16 %v6281, %v6279
        %v6343 = vpack.c.bf16 %v6282, %v6280
        %v6344 = vpack.c.bf16 %v6285, %v6283
        %v6345 = vpack.c.bf16 %v6286, %v6284
        %v6346 = vpack.c.bf16 %v6289, %v6287
        %v6347 = vpack.c.bf16 %v6290, %v6288
        %v6348 = vpack.c.bf16 %v6293, %v6291
        %v6349 = vpack.c.bf16 %v6294, %v6292
        %v6350 = vpack.c.bf16 %v6297, %v6295
        %v6351 = vpack.c.bf16 %v6298, %v6296
        %v6352 = vpack.c.bf16 %v6301, %v6299
        %v6353 = vpack.c.bf16 %v6302, %v6300
        %v6354 = vpack.c.bf16 %v6305, %v6303
        %v6355 = vpack.c.bf16 %v6306, %v6304
        %v6357 = vlaneseq
        %v6358 = vshrl.u32 %v6357, 7
        %v6359 = vsub.s32 0, %v6358
        %v6360 = vrot.slane %v6339, %v6359
        %v6394 = vunpack.c.l.b16 %v6307
        %v6395 = vunpack.c.l.b16 %v6308
        %v6396 = vunpack.c.l.b16 %v6309
        %v6397 = vunpack.c.l.b16 %v6310
        %v6398 = vunpack.c.l.b16 %v6311
        %v6399 = vunpack.c.l.b16 %v6312
        %v6400 = vunpack.c.l.b16 %v6313
        %v6401 = vunpack.c.l.b16 %v6314
        %v6402 = vunpack.c.l.b16 %v6315
        %v6403 = vunpack.c.l.b16 %v6316
        %v6404 = vunpack.c.l.b16 %v6317
        %v6405 = vunpack.c.l.b16 %v6318
        %v6406 = vunpack.c.l.b16 %v6319
        %v6407 = vunpack.c.l.b16 %v6320
        %v6408 = vunpack.c.l.b16 %v6321
        %v6409 = vunpack.c.l.b16 %v6322
        %v6410 = vunpack.c.l.b16 %v6323
        %v6411 = vunpack.c.l.b16 %v6324
        %v6412 = vunpack.c.l.b16 %v6325
        %v6413 = vunpack.c.l.b16 %v6326
        %v6414 = vunpack.c.l.b16 %v6327
        %v6415 = vunpack.c.l.b16 %v6328
        %v6416 = vunpack.c.l.b16 %v6329
        %v6417 = vunpack.c.l.b16 %v6330
        %v6418 = vunpack.c.l.b16 %v6331
        %v6419 = vunpack.c.l.b16 %v6332
        %v6420 = vunpack.c.l.b16 %v6333
        %v6421 = vunpack.c.l.b16 %v6334
        %v6422 = vunpack.c.l.b16 %v6335
        %v6423 = vunpack.c.l.b16 %v6336
        %v6424 = vunpack.c.l.b16 %v6337
        %v6425 = vunpack.c.l.b16 %v6338
        %v6426 = vpack.c.b16 %v6395, %v6394
        %v6427 = vpack.c.b16 %v6397, %v6396
        %v6428 = vpack.c.b16 %v6399, %v6398
        %v6429 = vpack.c.b16 %v6401, %v6400
        %v6430 = vpack.c.b16 %v6403, %v6402
        %v6431 = vpack.c.b16 %v6405, %v6404
        %v6432 = vpack.c.b16 %v6407, %v6406
        %v6433 = vpack.c.b16 %v6409, %v6408
        %v6434 = vpack.c.b16 %v6411, %v6410
        %v6435 = vpack.c.b16 %v6413, %v6412
        %v6436 = vpack.c.b16 %v6415, %v6414
        %v6437 = vpack.c.b16 %v6417, %v6416
        %v6438 = vpack.c.b16 %v6419, %v6418
        %v6439 = vpack.c.b16 %v6421, %v6420
        %v6440 = vpack.c.b16 %v6423, %v6422
        %v6441 = vpack.c.b16 %v6425, %v6424
        %6458 = vmatprep.subr.bf16.mxu0 0
        %6459 = vmatpush1.bf16.msra.mxu0 %v6426
        %6460 = vmatprep.subr.bf16.mxu0 0
        %6461 = vmatpush1.bf16.msra.mxu0 %v6427
        %6462 = vmatprep.subr.bf16.mxu0 0
        %6463 = vmatpush1.bf16.msra.mxu0 %v6428
        %6464 = vmatprep.subr.bf16.mxu0 0
        %6465 = vmatpush1.bf16.msra.mxu0 %v6429
        %6466 = vmatprep.subr.bf16.mxu0 0
        %6467 = vmatpush1.bf16.msra.mxu0 %v6430
        %6468 = vmatprep.subr.bf16.mxu0 0
        %6469 = vmatpush1.bf16.msra.mxu0 %v6431
        %6470 = vmatprep.subr.bf16.mxu0 0
        %6471 = vmatpush1.bf16.msra.mxu0 %v6432
        %6472 = vmatprep.subr.bf16.mxu0 0
        %6473 = vmatpush1.bf16.msra.mxu0 %v6433
        %6474 = vmatprep.subr.bf16.mxu0 0
        %6475 = vmatpush1.bf16.msra.mxu0 %v6434
        %6476 = vmatprep.subr.bf16.mxu0 0
        %6477 = vmatpush1.bf16.msra.mxu0 %v6435
        %6478 = vmatprep.subr.bf16.mxu0 0
        %6479 = vmatpush1.bf16.msra.mxu0 %v6436
        %6480 = vmatprep.subr.bf16.mxu0 0
        %6481 = vmatpush1.bf16.msra.mxu0 %v6437
        %6482 = vmatprep.subr.bf16.mxu0 0
        %6483 = vmatpush1.bf16.msra.mxu0 %v6438
        %6484 = vmatprep.subr.bf16.mxu0 0
        %6485 = vmatpush1.bf16.msra.mxu0 %v6439
        %6486 = vmatprep.subr.bf16.mxu0 0
        %6487 = vmatpush1.bf16.msra.mxu0 %v6440
        %6488 = vmatprep.subr.bf16.mxu0 0
        %6489 = vmatpush1.bf16.msra.mxu0 %v6441
        %6490 = vmatprep.mubr.bf16.mxu0 %v6341
        %6491 = vmatmul.mubr.bf16.gmra.mrb[0].mxu0 %v6340
        %v6492 = vpop.f32.mrb[0].mxu0
        %v6493 = vadd.f32 %v6360, %v6492
        %v6494 = vpop.f32.mrb[0].mxu0
        %v6495 = vpop.f32.mrb[0].mxu0
        %v6496 = vadd.f32 %v6360, %v6495
        %v6497 = vpop.f32.mrb[0].mxu0
        %6498 = vmatprep.mubr.bf16.mxu0 %v6343
        %6499 = vmatmul.mubr.bf16.gmra.mrb[0].mxu0 %v6342
        %v6500 = vpop.f32.mrb[0].mxu0
        %v6501 = vadd.f32 %v6360, %v6500
        %v6502 = vpop.f32.mrb[0].mxu0
        %v6503 = vpop.f32.mrb[0].mxu0
        %v6504 = vadd.f32 %v6360, %v6503
        %v6505 = vpop.f32.mrb[0].mxu0
        %6506 = vmatprep.mubr.bf16.mxu0 %v6345
        %6507 = vmatmul.mubr.bf16.gmra.mrb[0].mxu0 %v6344
        %v6508 = vpop.f32.mrb[0].mxu0
        %v6509 = vadd.f32 %v6360, %v6508
        %v6510 = vpop.f32.mrb[0].mxu0
        %v6511 = vpop.f32.mrb[0].mxu0
        %v6512 = vadd.f32 %v6360, %v6511
        %v6513 = vpop.f32.mrb[0].mxu0
        %6514 = vmatprep.mubr.bf16.mxu0 %v6347
        %6515 = vmatmul.mubr.bf16.gmra.mrb[0].mxu0 %v6346
        %v6516 = vpop.f32.mrb[0].mxu0
        %v6517 = vadd.f32 %v6360, %v6516
        %v6518 = vpop.f32.mrb[0].mxu0
        %v6519 = vpop.f32.mrb[0].mxu0
        %v6520 = vadd.f32 %v6360, %v6519
        %v6521 = vpop.f32.mrb[0].mxu0
        %6522 = vmatprep.mubr.bf16.mxu0 %v6349
        %6523 = vmatmul.mubr.bf16.gmra.mrb[0].mxu0 %v6348
        %v6524 = vpop.f32.mrb[0].mxu0
        %v6525 = vadd.f32 %v6360, %v6524
        %v6526 = vpop.f32.mrb[0].mxu0
        %v6527 = vpop.f32.mrb[0].mxu0
        %v6528 = vadd.f32 %v6360, %v6527
        %v6529 = vpop.f32.mrb[0].mxu0
        %6530 = vmatprep.mubr.bf16.mxu0 %v6351
        %6531 = vmatmul.mubr.bf16.gmra.mrb[0].mxu0 %v6350
        %v6532 = vpop.f32.mrb[0].mxu0
        %v6533 = vadd.f32 %v6360, %v6532
        %v6534 = vpop.f32.mrb[0].mxu0
        %v6535 = vpop.f32.mrb[0].mxu0
        %v6536 = vadd.f32 %v6360, %v6535
        %v6537 = vpop.f32.mrb[0].mxu0
        %6538 = vmatprep.mubr.bf16.mxu0 %v6353
        %6539 = vmatmul.mubr.bf16.gmra.mrb[0].mxu0 %v6352
        %v6540 = vpop.f32.mrb[0].mxu0
        %v6541 = vadd.f32 %v6360, %v6540
        %v6542 = vpop.f32.mrb[0].mxu0
        %v6543 = vpop.f32.mrb[0].mxu0
        %v6544 = vadd.f32 %v6360, %v6543
        %v6545 = vpop.f32.mrb[0].mxu0
        %6546 = vmatprep.mubr.bf16.mxu0 %v6355
        %6547 = vmatmul.mubr.bf16.gmra.mrb[0].mxu0 %v6354
        %v6548 = vpop.f32.mrb[0].mxu0
        %v6549 = vadd.f32 %v6360, %v6548
        %v6550 = vpop.f32.mrb[0].mxu0
        %v6551 = vpop.f32.mrb[0].mxu0
        %v6552 = vadd.f32 %v6360, %v6551
        %v6553 = vpop.f32.mrb[0].mxu0
        %6554 = vdwg.mxu0
        %v6555 = vmax.f32 %v6493, 0.0
        %v6556 = vmax.f32 %v6496, 0.0
        %v6557 = vmax.f32 %v6501, 0.0
        %v6558 = vmax.f32 %v6504, 0.0
        %v6559 = vmax.f32 %v6509, 0.0
        %v6560 = vmax.f32 %v6512, 0.0
        %v6561 = vmax.f32 %v6517, 0.0
        %v6562 = vmax.f32 %v6520, 0.0
        %v6563 = vmax.f32 %v6525, 0.0
        %v6564 = vmax.f32 %v6528, 0.0
        %v6565 = vmax.f32 %v6533, 0.0
        %v6566 = vmax.f32 %v6536, 0.0
        %v6567 = vmax.f32 %v6541, 0.0
        %v6568 = vmax.f32 %v6544, 0.0
        %v6569 = vmax.f32 %v6549, 0.0
        %v6570 = vmax.f32 %v6552, 0.0
        %v6571 = vld [vmem:[#allocation11] sm:$0xf]
        %v6572 = vld [vmem:[#allocation11 + $0x4] sm:$0xf]
        %v6573 = vld [vmem:[#allocation11 + $0x8] sm:$0xf]
        %v6574 = vld [vmem:[#allocation11 + $0xc] sm:$0xf]
        %v6575 = vld [vmem:[#allocation11 + $0x10] sm:$0xf]
        %v6576 = vld [vmem:[#allocation11 + $0x14] sm:$0xf]
        %v6577 = vld [vmem:[#allocation11 + $0x18] sm:$0xf]
        %v6578 = vld [vmem:[#allocation11 + $0x1c] sm:$0xf]
        %v6579 = vld [vmem:[#allocation11 + $0x20] sm:$0xf]
        %v6580 = vld [vmem:[#allocation11 + $0x24] sm:$0xf]
        %v6581 = vld [vmem:[#allocation11 + $0x28] sm:$0xf]
        %v6582 = vld [vmem:[#allocation11 + $0x2c] sm:$0xf]
        %v6583 = vld [vmem:[#allocation11 + $0x30] sm:$0xf]
        %v6584 = vld [vmem:[#allocation11 + $0x34] sm:$0xf]
        %v6585 = vld [vmem:[#allocation11 + $0x38] sm:$0xf]
        %v6586 = vld [vmem:[#allocation11 + $0x3c] sm:$0xf]
        %v6587 = vld [vmem:[#allocation13] sm:$0x1]
        %v6588 = vpack.c.bf16 %v6556, %v6555
        %v6589 = vpack.c.bf16 %v6558, %v6557
        %v6590 = vpack.c.bf16 %v6560, %v6559
        %v6591 = vpack.c.bf16 %v6562, %v6561
        %v6592 = vpack.c.bf16 %v6564, %v6563
        %v6593 = vpack.c.bf16 %v6566, %v6565
        %v6594 = vpack.c.bf16 %v6568, %v6567
        %v6595 = vpack.c.bf16 %v6570, %v6569
        %v6597 = vlaneseq
        %v6598 = vshrl.u32 %v6597, 7
        %v6599 = vsub.s32 0, %v6598
        %v6600 = vrot.slane %v6587, %v6599
        %v6618 = vunpack.c.l.b16 %v6571
        %v6619 = vunpack.c.l.b16 %v6572
        %v6620 = vunpack.c.l.b16 %v6573
        %v6621 = vunpack.c.l.b16 %v6574
        %v6622 = vunpack.c.l.b16 %v6575
        %v6623 = vunpack.c.l.b16 %v6576
        %v6624 = vunpack.c.l.b16 %v6577
        %v6625 = vunpack.c.l.b16 %v6578
        %v6626 = vunpack.c.l.b16 %v6579
        %v6627 = vunpack.c.l.b16 %v6580
        %v6628 = vunpack.c.l.b16 %v6581
        %v6629 = vunpack.c.l.b16 %v6582
        %v6630 = vunpack.c.l.b16 %v6583
        %v6631 = vunpack.c.l.b16 %v6584
        %v6632 = vunpack.c.l.b16 %v6585
        %v6633 = vunpack.c.l.b16 %v6586
        %v6634 = vpack.c.b16 %v6619, %v6618
        %v6635 = vpack.c.b16 %v6621, %v6620
        %v6636 = vpack.c.b16 %v6623, %v6622
        %v6637 = vpack.c.b16 %v6625, %v6624
        %v6638 = vpack.c.b16 %v6627, %v6626
        %v6639 = vpack.c.b16 %v6629, %v6628
        %v6640 = vpack.c.b16 %v6631, %v6630
        %v6641 = vpack.c.b16 %v6633, %v6632
        %6650 = vmatprep.subr.bf16.mxu0 0
        %6651 = vmatpush1.bf16.msra.mxu0 %v6634
        %6652 = vmatprep.subr.bf16.mxu0 0
        %6653 = vmatpush1.bf16.msra.mxu0 %v6635
        %6654 = vmatprep.subr.bf16.mxu0 0
        %6655 = vmatpush1.bf16.msra.mxu0 %v6636
        %6656 = vmatprep.subr.bf16.mxu0 0
        %6657 = vmatpush1.bf16.msra.mxu0 %v6637
        %6658 = vmatprep.subr.bf16.mxu0 0
        %6659 = vmatpush1.bf16.msra.mxu0 %v6638
        %6660 = vmatprep.subr.bf16.mxu0 0
        %6661 = vmatpush1.bf16.msra.mxu0 %v6639
        %6662 = vmatprep.subr.bf16.mxu0 0
        %6663 = vmatpush1.bf16.msra.mxu0 %v6640
        %6664 = vmatprep.subr.bf16.mxu0 0
        %6665 = vmatpush1.bf16.msra.mxu0 %v6641
        %6666 = vmatprep.subr.bf16.mxu0 0
        %6667 = vmatpush1.bf16.msra.mxu0 0
        %6668 = vmatprep.subr.bf16.mxu0 0
        %6669 = vmatpush1.bf16.msra.mxu0 0
        %6670 = vmatprep.subr.bf16.mxu0 0
        %6671 = vmatpush1.bf16.msra.mxu0 0
        %6672 = vmatprep.subr.bf16.mxu0 0
        %6673 = vmatpush1.bf16.msra.mxu0 0
        %6674 = vmatprep.subr.bf16.mxu0 0
        %6675 = vmatpush1.bf16.msra.mxu0 0
        %6676 = vmatprep.subr.bf16.mxu0 0
        %6677 = vmatpush1.bf16.msra.mxu0 0
        %6678 = vmatprep.subr.bf16.mxu0 0
        %6679 = vmatpush1.bf16.msra.mxu0 0
        %6680 = vmatprep.subr.bf16.mxu0 0
        %6681 = vmatpush1.bf16.msra.mxu0 0
        %6682 = vmatprep.mubr.bf16.mxu0 0
        %6683 = vmatmul.mubr.bf16.gmra.mrb[0].mxu0 %v6588
        %v6684 = vpop.f32.mrb[0].mxu0
        %v6685 = vadd.f32 %v6600, %v6684
        %v6686 = vpop.f32.mrb[0].mxu0
        %v6687 = vpop.f32.mrb[0].mxu0
        %v6688 = vadd.f32 %v6600, %v6687
        %v6689 = vpop.f32.mrb[0].mxu0
        %6690 = vmatprep.mubr.bf16.mxu0 0
        %6691 = vmatmul.mubr.bf16.gmra.mrb[0].mxu0 %v6589
        %v6692 = vpop.f32.mrb[0].mxu0
        %v6693 = vadd.f32 %v6600, %v6692
        %v6694 = vpop.f32.mrb[0].mxu0
        %v6695 = vpop.f32.mrb[0].mxu0
        %v6696 = vadd.f32 %v6600, %v6695
        %v6697 = vpop.f32.mrb[0].mxu0
        %6698 = vmatprep.mubr.bf16.mxu0 0
        %6699 = vmatmul.mubr.bf16.gmra.mrb[0].mxu0 %v6590
        %v6700 = vpop.f32.mrb[0].mxu0
        %v6701 = vadd.f32 %v6600, %v6700
        %v6702 = vpop.f32.mrb[0].mxu0
        %v6703 = vpop.f32.mrb[0].mxu0
        %v6704 = vadd.f32 %v6600, %v6703
        %v6705 = vpop.f32.mrb[0].mxu0
        %6706 = vmatprep.mubr.bf16.mxu0 0
        %6707 = vmatmul.mubr.bf16.gmra.mrb[0].mxu0 %v6591
        %v6708 = vpop.f32.mrb[0].mxu0
        %v6709 = vadd.f32 %v6600, %v6708
        %v6710 = vpop.f32.mrb[0].mxu0
        %v6711 = vpop.f32.mrb[0].mxu0
        %v6712 = vadd.f32 %v6600, %v6711
        %v6713 = vpop.f32.mrb[0].mxu0
        %6714 = vmatprep.mubr.bf16.mxu0 0
        %6715 = vmatmul.mubr.bf16.gmra.mrb[0].mxu0 %v6592
        %v6716 = vpop.f32.mrb[0].mxu0
        %v6717 = vadd.f32 %v6600, %v6716
        %v6718 = vpop.f32.mrb[0].mxu0
        %v6719 = vpop.f32.mrb[0].mxu0
        %v6720 = vadd.f32 %v6600, %v6719
        %v6721 = vpop.f32.mrb[0].mxu0
        %6722 = vmatprep.mubr.bf16.mxu0 0
        %6723 = vmatmul.mubr.bf16.gmra.mrb[0].mxu0 %v6593
        %v6724 = vpop.f32.mrb[0].mxu0
        %v6725 = vadd.f32 %v6600, %v6724
        %v6726 = vpop.f32.mrb[0].mxu0
        %v6727 = vpop.f32.mrb[0].mxu0
        %v6728 = vadd.f32 %v6600, %v6727
        %v6729 = vpop.f32.mrb[0].mxu0
        %6730 = vmatprep.mubr.bf16.mxu0 0
        %6731 = vmatmul.mubr.bf16.gmra.mrb[0].mxu0 %v6594
        %v6732 = vpop.f32.mrb[0].mxu0
        %v6733 = vadd.f32 %v6600, %v6732
        %v6734 = vpop.f32.mrb[0].mxu0
        %v6735 = vpop.f32.mrb[0].mxu0
        %v6736 = vadd.f32 %v6600, %v6735
        %v6737 = vpop.f32.mrb[0].mxu0
        %6738 = vmatprep.mubr.bf16.mxu0 0
        %6739 = vmatmul.mubr.bf16.gmra.mrb[0].mxu0 %v6595
        %v6740 = vpop.f32.mrb[0].mxu0
        %v6741 = vadd.f32 %v6600, %v6740
        %v6742 = vpop.f32.mrb[0].mxu0
        %v6743 = vpop.f32.mrb[0].mxu0
        %v6744 = vadd.f32 %v6600, %v6743
        %v6745 = vpop.f32.mrb[0].mxu0
        %6746 = vdwg.mxu0
        %6747 = vst [vmem:[%s378] sm:$0xff] %v6685
        %6748 = vst [vmem:[%s378 + $0x8] sm:$0xff] %v6688
        %6749 = vst [vmem:[%s378 + $0x10] sm:$0xff] %v6693
        %6750 = vst [vmem:[%s378 + $0x18] sm:$0xff] %v6696
        %6751 = vst [vmem:[%s378 + $0x20] sm:$0xff] %v6701
        %6752 = vst [vmem:[%s378 + $0x28] sm:$0xff] %v6704
        %6753 = vst [vmem:[%s378 + $0x30] sm:$0xff] %v6709
        %6754 = vst [vmem:[%s378 + $0x38] sm:$0xff] %v6712
        %6755 = vst [vmem:[%s378 + $0x40] sm:$0xff] %v6717
        %6756 = vst [vmem:[%s378 + $0x48] sm:$0xff] %v6720
        %6757 = vst [vmem:[%s378 + $0x50] sm:$0xff] %v6725
        %6758 = vst [vmem:[%s378 + $0x58] sm:$0xff] %v6728
        %6759 = vst [vmem:[%s378 + $0x60] sm:$0xff] %v6733
        %6760 = vst [vmem:[%s378 + $0x68] sm:$0xff] %v6736
        %6761 = vst [vmem:[%s378 + $0x70] sm:$0xff] %v6741
        %6762 = vst [vmem:[%s378 + $0x78] sm:$0xff] %v6744
        %s6763 = sand.u32 %s187, 1
        %s6764 = scalar_lea.sflag [#allocation4], %s6763
        %s6765 = sand.u32 %s187, 1
        %s6766 = smul.addr %s6765, 128
        %s6767 = scalar_lea.vmem [#allocation14], %s6766
        // Predicated region
        $region77: #{tpu_custom_call.1} parent=47 // pred_check
          %p6768 = pneg %p197
        $region78: #{tpu_custom_call.1} parent=47 // pred_check_branch
          %6770 = sbr.rel (%p6768) target = $region80
        $region79: #{tpu_custom_call.1} parent=47 // pred_region
          %s6771 = smul.u32 16, %s27
          %s6773 = ssub.s32 2048, 2048
          %6774 = vsyncadd %s6764, %s6773
          %s6775 = smul.addr %s6771, 128
          %s6776 = scalar_lea.hbm %s7, %s6775
          %s6777 = sshll.u32 %s6767, 4
          %s6778 = int_to_ptr.vmem [resolvable:$true] %s6777
          %6783 = dma.vmem_to_hbm [thread:$0]  %s6778, 2048, %s6776, %s6764, 128, 128, 8
        $region80: #{tpu_custom_call.1} parent=47 // pred_fallthru
          _
      $region48: #{tpu_custom_call.1} parent=5 // pred_fallthru
        _
      %p6784 = scmp.le.s32.totalorder 2, %s22
      // Predicated region
      $region81: #{tpu_custom_call.1} parent=5 // pred_check
        %p6785 = pneg %p6784
      $region82: #{tpu_custom_call.1} parent=5 // pred_check_branch
        %6787 = sbr.rel (%p6785) target = $region84
      $region83: #{tpu_custom_call.1} parent=5 // pred_region
        %s6788 = ssub.s32 %s22, 2
        // Predicated region
        $region85: #{tpu_custom_call.1} parent=83 // pred_check
          %p6789 = pneg %p203
        $region86: #{tpu_custom_call.1} parent=83 // pred_check_branch
          %6791 = sbr.rel (%p6789) target = $region88
        $region87: #{tpu_custom_call.1} parent=83 // pred_region
          %s6792 = sand.u32 %s188, 1
          %s6793 = scalar_lea.sflag [#allocation4], %s6792
          %s6794 = sand.u32 %s188, 1
          %s6795 = smul.addr %s6794, 128
          %s6796 = scalar_lea.vmem [#allocation14], %s6795
          %6797 = dma.done %s6793, 2048
        $region88: #{tpu_custom_call.1} parent=83 // pred_fallthru
          _
      $region84: #{tpu_custom_call.1} parent=5 // pred_fallthru
        _
    $region6: #{tpu_custom_call.1} parent=1 // loop_footer
      %s26 = sadd.s32 1, %s22
    $region7: #{tpu_custom_call.1} parent=1 // loop_footer_branch
      %21 = sbr.rel target = $region3
    $region8: #{tpu_custom_call.1} parent=1 // loop_exit
      _
    %6798 = vsyncpa [#allocation3], 1
    %s6799 = scalar_lea.sflag [#allocation3], 1
    %6800 = vsyncpa %s6799, 1
    %6801 = vsyncpa [#allocation6], 1
    %6802 = vsyncpa [#allocation9], 1
    %6803 = vsyncpa [#allocation12], 1
    %6804 = vsyncpa [#allocation4], 1
    %s6805 = scalar_lea.sflag [#allocation4], 1
    %6806 = vsyncpa %s6805, 1

</llo_original>
